<compile_context>
chip_gen: v7x
topology: tpu7x:2x2x1
jax: 0.10.0
libtpu: 0.0.40
codegen_flags: <defaults>
</compile_context>

<pallas_src>
import functools

import numpy as np
import jax
import jax.numpy as jnp
from jax import lax
from jax.experimental import pallas as pl
from jax.experimental.pallas import tpu as pltpu

H = 4
W = 4
S = H * W                    # 16 spatial positions produced by the 4x4 ConvTranspose
RGB_PAD = 128                # lane-dense output width; lanes 0..47 carry RGB (c*16+s)
LEAKY_SLOPE = 0.2
NORM_EPS = 1e-8

MIN_TILE = 16                            # bf16 sublane packing => 16-row aligned stores
VMEM_WORKSET_BUDGET = 20 * 1024 * 1024   # cap per-step working set (v5e/v7x friendly)
VMEM_LIMIT_BYTES = 40 * 1024 * 1024      # < v7x 64 MiB physical, > v5e 16 MiB default


def _latent_projection_kernel(x_ref, w1_ref, b1_ref, w2_ref, b2_ref,
                              wrgb_ref, brgb_ref, out_ref, h_scr, cat_scr):
    TN = x_ref.shape[0]              # batch tile (power of two, >= 16)
    Cp = w2_ref.shape[1]
    rows = S * TN                    # slab interior rows, ordering r = s*TN + n
    PAD = 5 * TN                     # max |spatial row shift| = 5 positions
    log2_tn = TN.bit_length() - 1

    # --- ConvTranspose2d(Cl, Cp, 4) on a 1x1 latent: one wide matmul -------------
    # (TN, Cl) x (Cl, 16*Cp), single bias + LeakyReLU pass, cast to bf16 once, then
    # scatter the 16 per-pixel blocks into the spatial-major slab.
    xb = x_ref[...].astype(jnp.bfloat16)
    h1 = jnp.dot(xb, w1_ref[...], preferred_element_type=jnp.float32) + b1_ref[...]
    h1 = jnp.where(h1 > 0, h1, LEAKY_SLOPE * h1)          # f32 VPU (v5e-safe)
    h1 = h1.astype(jnp.bfloat16)                          # slab lives in bf16
    for s in range(S):
        h_scr[pl.ds(PAD + s * TN, TN), :] = h1[:, s * Cp:(s + 1) * Cp]

    # Spatial coordinates of each interior slab row (TN is a power of two, so this
    # is pure shift/and work on the VPU).
    r_idx = lax.broadcasted_iota(jnp.int32, (rows, 1), 0)
    si = r_idx >> (log2_tn + 2)                           # row // (4*TN)
    sj = (r_idx >> log2_tn) & 3                           # (row // TN) % 4

    # --- Conv2d(Cp, Cp, 3, padding=1): ONE concatenated-K matmul -----------------
    # Build a (rows, 9*Cp) bf16 LHS from the 9 statically-shifted slab views (the
    # si/sj masks also cover the uninitialized halo rows), then a single
    # (rows, 9*Cp) x (9*Cp, Cp) MXU matmul.
    for t in range(9):
        kh, kw = divmod(t, 3)
        di, dj = kh - 1, kw - 1
        shift = (di * W + dj) * TN
        nbr = h_scr[pl.ds(PAD + shift, rows), :]          # shifted bf16 row-view
        conds = []
        if di > 0:
            conds.append(si < H - di)
        if di < 0:
            conds.append(si >= -di)
        if dj > 0:
            conds.append(sj < W - dj)
        if dj < 0:
            conds.append(sj >= -dj)
        if conds:
            valid = functools.reduce(jnp.logical_and, conds)
            nbr = jnp.where(valid, nbr, jnp.zeros_like(nbr))
        cat_scr[:, t * Cp:(t + 1) * Cp] = nbr
    h2 = jnp.dot(cat_scr[...], w2_ref[...],
                 preferred_element_type=jnp.float32) + b2_ref[...]

    # --- PixelwiseNorm: lane reduce (XLU) + single rsqrt (EUP) + LeakyReLU --------
    ss = jnp.sum(h2 * h2, axis=-1, keepdims=True)          # (rows, 1) f32
    inv = lax.rsqrt(ss + NORM_EPS * NORM_EPS)              # ~ 1/(norm + eps)
    h3 = h2 * inv
    h3 = jnp.where(h3 > 0, h3, LEAKY_SLOPE * h3).astype(jnp.bfloat16)

    # --- to_rgb (1x1 conv), repacked to one lane-dense row per sample ------------
    # Per-position weights place the 3 RGB outputs at lanes c*16 + s, so the 16
    # partial matmuls accumulate directly into a (TN, 128) row-per-sample output.
    acc = jnp.zeros((TN, RGB_PAD), jnp.float32)
    for s in range(S):
        acc = acc + jnp.dot(h3[s * TN:(s + 1) * TN, :], wrgb_ref[s],
                            preferred_element_type=jnp.float32)
    out_ref[...] = acc + brgb_ref[...]


def make_latent_projection(params, *, weight_dtype=jnp.bfloat16,
                           max_batch_tile=256):
    """Restructure parameters ONCE and return a cached jitted forward(x_nchw)."""
    w1, b1, w2, b2, wrgb, brgb = params
    w1 = np.asarray(w1, np.float32)
    b1 = np.asarray(b1, np.float32)
    w2 = np.asarray(w2, np.float32)
    b2 = np.asarray(b2, np.float32)
    wrgb = np.asarray(wrgb, np.float32)
    brgb = np.asarray(brgb, np.float32)

    Cl, Cp = w1.shape[0], w1.shape[1]
    assert w1.shape == (Cl, Cp, 4, 4)
    assert w2.shape == (Cp, Cp, 3, 3)
    assert wrgb.shape[:2] == (3, Cp)

    # ConvTranspose2d (in, out, kH, kW) -> one wide (Cl, 16*Cp) matrix, col = s*Cp+o.
    w1w = jnp.asarray(w1.transpose(0, 2, 3, 1).reshape(Cl, S * Cp), weight_dtype)
    b1w = jnp.asarray(np.tile(b1, S).reshape(1, S * Cp), jnp.float32)
    # Conv2d 3x3 (out, in, kH, kW) -> concatenated-K (9*Cp, Cp), row = t*Cp+in.
    w2cat = jnp.asarray(w2.transpose(2, 3, 1, 0).reshape(9 * Cp, Cp), weight_dtype)
    b2r = jnp.asarray(b2.reshape(1, Cp), jnp.float32)
    # to_rgb 1x1 conv (3, Cp, 1, 1) -> per-position (16, Cp, 128); output lane c*16+s.
    wrgb2 = wrgb[:, :, 0, 0]                               # (3, Cp)
    wrgb_k = np.zeros((S, Cp, RGB_PAD), np.float32)
    for s in range(S):
        for c in range(3):
            wrgb_k[s, :, c * S + s] = wrgb2[c]
    wrgb_k = jnp.asarray(wrgb_k, weight_dtype)
    brgb_row = np.zeros((1, RGB_PAD), np.float32)
    for c in range(3):
        brgb_row[0, c * S:(c + 1) * S] = brgb[c]
    brgb_row = jnp.asarray(brgb_row, jnp.float32)

    def _vmem_estimate(t):
        rows = S * t
        return (26 * t * Cp * 2                         # bf16 slab (interior + halo)
                + rows * 9 * Cp * 2                      # bf16 concatenated-K LHS
                + t * S * Cp * (4 + 2)                   # wide ConvT activation
                + rows * Cp * 4 * 3                      # h2/h3/ss f32 temporaries
                + 2 * (Cl * S * Cp + 9 * Cp * Cp + S * Cp * RGB_PAD) * 2  # weights x2
                + 2 * (t * Cl * 4 + t * RGB_PAD * 4))    # double-buffered x / out

    def forward(x_nchw):
        N = x_nchw.shape[0]
        assert x_nchw.shape[1:] == (Cl, 1, 1), x_nchw.shape
        # TODO(synk): general HxW latent inputs to the ConvTranspose are not supported here.

        # Batch tile: power of two (shift-based spatial indexing), >= 16 (bf16 sublane
        # packing), >= 2 grid steps when possible (v7x megacore), VMEM-aware for big Cp.
        tn = pl.next_power_of_2(max(1, pl.cdiv(N, 2)))
        tn = max(MIN_TILE, min(max_batch_tile, tn))
        while tn > MIN_TILE and _vmem_estimate(tn) > VMEM_WORKSET_BUDGET:
            tn //= 2
        n_pad = pl.cdiv(N, tn) * tn
        grid = (n_pad // tn,)
        rows = S * tn

        x2d = x_nchw.reshape(N, Cl).astype(jnp.float32)
        if n_pad != N:
            x2d = jnp.pad(x2d, ((0, n_pad - N), (0, 0)))

        out2d = pl.pallas_call(
            _latent_projection_kernel,
            out_shape=jax.ShapeDtypeStruct((n_pad, RGB_PAD), jnp.float32),
            grid=grid,
            in_specs=[
                pl.BlockSpec((tn, Cl), lambda i: (i, 0)),          # x tiled on batch
                pl.BlockSpec((Cl, S * Cp), lambda i: (0, 0)),      # weights resident
                pl.BlockSpec((1, S * Cp), lambda i: (0, 0)),
                pl.BlockSpec((9 * Cp, Cp), lambda i: (0, 0)),
                pl.BlockSpec((1, Cp), lambda i: (0, 0)),
                pl.BlockSpec((S, Cp, RGB_PAD), lambda i: (0, 0, 0)),
                pl.BlockSpec((1, RGB_PAD), lambda i: (0, 0)),
            ],
            out_specs=pl.BlockSpec((tn, RGB_PAD), lambda i: (i, 0)),
            scratch_shapes=[
                pltpu.VMEM(((S + 10) * tn, Cp), jnp.bfloat16),     # spatial slab + halo
                pltpu.VMEM((rows, 9 * Cp), jnp.bfloat16),          # concat-K conv LHS
            ],
            compiler_params=pltpu.CompilerParams(
                dimension_semantics=("parallel",),
                vmem_limit_bytes=VMEM_LIMIT_BYTES),
        )(x2d, w1w, b1w, w2cat, b2r, wrgb_k, brgb_row)

        # One row per sample; lanes c*16 + (i*4+j) -> NCHW, drop batch padding.
        out = out2d[:, :3 * S].reshape(n_pad, 3, H, W)
        return out[:N]

    return jax.jit(forward)


def reference_forward(x_nchw, params):
    """Pure-JAX (XLA) f32 reference matching the PyTorch module semantics."""
    w1, b1, w2, b2, wrgb, brgb = params
    slope, eps = 0.2, 1e-8
    # ConvTranspose2d on 1x1 latent
    h = jnp.einsum('nc,coij->noij', x_nchw[:, :, 0, 0], w1) + b1[None, :, None, None]
    h = jnp.where(h > 0, h, slope * h)
    # Conv2d 3x3, padding 1
    h = lax.conv_general_dilated(h, w2, window_strides=(1, 1),
                                 padding=((1, 1), (1, 1)),
                                 dimension_numbers=('NCHW', 'OIHW', 'NCHW'))
    h = h + b2[None, :, None, None]
    # PixelwiseNorm
    norm = jnp.sqrt(jnp.sum(h * h, axis=1, keepdims=True))
    h = h / (norm + eps)
    h = jnp.where(h > 0, h, slope * h)
    # to_rgb 1x1 conv
    out = jnp.einsum('noij,ro->nrij', h, wrgb[:, :, 0, 0]) + brgb[None, :, None, None]
    return out


if __name__ == "__main__":
    N, Cl, Cp = 2, 8, 32   # batch=2, latent_channels=8, latent_proj_channels=32

    key = jax.random.PRNGKey(0)
    ks = jax.random.split(key, 7)
    x = jax.random.normal(ks[0], (N, Cl, 1, 1), jnp.float32)
    w1 = 0.1 * jax.random.normal(ks[1], (Cl, Cp, 4, 4), jnp.float32)   # ConvTranspose2d (I,O,kH,kW)
    b1 = 0.1 * jax.random.normal(ks[2], (Cp,), jnp.float32)
    w2 = 0.1 * jax.random.normal(ks[3], (Cp, Cp, 3, 3), jnp.float32)   # Conv2d (O,I,kH,kW)
    b2 = 0.1 * jax.random.normal(ks[4], (Cp,), jnp.float32)
    wrgb = 0.1 * jax.random.normal(ks[5], (3, Cp, 1, 1), jnp.float32)  # to_rgb Conv2d (O,I,1,1)
    brgb = 0.1 * jax.random.normal(ks[6], (3,), jnp.float32)
    params = (w1, b1, w2, b2, wrgb, brgb)

    forward = make_latent_projection(params)   # parameter restructuring happens once here
    out = jax.block_until_ready(forward(x))
    assert out.shape == (N, 3, 4, 4), out.shape

    ref = jax.block_until_ready(reference_forward(x, params))
    np.testing.assert_allclose(np.asarray(out), np.asarray(ref), rtol=2e-2, atol=2e-2)

    print("KERNEL_OK")
</pallas_src>

<mosaic_0001>
module attributes {stable_mosaic.version = 11 : i64} {
  func.func @_latent_projection_kernel(%arg0: i32, %arg1: memref<16x8xf32, #tpu.memory_space<vmem>>, %arg2: memref<8x512xbf16, #tpu.memory_space<vmem>>, %arg3: memref<1x512xf32, #tpu.memory_space<vmem>>, %arg4: memref<288x32xbf16, #tpu.memory_space<vmem>>, %arg5: memref<1x32xf32, #tpu.memory_space<vmem>>, %arg6: memref<16x32x128xbf16, #tpu.memory_space<vmem>>, %arg7: memref<1x128xf32, #tpu.memory_space<vmem>>, %arg8: memref<16x128xf32, #tpu.memory_space<vmem>>, %arg9: memref<416x32xbf16, #tpu.memory_space<vmem>>, %arg10: memref<256x288xbf16, #tpu.memory_space<vmem>>) attributes {dimension_semantics = [#tpu.dimension_semantics<parallel>], iteration_bounds = array<i64: 1>, scalar_prefetch = 0 : i64, scratch_operands = 2 : i64, tpu.core_type = #tpu.core_type<tc>, window_params = [{transform_indices = @transform_0, window_bounds = array<i64: 16, 8>}, {pipeline_mode = #tpu.pipeline_mode<synchronous>, transform_indices = @transform_1, window_bounds = array<i64: 8, 512>}, {pipeline_mode = #tpu.pipeline_mode<synchronous>, transform_indices = @transform_2, window_bounds = array<i64: 1, 512>}, {pipeline_mode = #tpu.pipeline_mode<synchronous>, transform_indices = @transform_3, window_bounds = array<i64: 288, 32>}, {pipeline_mode = #tpu.pipeline_mode<synchronous>, transform_indices = @transform_4, window_bounds = array<i64: 1, 32>}, {pipeline_mode = #tpu.pipeline_mode<synchronous>, transform_indices = @transform_5, window_bounds = array<i64: 16, 32, 128>}, {pipeline_mode = #tpu.pipeline_mode<synchronous>, transform_indices = @transform_6, window_bounds = array<i64: 1, 128>}, {transform_indices = @transform_7, window_bounds = array<i64: 16, 128>}]} {
    %c0 = arith.constant 0 : index
    %c0_0 = arith.constant 0 : index
    %0 = vector.load %arg1[%c0, %c0_0] : memref<16x8xf32, #tpu.memory_space<vmem>>, vector<16x8xf32>
    %1 = arith.truncf %0 : vector<16x8xf32> to vector<16x8xbf16>
    %c0_1 = arith.constant 0 : index
    %c0_2 = arith.constant 0 : index
    %2 = vector.load %arg2[%c0_1, %c0_2] : memref<8x512xbf16, #tpu.memory_space<vmem>>, vector<8x512xbf16>
    %cst = arith.constant dense<0.000000e+00> : vector<16x512xf32>
    %3 = tpu.matmul %1, %2, %cst {dimension_numbers = #tpu.dot_dimension_numbers<[1], [0], [0], [1], [0, 0, 1, 1], [], []>} : vector<16x8xbf16>, vector<8x512xbf16>, vector<16x512xf32> -> vector<16x512xf32>
    %c0_3 = arith.constant 0 : index
    %c0_4 = arith.constant 0 : index
    %4 = vector.load %arg3[%c0_3, %c0_4] : memref<1x512xf32, #tpu.memory_space<vmem>>, vector<1x512xf32>
    %5 = vector.broadcast %4 : vector<1x512xf32> to vector<16x512xf32>
    %6 = arith.addf %3, %5 : vector<16x512xf32>
    %cst_5 = arith.constant 0.000000e+00 : f32
    %7 = vector.broadcast %cst_5 : f32 to vector<16x512xf32>
    %8 = arith.cmpf ogt, %6, %7 : vector<16x512xf32>
    %cst_6 = arith.constant 2.000000e-01 : f32
    %9 = vector.broadcast %cst_6 : f32 to vector<16x512xf32>
    %10 = arith.mulf %9, %6 : vector<16x512xf32>
    %11 = arith.select %8, %6, %10 : vector<16x512xi1>, vector<16x512xf32>
    %12 = arith.truncf %11 : vector<16x512xf32> to vector<16x512xbf16>
    %13 = vector.extract_strided_slice %12 {offsets = [0, 0], sizes = [16, 32], strides = [1, 1]} : vector<16x512xbf16> to vector<16x32xbf16>
    %c80 = arith.constant 80 : index
    %c0_7 = arith.constant 0 : index
    %14 = vector.load %arg9[%c80, %c0_7] : memref<416x32xbf16, #tpu.memory_space<vmem>>, vector<16x32xbf16>
    tpu.vector_store %arg9[%c80, %c0_7], %13 {strides = array<i32>} : memref<416x32xbf16, #tpu.memory_space<vmem>>, vector<16x32xbf16>,
    %15 = vector.extract_strided_slice %12 {offsets = [0, 32], sizes = [16, 32], strides = [1, 1]} : vector<16x512xbf16> to vector<16x32xbf16>
    %c96 = arith.constant 96 : index
    %c0_8 = arith.constant 0 : index
    %16 = vector.load %arg9[%c96, %c0_8] : memref<416x32xbf16, #tpu.memory_space<vmem>>, vector<16x32xbf16>
    tpu.vector_store %arg9[%c96, %c0_8], %15 {strides = array<i32>} : memref<416x32xbf16, #tpu.memory_space<vmem>>, vector<16x32xbf16>,
    %17 = vector.extract_strided_slice %12 {offsets = [0, 64], sizes = [16, 32], strides = [1, 1]} : vector<16x512xbf16> to vector<16x32xbf16>
    %c112 = arith.constant 112 : index
    %c0_9 = arith.constant 0 : index
    %18 = vector.load %arg9[%c112, %c0_9] : memref<416x32xbf16, #tpu.memory_space<vmem>>, vector<16x32xbf16>
    tpu.vector_store %arg9[%c112, %c0_9], %17 {strides = array<i32>} : memref<416x32xbf16, #tpu.memory_space<vmem>>, vector<16x32xbf16>,
    %19 = vector.extract_strided_slice %12 {offsets = [0, 96], sizes = [16, 32], strides = [1, 1]} : vector<16x512xbf16> to vector<16x32xbf16>
    %c128 = arith.constant 128 : index
    %c0_10 = arith.constant 0 : index
    %20 = vector.load %arg9[%c128, %c0_10] : memref<416x32xbf16, #tpu.memory_space<vmem>>, vector<16x32xbf16>
    tpu.vector_store %arg9[%c128, %c0_10], %19 {strides = array<i32>} : memref<416x32xbf16, #tpu.memory_space<vmem>>, vector<16x32xbf16>,
    %21 = vector.extract_strided_slice %12 {offsets = [0, 128], sizes = [16, 32], strides = [1, 1]} : vector<16x512xbf16> to vector<16x32xbf16>
    %c144 = arith.constant 144 : index
    %c0_11 = arith.constant 0 : index
    %22 = vector.load %arg9[%c144, %c0_11] : memref<416x32xbf16, #tpu.memory_space<vmem>>, vector<16x32xbf16>
    tpu.vector_store %arg9[%c144, %c0_11], %21 {strides = array<i32>} : memref<416x32xbf16, #tpu.memory_space<vmem>>, vector<16x32xbf16>,
    %23 = vector.extract_strided_slice %12 {offsets = [0, 160], sizes = [16, 32], strides = [1, 1]} : vector<16x512xbf16> to vector<16x32xbf16>
    %c160 = arith.constant 160 : index
    %c0_12 = arith.constant 0 : index
    %24 = vector.load %arg9[%c160, %c0_12] : memref<416x32xbf16, #tpu.memory_space<vmem>>, vector<16x32xbf16>
    tpu.vector_store %arg9[%c160, %c0_12], %23 {strides = array<i32>} : memref<416x32xbf16, #tpu.memory_space<vmem>>, vector<16x32xbf16>,
    %25 = vector.extract_strided_slice %12 {offsets = [0, 192], sizes = [16, 32], strides = [1, 1]} : vector<16x512xbf16> to vector<16x32xbf16>
    %c176 = arith.constant 176 : index
    %c0_13 = arith.constant 0 : index
    %26 = vector.load %arg9[%c176, %c0_13] : memref<416x32xbf16, #tpu.memory_space<vmem>>, vector<16x32xbf16>
    tpu.vector_store %arg9[%c176, %c0_13], %25 {strides = array<i32>} : memref<416x32xbf16, #tpu.memory_space<vmem>>, vector<16x32xbf16>,
    %27 = vector.extract_strided_slice %12 {offsets = [0, 224], sizes = [16, 32], strides = [1, 1]} : vector<16x512xbf16> to vector<16x32xbf16>
    %c192 = arith.constant 192 : index
    %c0_14 = arith.constant 0 : index
    %28 = vector.load %arg9[%c192, %c0_14] : memref<416x32xbf16, #tpu.memory_space<vmem>>, vector<16x32xbf16>
    tpu.vector_store %arg9[%c192, %c0_14], %27 {strides = array<i32>} : memref<416x32xbf16, #tpu.memory_space<vmem>>, vector<16x32xbf16>,
    %29 = vector.extract_strided_slice %12 {offsets = [0, 256], sizes = [16, 32], strides = [1, 1]} : vector<16x512xbf16> to vector<16x32xbf16>
    %c208 = arith.constant 208 : index
    %c0_15 = arith.constant 0 : index
    %30 = vector.load %arg9[%c208, %c0_15] : memref<416x32xbf16, #tpu.memory_space<vmem>>, vector<16x32xbf16>
    tpu.vector_store %arg9[%c208, %c0_15], %29 {strides = array<i32>} : memref<416x32xbf16, #tpu.memory_space<vmem>>, vector<16x32xbf16>,
    %31 = vector.extract_strided_slice %12 {offsets = [0, 288], sizes = [16, 32], strides = [1, 1]} : vector<16x512xbf16> to vector<16x32xbf16>
    %c224 = arith.constant 224 : index
    %c0_16 = arith.constant 0 : index
    %32 = vector.load %arg9[%c224, %c0_16] : memref<416x32xbf16, #tpu.memory_space<vmem>>, vector<16x32xbf16>
    tpu.vector_store %arg9[%c224, %c0_16], %31 {strides = array<i32>} : memref<416x32xbf16, #tpu.memory_space<vmem>>, vector<16x32xbf16>,
    %33 = vector.extract_strided_slice %12 {offsets = [0, 320], sizes = [16, 32], strides = [1, 1]} : vector<16x512xbf16> to vector<16x32xbf16>
    %c240 = arith.constant 240 : index
    %c0_17 = arith.constant 0 : index
    %34 = vector.load %arg9[%c240, %c0_17] : memref<416x32xbf16, #tpu.memory_space<vmem>>, vector<16x32xbf16>
    tpu.vector_store %arg9[%c240, %c0_17], %33 {strides = array<i32>} : memref<416x32xbf16, #tpu.memory_space<vmem>>, vector<16x32xbf16>,
    %35 = vector.extract_strided_slice %12 {offsets = [0, 352], sizes = [16, 32], strides = [1, 1]} : vector<16x512xbf16> to vector<16x32xbf16>
    %c256 = arith.constant 256 : index
    %c0_18 = arith.constant 0 : index
    %36 = vector.load %arg9[%c256, %c0_18] : memref<416x32xbf16, #tpu.memory_space<vmem>>, vector<16x32xbf16>
    tpu.vector_store %arg9[%c256, %c0_18], %35 {strides = array<i32>} : memref<416x32xbf16, #tpu.memory_space<vmem>>, vector<16x32xbf16>,
    %37 = vector.extract_strided_slice %12 {offsets = [0, 384], sizes = [16, 32], strides = [1, 1]} : vector<16x512xbf16> to vector<16x32xbf16>
    %c272 = arith.constant 272 : index
    %c0_19 = arith.constant 0 : index
    %38 = vector.load %arg9[%c272, %c0_19] : memref<416x32xbf16, #tpu.memory_space<vmem>>, vector<16x32xbf16>
    tpu.vector_store %arg9[%c272, %c0_19], %37 {strides = array<i32>} : memref<416x32xbf16, #tpu.memory_space<vmem>>, vector<16x32xbf16>,
    %39 = vector.extract_strided_slice %12 {offsets = [0, 416], sizes = [16, 32], strides = [1, 1]} : vector<16x512xbf16> to vector<16x32xbf16>
    %c288 = arith.constant 288 : index
    %c0_20 = arith.constant 0 : index
    %40 = vector.load %arg9[%c288, %c0_20] : memref<416x32xbf16, #tpu.memory_space<vmem>>, vector<16x32xbf16>
    tpu.vector_store %arg9[%c288, %c0_20], %39 {strides = array<i32>} : memref<416x32xbf16, #tpu.memory_space<vmem>>, vector<16x32xbf16>,
    %41 = vector.extract_strided_slice %12 {offsets = [0, 448], sizes = [16, 32], strides = [1, 1]} : vector<16x512xbf16> to vector<16x32xbf16>
    %c304 = arith.constant 304 : index
    %c0_21 = arith.constant 0 : index
    %42 = vector.load %arg9[%c304, %c0_21] : memref<416x32xbf16, #tpu.memory_space<vmem>>, vector<16x32xbf16>
    tpu.vector_store %arg9[%c304, %c0_21], %41 {strides = array<i32>} : memref<416x32xbf16, #tpu.memory_space<vmem>>, vector<16x32xbf16>,
    %43 = vector.extract_strided_slice %12 {offsets = [0, 480], sizes = [16, 32], strides = [1, 1]} : vector<16x512xbf16> to vector<16x32xbf16>
    %c320 = arith.constant 320 : index
    %c0_22 = arith.constant 0 : index
    %44 = vector.load %arg9[%c320, %c0_22] : memref<416x32xbf16, #tpu.memory_space<vmem>>, vector<16x32xbf16>
    tpu.vector_store %arg9[%c320, %c0_22], %43 {strides = array<i32>} : memref<416x32xbf16, #tpu.memory_space<vmem>>, vector<16x32xbf16>,
    %45 = tpu.iota {dimensions = array<i32: 0>} : vector<256x1xi32>
    %c6_i32 = arith.constant 6 : i32
    %46 = vector.broadcast %c6_i32 : i32 to vector<256x1xi32>
    %47 = arith.shrsi %45, %46 : vector<256x1xi32>
    %c4_i32 = arith.constant 4 : i32
    %48 = vector.broadcast %c4_i32 : i32 to vector<256x1xi32>
    %49 = arith.shrsi %45, %48 : vector<256x1xi32>
    %c3_i32 = arith.constant 3 : i32
    %50 = vector.broadcast %c3_i32 : i32 to vector<256x1xi32>
    %51 = arith.andi %49, %50 : vector<256x1xi32>
    %c0_23 = arith.constant 0 : index
    %c0_24 = arith.constant 0 : index
    %52 = vector.load %arg9[%c0_23, %c0_24] : memref<416x32xbf16, #tpu.memory_space<vmem>>, vector<256x32xbf16>
    %c1_i32 = arith.constant 1 : i32
    %53 = vector.broadcast %c1_i32 : i32 to vector<256x1xi32>
    %54 = arith.cmpi sge, %47, %53 : vector<256x1xi32>
    %c1_i32_25 = arith.constant 1 : i32
    %55 = vector.broadcast %c1_i32_25 : i32 to vector<256x1xi32>
    %56 = arith.cmpi sge, %51, %55 : vector<256x1xi32>
    %57 = arith.andi %54, %56 : vector<256x1xi1>
    %cst_26 = arith.constant 0.000000e+00 : bf16
    %58 = vector.broadcast %cst_26 : bf16 to vector<256x32xbf16>
    %59 = vector.shape_cast %57 : vector<256x1xi1> to vector<256x1xi1>
    %60 = vector.broadcast %59 : vector<256x1xi1> to vector<256x32xi1>
    %61 = arith.select %60, %52, %58 : vector<256x32xi1>, vector<256x32xbf16>
    %c0_27 = arith.constant 0 : index
    %c0_28 = arith.constant 0 : index
    %62 = vector.load %arg10[%c0_27, %c0_28] : memref<256x288xbf16, #tpu.memory_space<vmem>>, vector<256x32xbf16>
    tpu.vector_store %arg10[%c0_27, %c0_28], %61 {strides = array<i32>} : memref<256x288xbf16, #tpu.memory_space<vmem>>, vector<256x32xbf16>,
    %c16 = arith.constant 16 : index
    %c0_29 = arith.constant 0 : index
    %63 = vector.load %arg9[%c16, %c0_29] : memref<416x32xbf16, #tpu.memory_space<vmem>>, vector<256x32xbf16>
    %c1_i32_30 = arith.constant 1 : i32
    %64 = vector.broadcast %c1_i32_30 : i32 to vector<256x1xi32>
    %65 = arith.cmpi sge, %47, %64 : vector<256x1xi32>
    %cst_31 = arith.constant 0.000000e+00 : bf16
    %66 = vector.broadcast %cst_31 : bf16 to vector<256x32xbf16>
    %67 = vector.shape_cast %65 : vector<256x1xi1> to vector<256x1xi1>
    %68 = vector.broadcast %67 : vector<256x1xi1> to vector<256x32xi1>
    %69 = arith.select %68, %63, %66 : vector<256x32xi1>, vector<256x32xbf16>
    %c0_32 = arith.constant 0 : index
    %c32 = arith.constant 32 : index
    %70 = vector.load %arg10[%c0_32, %c32] : memref<256x288xbf16, #tpu.memory_space<vmem>>, vector<256x32xbf16>
    tpu.vector_store %arg10[%c0_32, %c32], %69 {strides = array<i32>} : memref<256x288xbf16, #tpu.memory_space<vmem>>, vector<256x32xbf16>,
    %c32_33 = arith.constant 32 : index
    %c0_34 = arith.constant 0 : index
    %71 = vector.load %arg9[%c32_33, %c0_34] : memref<416x32xbf16, #tpu.memory_space<vmem>>, vector<256x32xbf16>
    %c1_i32_35 = arith.constant 1 : i32
    %72 = vector.broadcast %c1_i32_35 : i32 to vector<256x1xi32>
    %73 = arith.cmpi sge, %47, %72 : vector<256x1xi32>
    %c3_i32_36 = arith.constant 3 : i32
    %74 = vector.broadcast %c3_i32_36 : i32 to vector<256x1xi32>
    %75 = arith.cmpi slt, %51, %74 : vector<256x1xi32>
    %76 = arith.andi %73, %75 : vector<256x1xi1>
    %cst_37 = arith.constant 0.000000e+00 : bf16
    %77 = vector.broadcast %cst_37 : bf16 to vector<256x32xbf16>
    %78 = vector.shape_cast %76 : vector<256x1xi1> to vector<256x1xi1>
    %79 = vector.broadcast %78 : vector<256x1xi1> to vector<256x32xi1>
    %80 = arith.select %79, %71, %77 : vector<256x32xi1>, vector<256x32xbf16>
    %c0_38 = arith.constant 0 : index
    %c64 = arith.constant 64 : index
    %81 = vector.load %arg10[%c0_38, %c64] : memref<256x288xbf16, #tpu.memory_space<vmem>>, vector<256x32xbf16>
    tpu.vector_store %arg10[%c0_38, %c64], %80 {strides = array<i32>} : memref<256x288xbf16, #tpu.memory_space<vmem>>, vector<256x32xbf16>,
    %c64_39 = arith.constant 64 : index
    %c0_40 = arith.constant 0 : index
    %82 = vector.load %arg9[%c64_39, %c0_40] : memref<416x32xbf16, #tpu.memory_space<vmem>>, vector<256x32xbf16>
    %c1_i32_41 = arith.constant 1 : i32
    %83 = vector.broadcast %c1_i32_41 : i32 to vector<256x1xi32>
    %84 = arith.cmpi sge, %51, %83 : vector<256x1xi32>
    %cst_42 = arith.constant 0.000000e+00 : bf16
    %85 = vector.broadcast %cst_42 : bf16 to vector<256x32xbf16>
    %86 = vector.shape_cast %84 : vector<256x1xi1> to vector<256x1xi1>
    %87 = vector.broadcast %86 : vector<256x1xi1> to vector<256x32xi1>
    %88 = arith.select %87, %82, %85 : vector<256x32xi1>, vector<256x32xbf16>
    %c0_43 = arith.constant 0 : index
    %c96_44 = arith.constant 96 : index
    %89 = vector.load %arg10[%c0_43, %c96_44] : memref<256x288xbf16, #tpu.memory_space<vmem>>, vector<256x32xbf16>
    tpu.vector_store %arg10[%c0_43, %c96_44], %88 {strides = array<i32>} : memref<256x288xbf16, #tpu.memory_space<vmem>>, vector<256x32xbf16>,
    %c80_45 = arith.constant 80 : index
    %c0_46 = arith.constant 0 : index
    %90 = vector.load %arg9[%c80_45, %c0_46] : memref<416x32xbf16, #tpu.memory_space<vmem>>, vector<256x32xbf16>
    %c0_47 = arith.constant 0 : index
    %c128_48 = arith.constant 128 : index
    %91 = vector.load %arg10[%c0_47, %c128_48] : memref<256x288xbf16, #tpu.memory_space<vmem>>, vector<256x32xbf16>
    tpu.vector_store %arg10[%c0_47, %c128_48], %90 {strides = array<i32>} : memref<256x288xbf16, #tpu.memory_space<vmem>>, vector<256x32xbf16>,
    %c96_49 = arith.constant 96 : index
    %c0_50 = arith.constant 0 : index
    %92 = vector.load %arg9[%c96_49, %c0_50] : memref<416x32xbf16, #tpu.memory_space<vmem>>, vector<256x32xbf16>
    %c3_i32_51 = arith.constant 3 : i32
    %93 = vector.broadcast %c3_i32_51 : i32 to vector<256x1xi32>
    %94 = arith.cmpi slt, %51, %93 : vector<256x1xi32>
    %cst_52 = arith.constant 0.000000e+00 : bf16
    %95 = vector.broadcast %cst_52 : bf16 to vector<256x32xbf16>
    %96 = vector.shape_cast %94 : vector<256x1xi1> to vector<256x1xi1>
    %97 = vector.broadcast %96 : vector<256x1xi1> to vector<256x32xi1>
    %98 = arith.select %97, %92, %95 : vector<256x32xi1>, vector<256x32xbf16>
    %c0_53 = arith.constant 0 : index
    %c160_54 = arith.constant 160 : index
    %99 = vector.load %arg10[%c0_53, %c160_54] : memref<256x288xbf16, #tpu.memory_space<vmem>>, vector<256x32xbf16>
    tpu.vector_store %arg10[%c0_53, %c160_54], %98 {strides = array<i32>} : memref<256x288xbf16, #tpu.memory_space<vmem>>, vector<256x32xbf16>,
    %c128_55 = arith.constant 128 : index
    %c0_56 = arith.constant 0 : index
    %100 = vector.load %arg9[%c128_55, %c0_56] : memref<416x32xbf16, #tpu.memory_space<vmem>>, vector<256x32xbf16>
    %c3_i32_57 = arith.constant 3 : i32
    %101 = vector.broadcast %c3_i32_57 : i32 to vector<256x1xi32>
    %102 = arith.cmpi slt, %47, %101 : vector<256x1xi32>
    %c1_i32_58 = arith.constant 1 : i32
    %103 = vector.broadcast %c1_i32_58 : i32 to vector<256x1xi32>
    %104 = arith.cmpi sge, %51, %103 : vector<256x1xi32>
    %105 = arith.andi %102, %104 : vector<256x1xi1>
    %cst_59 = arith.constant 0.000000e+00 : bf16
    %106 = vector.broadcast %cst_59 : bf16 to vector<256x32xbf16>
    %107 = vector.shape_cast %105 : vector<256x1xi1> to vector<256x1xi1>
    %108 = vector.broadcast %107 : vector<256x1xi1> to vector<256x32xi1>
    %109 = arith.select %108, %100, %106 : vector<256x32xi1>, vector<256x32xbf16>
    %c0_60 = arith.constant 0 : index
    %c192_61 = arith.constant 192 : index
    %110 = vector.load %arg10[%c0_60, %c192_61] : memref<256x288xbf16, #tpu.memory_space<vmem>>, vector<256x32xbf16>
    tpu.vector_store %arg10[%c0_60, %c192_61], %109 {strides = array<i32>} : memref<256x288xbf16, #tpu.memory_space<vmem>>, vector<256x32xbf16>,
    %c144_62 = arith.constant 144 : index
    %c0_63 = arith.constant 0 : index
    %111 = vector.load %arg9[%c144_62, %c0_63] : memref<416x32xbf16, #tpu.memory_space<vmem>>, vector<256x32xbf16>
    %c3_i32_64 = arith.constant 3 : i32
    %112 = vector.broadcast %c3_i32_64 : i32 to vector<256x1xi32>
    %113 = arith.cmpi slt, %47, %112 : vector<256x1xi32>
    %cst_65 = arith.constant 0.000000e+00 : bf16
    %114 = vector.broadcast %cst_65 : bf16 to vector<256x32xbf16>
    %115 = vector.shape_cast %113 : vector<256x1xi1> to vector<256x1xi1>
    %116 = vector.broadcast %115 : vector<256x1xi1> to vector<256x32xi1>
    %117 = arith.select %116, %111, %114 : vector<256x32xi1>, vector<256x32xbf16>
    %c0_66 = arith.constant 0 : index
    %c224_67 = arith.constant 224 : index
    %118 = vector.load %arg10[%c0_66, %c224_67] : memref<256x288xbf16, #tpu.memory_space<vmem>>, vector<256x32xbf16>
    tpu.vector_store %arg10[%c0_66, %c224_67], %117 {strides = array<i32>} : memref<256x288xbf16, #tpu.memory_space<vmem>>, vector<256x32xbf16>,
    %c160_68 = arith.constant 160 : index
    %c0_69 = arith.constant 0 : index
    %119 = vector.load %arg9[%c160_68, %c0_69] : memref<416x32xbf16, #tpu.memory_space<vmem>>, vector<256x32xbf16>
    %c3_i32_70 = arith.constant 3 : i32
    %120 = vector.broadcast %c3_i32_70 : i32 to vector<256x1xi32>
    %121 = arith.cmpi slt, %47, %120 : vector<256x1xi32>
    %c3_i32_71 = arith.constant 3 : i32
    %122 = vector.broadcast %c3_i32_71 : i32 to vector<256x1xi32>
    %123 = arith.cmpi slt, %51, %122 : vector<256x1xi32>
    %124 = arith.andi %121, %123 : vector<256x1xi1>
    %cst_72 = arith.constant 0.000000e+00 : bf16
    %125 = vector.broadcast %cst_72 : bf16 to vector<256x32xbf16>
    %126 = vector.shape_cast %124 : vector<256x1xi1> to vector<256x1xi1>
    %127 = vector.broadcast %126 : vector<256x1xi1> to vector<256x32xi1>
    %128 = arith.select %127, %119, %125 : vector<256x32xi1>, vector<256x32xbf16>
    %c0_73 = arith.constant 0 : index
    %c256_74 = arith.constant 256 : index
    %129 = vector.load %arg10[%c0_73, %c256_74] : memref<256x288xbf16, #tpu.memory_space<vmem>>, vector<256x32xbf16>
    tpu.vector_store %arg10[%c0_73, %c256_74], %128 {strides = array<i32>} : memref<256x288xbf16, #tpu.memory_space<vmem>>, vector<256x32xbf16>,
    %c0_75 = arith.constant 0 : index
    %c0_76 = arith.constant 0 : index
    %130 = vector.load %arg10[%c0_75, %c0_76] : memref<256x288xbf16, #tpu.memory_space<vmem>>, vector<256x288xbf16>
    %c0_77 = arith.constant 0 : index
    %c0_78 = arith.constant 0 : index
    %131 = vector.load %arg4[%c0_77, %c0_78] : memref<288x32xbf16, #tpu.memory_space<vmem>>, vector<288x32xbf16>
    %cst_79 = arith.constant dense<0.000000e+00> : vector<256x32xf32>
    %132 = tpu.matmul %130, %131, %cst_79 {dimension_numbers = #tpu.dot_dimension_numbers<[1], [0], [0], [1], [0, 0, 1, 1], [], []>} : vector<256x288xbf16>, vector<288x32xbf16>, vector<256x32xf32> -> vector<256x32xf32>
    %c0_80 = arith.constant 0 : index
    %c0_81 = arith.constant 0 : index
    %133 = vector.load %arg5[%c0_80, %c0_81] : memref<1x32xf32, #tpu.memory_space<vmem>>, vector<1x32xf32>
    %134 = vector.broadcast %133 : vector<1x32xf32> to vector<256x32xf32>
    %135 = arith.addf %132, %134 : vector<256x32xf32>
    %136 = arith.mulf %135, %135 : vector<256x32xf32>
    %cst_82 = arith.constant dense<0.000000e+00> : vector<256xf32>
    %137 = vector.multi_reduction <add>, %136, %cst_82 [1] : vector<256x32xf32> to vector<256xf32>
    %138 = vector.shape_cast %137 : vector<256xf32> to vector<256x1xf32>
    %cst_83 = arith.constant 1.000000e-16 : f32
    %139 = vector.broadcast %cst_83 : f32 to vector<256x1xf32>
    %140 = arith.addf %138, %139 : vector<256x1xf32>
    %141 = math.rsqrt %140 : vector<256x1xf32>
    %142 = vector.broadcast %141 : vector<256x1xf32> to vector<256x32xf32>
    %143 = arith.mulf %135, %142 : vector<256x32xf32>
    %cst_84 = arith.constant 0.000000e+00 : f32
    %144 = vector.broadcast %cst_84 : f32 to vector<256x32xf32>
    %145 = arith.cmpf ogt, %143, %144 : vector<256x32xf32>
    %cst_85 = arith.constant 2.000000e-01 : f32
    %146 = vector.broadcast %cst_85 : f32 to vector<256x32xf32>
    %147 = arith.mulf %146, %143 : vector<256x32xf32>
    %148 = arith.select %145, %143, %147 : vector<256x32xi1>, vector<256x32xf32>
    %149 = arith.truncf %148 : vector<256x32xf32> to vector<256x32xbf16>
    %cst_86 = arith.constant 0.000000e+00 : f32
    %150 = vector.broadcast %cst_86 : f32 to vector<16x128xf32>
    %151 = vector.extract_strided_slice %149 {offsets = [0, 0], sizes = [16, 32], strides = [1, 1]} : vector<256x32xbf16> to vector<16x32xbf16>
    %c0_87 = arith.constant 0 : index
    %c0_88 = arith.constant 0 : index
    %c0_89 = arith.constant 0 : index
    %152 = vector.load %arg6[%c0_87, %c0_88, %c0_89] : memref<16x32x128xbf16, #tpu.memory_space<vmem>>, vector<1x32x128xbf16>
    %153 = vector.shape_cast %152 : vector<1x32x128xbf16> to vector<32x128xbf16>
    %cst_90 = arith.constant dense<0.000000e+00> : vector<16x128xf32>
    %154 = tpu.matmul %151, %153, %cst_90 {dimension_numbers = #tpu.dot_dimension_numbers<[1], [0], [0], [1], [0, 0, 1, 1], [], []>} : vector<16x32xbf16>, vector<32x128xbf16>, vector<16x128xf32> -> vector<16x128xf32>
    %155 = arith.addf %150, %154 : vector<16x128xf32>
    %156 = vector.extract_strided_slice %149 {offsets = [16, 0], sizes = [16, 32], strides = [1, 1]} : vector<256x32xbf16> to vector<16x32xbf16>
    %c1 = arith.constant 1 : index
    %c0_91 = arith.constant 0 : index
    %c0_92 = arith.constant 0 : index
    %157 = vector.load %arg6[%c1, %c0_91, %c0_92] : memref<16x32x128xbf16, #tpu.memory_space<vmem>>, vector<1x32x128xbf16>
    %158 = vector.shape_cast %157 : vector<1x32x128xbf16> to vector<32x128xbf16>
    %cst_93 = arith.constant dense<0.000000e+00> : vector<16x128xf32>
    %159 = tpu.matmul %156, %158, %cst_93 {dimension_numbers = #tpu.dot_dimension_numbers<[1], [0], [0], [1], [0, 0, 1, 1], [], []>} : vector<16x32xbf16>, vector<32x128xbf16>, vector<16x128xf32> -> vector<16x128xf32>
    %160 = arith.addf %155, %159 : vector<16x128xf32>
    %161 = vector.extract_strided_slice %149 {offsets = [32, 0], sizes = [16, 32], strides = [1, 1]} : vector<256x32xbf16> to vector<16x32xbf16>
    %c2 = arith.constant 2 : index
    %c0_94 = arith.constant 0 : index
    %c0_95 = arith.constant 0 : index
    %162 = vector.load %arg6[%c2, %c0_94, %c0_95] : memref<16x32x128xbf16, #tpu.memory_space<vmem>>, vector<1x32x128xbf16>
    %163 = vector.shape_cast %162 : vector<1x32x128xbf16> to vector<32x128xbf16>
    %cst_96 = arith.constant dense<0.000000e+00> : vector<16x128xf32>
    %164 = tpu.matmul %161, %163, %cst_96 {dimension_numbers = #tpu.dot_dimension_numbers<[1], [0], [0], [1], [0, 0, 1, 1], [], []>} : vector<16x32xbf16>, vector<32x128xbf16>, vector<16x128xf32> -> vector<16x128xf32>
    %165 = arith.addf %160, %164 : vector<16x128xf32>
    %166 = vector.extract_strided_slice %149 {offsets = [48, 0], sizes = [16, 32], strides = [1, 1]} : vector<256x32xbf16> to vector<16x32xbf16>
    %c3 = arith.constant 3 : index
    %c0_97 = arith.constant 0 : index
    %c0_98 = arith.constant 0 : index
    %167 = vector.load %arg6[%c3, %c0_97, %c0_98] : memref<16x32x128xbf16, #tpu.memory_space<vmem>>, vector<1x32x128xbf16>
    %168 = vector.shape_cast %167 : vector<1x32x128xbf16> to vector<32x128xbf16>
    %cst_99 = arith.constant dense<0.000000e+00> : vector<16x128xf32>
    %169 = tpu.matmul %166, %168, %cst_99 {dimension_numbers = #tpu.dot_dimension_numbers<[1], [0], [0], [1], [0, 0, 1, 1], [], []>} : vector<16x32xbf16>, vector<32x128xbf16>, vector<16x128xf32> -> vector<16x128xf32>
    %170 = arith.addf %165, %169 : vector<16x128xf32>
    %171 = vector.extract_strided_slice %149 {offsets = [64, 0], sizes = [16, 32], strides = [1, 1]} : vector<256x32xbf16> to vector<16x32xbf16>
    %c4 = arith.constant 4 : index
    %c0_100 = arith.constant 0 : index
    %c0_101 = arith.constant 0 : index
    %172 = vector.load %arg6[%c4, %c0_100, %c0_101] : memref<16x32x128xbf16, #tpu.memory_space<vmem>>, vector<1x32x128xbf16>
    %173 = vector.shape_cast %172 : vector<1x32x128xbf16> to vector<32x128xbf16>
    %cst_102 = arith.constant dense<0.000000e+00> : vector<16x128xf32>
    %174 = tpu.matmul %171, %173, %cst_102 {dimension_numbers = #tpu.dot_dimension_numbers<[1], [0], [0], [1], [0, 0, 1, 1], [], []>} : vector<16x32xbf16>, vector<32x128xbf16>, vector<16x128xf32> -> vector<16x128xf32>
    %175 = arith.addf %170, %174 : vector<16x128xf32>
    %176 = vector.extract_strided_slice %149 {offsets = [80, 0], sizes = [16, 32], strides = [1, 1]} : vector<256x32xbf16> to vector<16x32xbf16>
    %c5 = arith.constant 5 : index
    %c0_103 = arith.constant 0 : index
    %c0_104 = arith.constant 0 : index
    %177 = vector.load %arg6[%c5, %c0_103, %c0_104] : memref<16x32x128xbf16, #tpu.memory_space<vmem>>, vector<1x32x128xbf16>
    %178 = vector.shape_cast %177 : vector<1x32x128xbf16> to vector<32x128xbf16>
    %cst_105 = arith.constant dense<0.000000e+00> : vector<16x128xf32>
    %179 = tpu.matmul %176, %178, %cst_105 {dimension_numbers = #tpu.dot_dimension_numbers<[1], [0], [0], [1], [0, 0, 1, 1], [], []>} : vector<16x32xbf16>, vector<32x128xbf16>, vector<16x128xf32> -> vector<16x128xf32>
    %180 = arith.addf %175, %179 : vector<16x128xf32>
    %181 = vector.extract_strided_slice %149 {offsets = [96, 0], sizes = [16, 32], strides = [1, 1]} : vector<256x32xbf16> to vector<16x32xbf16>
    %c6 = arith.constant 6 : index
    %c0_106 = arith.constant 0 : index
    %c0_107 = arith.constant 0 : index
    %182 = vector.load %arg6[%c6, %c0_106, %c0_107] : memref<16x32x128xbf16, #tpu.memory_space<vmem>>, vector<1x32x128xbf16>
    %183 = vector.shape_cast %182 : vector<1x32x128xbf16> to vector<32x128xbf16>
    %cst_108 = arith.constant dense<0.000000e+00> : vector<16x128xf32>
    %184 = tpu.matmul %181, %183, %cst_108 {dimension_numbers = #tpu.dot_dimension_numbers<[1], [0], [0], [1], [0, 0, 1, 1], [], []>} : vector<16x32xbf16>, vector<32x128xbf16>, vector<16x128xf32> -> vector<16x128xf32>
    %185 = arith.addf %180, %184 : vector<16x128xf32>
    %186 = vector.extract_strided_slice %149 {offsets = [112, 0], sizes = [16, 32], strides = [1, 1]} : vector<256x32xbf16> to vector<16x32xbf16>
    %c7 = arith.constant 7 : index
    %c0_109 = arith.constant 0 : index
    %c0_110 = arith.constant 0 : index
    %187 = vector.load %arg6[%c7, %c0_109, %c0_110] : memref<16x32x128xbf16, #tpu.memory_space<vmem>>, vector<1x32x128xbf16>
    %188 = vector.shape_cast %187 : vector<1x32x128xbf16> to vector<32x128xbf16>
    %cst_111 = arith.constant dense<0.000000e+00> : vector<16x128xf32>
    %189 = tpu.matmul %186, %188, %cst_111 {dimension_numbers = #tpu.dot_dimension_numbers<[1], [0], [0], [1], [0, 0, 1, 1], [], []>} : vector<16x32xbf16>, vector<32x128xbf16>, vector<16x128xf32> -> vector<16x128xf32>
    %190 = arith.addf %185, %189 : vector<16x128xf32>
    %191 = vector.extract_strided_slice %149 {offsets = [128, 0], sizes = [16, 32], strides = [1, 1]} : vector<256x32xbf16> to vector<16x32xbf16>
    %c8 = arith.constant 8 : index
    %c0_112 = arith.constant 0 : index
    %c0_113 = arith.constant 0 : index
    %192 = vector.load %arg6[%c8, %c0_112, %c0_113] : memref<16x32x128xbf16, #tpu.memory_space<vmem>>, vector<1x32x128xbf16>
    %193 = vector.shape_cast %192 : vector<1x32x128xbf16> to vector<32x128xbf16>
    %cst_114 = arith.constant dense<0.000000e+00> : vector<16x128xf32>
    %194 = tpu.matmul %191, %193, %cst_114 {dimension_numbers = #tpu.dot_dimension_numbers<[1], [0], [0], [1], [0, 0, 1, 1], [], []>} : vector<16x32xbf16>, vector<32x128xbf16>, vector<16x128xf32> -> vector<16x128xf32>
    %195 = arith.addf %190, %194 : vector<16x128xf32>
    %196 = vector.extract_strided_slice %149 {offsets = [144, 0], sizes = [16, 32], strides = [1, 1]} : vector<256x32xbf16> to vector<16x32xbf16>
    %c9 = arith.constant 9 : index
    %c0_115 = arith.constant 0 : index
    %c0_116 = arith.constant 0 : index
    %197 = vector.load %arg6[%c9, %c0_115, %c0_116] : memref<16x32x128xbf16, #tpu.memory_space<vmem>>, vector<1x32x128xbf16>
    %198 = vector.shape_cast %197 : vector<1x32x128xbf16> to vector<32x128xbf16>
    %cst_117 = arith.constant dense<0.000000e+00> : vector<16x128xf32>
    %199 = tpu.matmul %196, %198, %cst_117 {dimension_numbers = #tpu.dot_dimension_numbers<[1], [0], [0], [1], [0, 0, 1, 1], [], []>} : vector<16x32xbf16>, vector<32x128xbf16>, vector<16x128xf32> -> vector<16x128xf32>
    %200 = arith.addf %195, %199 : vector<16x128xf32>
    %201 = vector.extract_strided_slice %149 {offsets = [160, 0], sizes = [16, 32], strides = [1, 1]} : vector<256x32xbf16> to vector<16x32xbf16>
    %c10 = arith.constant 10 : index
    %c0_118 = arith.constant 0 : index
    %c0_119 = arith.constant 0 : index
    %202 = vector.load %arg6[%c10, %c0_118, %c0_119] : memref<16x32x128xbf16, #tpu.memory_space<vmem>>, vector<1x32x128xbf16>
    %203 = vector.shape_cast %202 : vector<1x32x128xbf16> to vector<32x128xbf16>
    %cst_120 = arith.constant dense<0.000000e+00> : vector<16x128xf32>
    %204 = tpu.matmul %201, %203, %cst_120 {dimension_numbers = #tpu.dot_dimension_numbers<[1], [0], [0], [1], [0, 0, 1, 1], [], []>} : vector<16x32xbf16>, vector<32x128xbf16>, vector<16x128xf32> -> vector<16x128xf32>
    %205 = arith.addf %200, %204 : vector<16x128xf32>
    %206 = vector.extract_strided_slice %149 {offsets = [176, 0], sizes = [16, 32], strides = [1, 1]} : vector<256x32xbf16> to vector<16x32xbf16>
    %c11 = arith.constant 11 : index
    %c0_121 = arith.constant 0 : index
    %c0_122 = arith.constant 0 : index
    %207 = vector.load %arg6[%c11, %c0_121, %c0_122] : memref<16x32x128xbf16, #tpu.memory_space<vmem>>, vector<1x32x128xbf16>
    %208 = vector.shape_cast %207 : vector<1x32x128xbf16> to vector<32x128xbf16>
    %cst_123 = arith.constant dense<0.000000e+00> : vector<16x128xf32>
    %209 = tpu.matmul %206, %208, %cst_123 {dimension_numbers = #tpu.dot_dimension_numbers<[1], [0], [0], [1], [0, 0, 1, 1], [], []>} : vector<16x32xbf16>, vector<32x128xbf16>, vector<16x128xf32> -> vector<16x128xf32>
    %210 = arith.addf %205, %209 : vector<16x128xf32>
    %211 = vector.extract_strided_slice %149 {offsets = [192, 0], sizes = [16, 32], strides = [1, 1]} : vector<256x32xbf16> to vector<16x32xbf16>
    %c12 = arith.constant 12 : index
    %c0_124 = arith.constant 0 : index
    %c0_125 = arith.constant 0 : index
    %212 = vector.load %arg6[%c12, %c0_124, %c0_125] : memref<16x32x128xbf16, #tpu.memory_space<vmem>>, vector<1x32x128xbf16>
    %213 = vector.shape_cast %212 : vector<1x32x128xbf16> to vector<32x128xbf16>
    %cst_126 = arith.constant dense<0.000000e+00> : vector<16x128xf32>
    %214 = tpu.matmul %211, %213, %cst_126 {dimension_numbers = #tpu.dot_dimension_numbers<[1], [0], [0], [1], [0, 0, 1, 1], [], []>} : vector<16x32xbf16>, vector<32x128xbf16>, vector<16x128xf32> -> vector<16x128xf32>
    %215 = arith.addf %210, %214 : vector<16x128xf32>
    %216 = vector.extract_strided_slice %149 {offsets = [208, 0], sizes = [16, 32], strides = [1, 1]} : vector<256x32xbf16> to vector<16x32xbf16>
    %c13 = arith.constant 13 : index
    %c0_127 = arith.constant 0 : index
    %c0_128 = arith.constant 0 : index
    %217 = vector.load %arg6[%c13, %c0_127, %c0_128] : memref<16x32x128xbf16, #tpu.memory_space<vmem>>, vector<1x32x128xbf16>
    %218 = vector.shape_cast %217 : vector<1x32x128xbf16> to vector<32x128xbf16>
    %cst_129 = arith.constant dense<0.000000e+00> : vector<16x128xf32>
    %219 = tpu.matmul %216, %218, %cst_129 {dimension_numbers = #tpu.dot_dimension_numbers<[1], [0], [0], [1], [0, 0, 1, 1], [], []>} : vector<16x32xbf16>, vector<32x128xbf16>, vector<16x128xf32> -> vector<16x128xf32>
    %220 = arith.addf %215, %219 : vector<16x128xf32>
    %221 = vector.extract_strided_slice %149 {offsets = [224, 0], sizes = [16, 32], strides = [1, 1]} : vector<256x32xbf16> to vector<16x32xbf16>
    %c14 = arith.constant 14 : index
    %c0_130 = arith.constant 0 : index
    %c0_131 = arith.constant 0 : index
    %222 = vector.load %arg6[%c14, %c0_130, %c0_131] : memref<16x32x128xbf16, #tpu.memory_space<vmem>>, vector<1x32x128xbf16>
    %223 = vector.shape_cast %222 : vector<1x32x128xbf16> to vector<32x128xbf16>
    %cst_132 = arith.constant dense<0.000000e+00> : vector<16x128xf32>
    %224 = tpu.matmul %221, %223, %cst_132 {dimension_numbers = #tpu.dot_dimension_numbers<[1], [0], [0], [1], [0, 0, 1, 1], [], []>} : vector<16x32xbf16>, vector<32x128xbf16>, vector<16x128xf32> -> vector<16x128xf32>
    %225 = arith.addf %220, %224 : vector<16x128xf32>
    %226 = vector.extract_strided_slice %149 {offsets = [240, 0], sizes = [16, 32], strides = [1, 1]} : vector<256x32xbf16> to vector<16x32xbf16>
    %c15 = arith.constant 15 : index
    %c0_133 = arith.constant 0 : index
    %c0_134 = arith.constant 0 : index
    %227 = vector.load %arg6[%c15, %c0_133, %c0_134] : memref<16x32x128xbf16, #tpu.memory_space<vmem>>, vector<1x32x128xbf16>
    %228 = vector.shape_cast %227 : vector<1x32x128xbf16> to vector<32x128xbf16>
    %cst_135 = arith.constant dense<0.000000e+00> : vector<16x128xf32>
    %229 = tpu.matmul %226, %228, %cst_135 {dimension_numbers = #tpu.dot_dimension_numbers<[1], [0], [0], [1], [0, 0, 1, 1], [], []>} : vector<16x32xbf16>, vector<32x128xbf16>, vector<16x128xf32> -> vector<16x128xf32>
    %230 = arith.addf %225, %229 : vector<16x128xf32>
    %c0_136 = arith.constant 0 : index
    %c0_137 = arith.constant 0 : index
    %231 = vector.load %arg7[%c0_136, %c0_137] : memref<1x128xf32, #tpu.memory_space<vmem>>, vector<1x128xf32>
    %232 = vector.broadcast %231 : vector<1x128xf32> to vector<16x128xf32>
    %233 = arith.addf %230, %232 : vector<16x128xf32>
    %c0_138 = arith.constant 0 : index
    %c0_139 = arith.constant 0 : index
    %234 = vector.load %arg8[%c0_138, %c0_139] : memref<16x128xf32, #tpu.memory_space<vmem>>, vector<16x128xf32>
    tpu.vector_store %arg8[%c0_138, %c0_139], %233 {strides = array<i32>} : memref<16x128xf32, #tpu.memory_space<vmem>>, vector<16x128xf32>,
    return
  }
  func.func @transform_0(%arg0: i32) -> (i32, i32) {
    %c0_i32 = arith.constant 0 : i32
    %c0_i32_0 = arith.constant 0 : i32
    return %arg0, %c0_i32 : i32, i32
  }
  func.func @transform_1(%arg0: i32) -> (i32, i32) {
    %c0_i32 = arith.constant 0 : i32
    %c0_i32_0 = arith.constant 0 : i32
    %c0_i32_1 = arith.constant 0 : i32
    return %c0_i32, %c0_i32_0 : i32, i32
  }
  func.func @transform_2(%arg0: i32) -> (i32, i32) {
    %c0_i32 = arith.constant 0 : i32
    %c0_i32_0 = arith.constant 0 : i32
    %c0_i32_1 = arith.constant 0 : i32
    return %c0_i32, %c0_i32_0 : i32, i32
  }
  func.func @transform_3(%arg0: i32) -> (i32, i32) {
    %c0_i32 = arith.constant 0 : i32
    %c0_i32_0 = arith.constant 0 : i32
    %c0_i32_1 = arith.constant 0 : i32
    return %c0_i32, %c0_i32_0 : i32, i32
  }
  func.func @transform_4(%arg0: i32) -> (i32, i32) {
    %c0_i32 = arith.constant 0 : i32
    %c0_i32_0 = arith.constant 0 : i32
    %c0_i32_1 = arith.constant 0 : i32
    return %c0_i32, %c0_i32_0 : i32, i32
  }
  func.func @transform_5(%arg0: i32) -> (i32, i32, i32) {
    %c0_i32 = arith.constant 0 : i32
    %c0_i32_0 = arith.constant 0 : i32
    %c0_i32_1 = arith.constant 0 : i32
    %c0_i32_2 = arith.constant 0 : i32
    return %c0_i32, %c0_i32_0, %c0_i32_1 : i32, i32, i32
  }
  func.func @transform_6(%arg0: i32) -> (i32, i32) {
    %c0_i32 = arith.constant 0 : i32
    %c0_i32_0 = arith.constant 0 : i32
    %c0_i32_1 = arith.constant 0 : i32
    return %c0_i32, %c0_i32_0 : i32, i32
  }
  func.func @transform_7(%arg0: i32) -> (i32, i32) {
    %c0_i32 = arith.constant 0 : i32
    %c0_i32_0 = arith.constant 0 : i32
    return %arg0, %c0_i32 : i32, i32
  }
}

</mosaic_0001>

<llo_original>
// kernel: forward.1
$region0: #{forward.1}
  #allocation0 [shape = 'u32[]', space=smem, size = 0x4, offset = 0x4, fixed_abs, tag = 'smem constant byte address 0x4 - core index']
  #allocation1 [shape = 'u32[144,128]{1,0:T(1,128)}', space=vmem, size = 0x12000, scoped, tag = 'internal scratch']
  #allocation2 [shape = 'bf16[416,32]{1,0:T(16,128)(2,1)}', space=vmem, size = 0x1a000, scoped, tag = 'scratch operand']
  #allocation3 [shape = 'bf16[256,288]{1,0:T(16,128)(2,1)}', space=vmem, size = 0x30000, scoped, tag = 'scratch operand']
  %s0 = inlined_call_operand.vmem [shape: f32[16,8], index: 0, kind: input, shape index: {}]
  %s1 = inlined_call_operand.vmem [shape: bf16[8,512], index: 1, kind: input, shape index: {}]
  %s2 = inlined_call_operand.vmem [shape: f32[1,512], index: 2, kind: input, shape index: {}]
  %s3 = inlined_call_operand.hbm [shape: bf16[288,32], index: 3, kind: input, shape index: {}]
  %s4 = inlined_call_operand.vmem [shape: f32[1,32], index: 4, kind: input, shape index: {}]
  %s5 = inlined_call_operand.hbm [shape: bf16[16,32,128], index: 5, kind: input, shape index: {}]
  %s6 = inlined_call_operand.vmem [shape: f32[1,128], index: 6, kind: input, shape index: {}]
  %s7 = inlined_call_operand.vmem [shape: f32[16,128], index: 7, kind: output, shape index: {}]
  %s8 = sld [smem:[#allocation0]]
  $region46: #{forward.1} parent=0
    _
  %s10 = ssub.s32 1, %s8
  %s11 = scalar_select 0, %s10, %s8
  $region1: #{forward.1} parent=0
    #allocation4 [shape = 'u8[73728]{0}', space=vmem, size = 0x12000, scoped, tag = 'input window, operand 3, single buffered']
    #allocation5 [shape = 's32[1]{0}', space=sflag, size = 0x4, scoped, tag = 'scoped memory for forward.1']
    #allocation6 [shape = 'u8[131072]{0}', space=vmem, size = 0x20000, scoped, tag = 'input window, operand 5, single buffered']
    #allocation7 [shape = 's32[1]{0}', space=sflag, size = 0x4, scoped, tag = 'scoped memory for forward.1']
    %12 = vsyncpa [#allocation5], 0
    %13 = vsyncpa [#allocation7], 0
    // Predicated region
    $region2: #{forward.1} parent=1 // pred_check
      _
    $region3: #{forward.1} parent=1 // pred_check_branch
      %15 = sbr.rel (0) target = $region5
    $region4: #{forward.1} parent=1 // pred_region
      _
    $region5: #{forward.1} parent=1 // pred_fallthru
      _
    // Predicated region
    $region6: #{forward.1} parent=1 // pred_check
      _
    $region7: #{forward.1} parent=1 // pred_check_branch
      %17 = sbr.rel (0) target = $region9
    $region8: #{forward.1} parent=1 // pred_region
      _
    $region9: #{forward.1} parent=1 // pred_fallthru
      _
    // Predicated region
    $region10: #{forward.1} parent=1 // pred_check
      _
    $region11: #{forward.1} parent=1 // pred_check_branch
      %19 = sbr.rel (0) target = $region13
    $region12: #{forward.1} parent=1 // pred_region
      _
    $region13: #{forward.1} parent=1 // pred_fallthru
      _
    // Predicated region
    $region14: #{forward.1} parent=1 // pred_check
      _
    $region15: #{forward.1} parent=1 // pred_check_branch
      %21 = sbr.rel (0) target = $region17
    $region16: #{forward.1} parent=1 // pred_region
      %s23 = ssub.s32 2304, 2304
      %24 = vsyncadd [#allocation5], %s23
      %s25 = sshll.u32 [#allocation4], 4
      %s26 = int_to_ptr.vmem [resolvable:$true] %s25
      %31 = dma.hbm_to_vmem [thread:$0]  %s3, 2304, %s26, [#allocation5], 64, 64, 4
    $region17: #{forward.1} parent=1 // pred_fallthru
      _
    // Predicated region
    $region18: #{forward.1} parent=1 // pred_check
      _
    $region19: #{forward.1} parent=1 // pred_check_branch
      %33 = sbr.rel (0) target = $region21
    $region20: #{forward.1} parent=1 // pred_region
      _
    $region21: #{forward.1} parent=1 // pred_fallthru
      _
    // Predicated region
    $region22: #{forward.1} parent=1 // pred_check
      _
    $region23: #{forward.1} parent=1 // pred_check_branch
      %35 = sbr.rel (0) target = $region25
    $region24: #{forward.1} parent=1 // pred_region
      %s37 = ssub.s32 4096, 4096
      %38 = vsyncadd [#allocation7], %s37
      %s39 = sshll.u32 [#allocation6], 4
      %s40 = int_to_ptr.vmem [resolvable:$true] %s39
      %45 = dma.hbm_to_vmem [thread:$0]  %s5, 4096, %s40, [#allocation7], 64, 64, 4
    $region25: #{forward.1} parent=1 // pred_fallthru
      _
    // Predicated region
    $region26: #{forward.1} parent=1 // pred_check
      _
    $region27: #{forward.1} parent=1 // pred_check_branch
      %47 = sbr.rel (0) target = $region29
    $region28: #{forward.1} parent=1 // pred_region
      _
    $region29: #{forward.1} parent=1 // pred_fallthru
      _
    // Predicated region
    $region30: #{forward.1} parent=1 // pred_check
      _
    $region31: #{forward.1} parent=1 // pred_check_branch
      %49 = sbr.rel (0) target = $region33
    $region32: #{forward.1} parent=1 // pred_region
      %50 = dma.done [#allocation5], 2304
    $region33: #{forward.1} parent=1 // pred_fallthru
      _
    // Predicated region
    $region34: #{forward.1} parent=1 // pred_check
      _
    $region35: #{forward.1} parent=1 // pred_check_branch
      %52 = sbr.rel (0) target = $region37
    $region36: #{forward.1} parent=1 // pred_region
      %53 = dma.done [#allocation7], 4096
    $region37: #{forward.1} parent=1 // pred_fallthru
      _
    %v57 = vld [vmem:[%s0] sm:$0xff]
    %v58 = vld [vmem:[%s0 + $0x8] sm:$0xff]
    %v59 = vpack.c.bf16 %v58, %v57
    %v60 = vld [vmem:[%s1] sm:$0xff]
    %v61 = vld [vmem:[%s1 + $0x8] sm:$0xff]
    %v62 = vld [vmem:[%s2] sm:$0xf]
    %v64 = vlaneseq
    %v65 = vshrl.u32 %v64, 7
    %v66 = vsub.s32 0, %v65
    %v67 = vrot.slane %v62, %v66
    %v68 = vlaneseq
    %v69 = vshrl.u32 %v68, 7
    %v70 = vsub.s32 1, %v69
    %v71 = vrot.slane %v62, %v70
    %v72 = vlaneseq
    %v73 = vshrl.u32 %v72, 7
    %v74 = vsub.s32 2, %v73
    %v75 = vrot.slane %v62, %v74
    %v76 = vlaneseq
    %v77 = vshrl.u32 %v76, 7
    %v78 = vsub.s32 3, %v77
    %v79 = vrot.slane %v62, %v78
    %v86 = vunpack.c.l.b16 %v60
    %v87 = vunpack.c.h.b16 %v60
    %v88 = vunpack.c.l.b16 %v61
    %v89 = vunpack.c.h.b16 %v61
    %v90 = vpack.c.b16 %v86, %v86
    %v91 = vpack.c.b16 %v87, %v87
    %v92 = vpack.c.b16 %v88, %v88
    %v93 = vpack.c.b16 %v89, %v89
    %vm94 = vcmask 64512
    %v96 = vsel %vm94, %v59, 0
    %vm98 = vcmask 1043456
    %v100 = vsel %vm98, %v90, 0
    %v103 = vsel %vm98, %v91, 0
    %v106 = vsel %vm98, %v92, 0
    %v109 = vsel %vm98, %v93, 0
    %111 = vmatprep.subr.bf16.mxu0 %v103
    %112 = vmatpush1.bf16.msra.mxu0 %v100
    %113 = vmatprep.subr.bf16.mxu0 0
    %114 = vmatpush1.bf16.msra.mxu0 0
    %115 = vmatprep.subr.bf16.mxu0 0
    %116 = vmatpush1.bf16.msra.mxu0 0
    %117 = vmatprep.subr.bf16.mxu0 0
    %118 = vmatpush1.bf16.msra.mxu0 0
    %119 = vmatprep.subr.bf16.mxu0 0
    %120 = vmatpush1.bf16.msra.mxu0 0
    %121 = vmatprep.subr.bf16.mxu0 0
    %122 = vmatpush1.bf16.msra.mxu0 0
    %123 = vmatprep.subr.bf16.mxu0 0
    %124 = vmatpush1.bf16.msra.mxu0 0
    %125 = vmatprep.subr.bf16.mxu0 0
    %126 = vmatpush1.bf16.msra.mxu0 0
    %127 = vmatprep.subr.bf16.mxu0 0
    %128 = vmatpush1.bf16.msra.mxu0 0
    %129 = vmatprep.subr.bf16.mxu0 0
    %130 = vmatpush1.bf16.msra.mxu0 0
    %131 = vmatprep.subr.bf16.mxu0 0
    %132 = vmatpush1.bf16.msra.mxu0 0
    %133 = vmatprep.subr.bf16.mxu0 0
    %134 = vmatpush1.bf16.msra.mxu0 0
    %135 = vmatprep.subr.bf16.mxu0 0
    %136 = vmatpush1.bf16.msra.mxu0 0
    %137 = vmatprep.subr.bf16.mxu0 0
    %138 = vmatpush1.bf16.msra.mxu0 0
    %139 = vmatprep.subr.bf16.mxu0 0
    %140 = vmatpush1.bf16.msra.mxu0 0
    %141 = vmatprep.subr.bf16.mxu0 0
    %142 = vmatpush1.bf16.msra.mxu0 0
    %143 = vmatprep.mubr.bf16.mxu0 0
    %144 = vmatmul.mubr.bf16.gmra.mrb[0].mxu0 %v96
    %v145 = vpop.f32.mrb[0].mxu0
    %v146 = vadd.f32 %v67, %v145
    %v147 = vpop.f32.mrb[0].mxu0
    %v148 = vadd.f32 %v71, %v147
    %v149 = vpop.f32.mrb[0].mxu0
    %v150 = vadd.f32 %v67, %v149
    %v151 = vpop.f32.mrb[0].mxu0
    %v152 = vadd.f32 %v71, %v151
    %153 = vdwg.mxu0
    %154 = vmatprep.subr.bf16.mxu0 %v109
    %155 = vmatpush1.bf16.msra.mxu0 %v106
    %156 = vmatprep.subr.bf16.mxu0 0
    %157 = vmatpush1.bf16.msra.mxu0 0
    %158 = vmatprep.subr.bf16.mxu0 0
    %159 = vmatpush1.bf16.msra.mxu0 0
    %160 = vmatprep.subr.bf16.mxu0 0
    %161 = vmatpush1.bf16.msra.mxu0 0
    %162 = vmatprep.subr.bf16.mxu0 0
    %163 = vmatpush1.bf16.msra.mxu0 0
    %164 = vmatprep.subr.bf16.mxu0 0
    %165 = vmatpush1.bf16.msra.mxu0 0
    %166 = vmatprep.subr.bf16.mxu0 0
    %167 = vmatpush1.bf16.msra.mxu0 0
    %168 = vmatprep.subr.bf16.mxu0 0
    %169 = vmatpush1.bf16.msra.mxu0 0
    %170 = vmatprep.subr.bf16.mxu0 0
    %171 = vmatpush1.bf16.msra.mxu0 0
    %172 = vmatprep.subr.bf16.mxu0 0
    %173 = vmatpush1.bf16.msra.mxu0 0
    %174 = vmatprep.subr.bf16.mxu0 0
    %175 = vmatpush1.bf16.msra.mxu0 0
    %176 = vmatprep.subr.bf16.mxu0 0
    %177 = vmatpush1.bf16.msra.mxu0 0
    %178 = vmatprep.subr.bf16.mxu0 0
    %179 = vmatpush1.bf16.msra.mxu0 0
    %180 = vmatprep.subr.bf16.mxu0 0
    %181 = vmatpush1.bf16.msra.mxu0 0
    %182 = vmatprep.subr.bf16.mxu0 0
    %183 = vmatpush1.bf16.msra.mxu0 0
    %184 = vmatprep.subr.bf16.mxu0 0
    %185 = vmatpush1.bf16.msra.mxu0 0
    %186 = vmatprep.mubr.bf16.mxu0 0
    %187 = vmatmul.mubr.bf16.gmra.mrb[0].mxu0 %v96
    %v188 = vpop.f32.mrb[0].mxu0
    %v189 = vadd.f32 %v75, %v188
    %v190 = vpop.f32.mrb[0].mxu0
    %v191 = vadd.f32 %v79, %v190
    %v192 = vpop.f32.mrb[0].mxu0
    %v193 = vadd.f32 %v75, %v192
    %v194 = vpop.f32.mrb[0].mxu0
    %v195 = vadd.f32 %v79, %v194
    %196 = vdwg.mxu0
    %vm197 = vcmp.gt.f32.partialorder %v146, 0.0
    %vm198 = vcmp.gt.f32.partialorder %v148, 0.0
    %vm199 = vcmp.gt.f32.partialorder %v189, 0.0
    %vm200 = vcmp.gt.f32.partialorder %v191, 0.0
    %vm201 = vcmp.gt.f32.partialorder %v150, 0.0
    %vm202 = vcmp.gt.f32.partialorder %v152, 0.0
    %vm203 = vcmp.gt.f32.partialorder %v193, 0.0
    %vm204 = vcmp.gt.f32.partialorder %v195, 0.0
    %v205 = vmul.f32 %v146, 0.2
    %v206 = vmul.f32 %v148, 0.2
    %v207 = vmul.f32 %v189, 0.2
    %v208 = vmul.f32 %v191, 0.2
    %v209 = vmul.f32 %v150, 0.2
    %v210 = vmul.f32 %v152, 0.2
    %v211 = vmul.f32 %v193, 0.2
    %v212 = vmul.f32 %v195, 0.2
    %v213 = vsel %vm197, %v146, %v205
    %v214 = vsel %vm198, %v148, %v206
    %v215 = vsel %vm199, %v189, %v207
    %v216 = vsel %vm200, %v191, %v208
    %v217 = vsel %vm201, %v150, %v209
    %v218 = vsel %vm202, %v152, %v210
    %v219 = vsel %vm203, %v193, %v211
    %v220 = vsel %vm204, %v195, %v212
    %v221 = vpack.c.bf16 %v217, %v213
    %v222 = vpack.c.bf16 %v218, %v214
    %v223 = vpack.c.bf16 %v219, %v215
    %v224 = vpack.c.bf16 %v220, %v216
    %vm225 = vcmask 261120
    %226 = vst.msk [vmem:[#allocation2 + $0x28] sm:$0xff] %vm225, %v221
    %228 = vrot.lane.b32.xlu0 %v221, 96
    %v229 = vpop.permute.xlu0 %228
    %231 = vst.msk [vmem:[#allocation2 + $0x30] sm:$0xff] %vm225, %v229
    %232 = vrot.lane.b32.xlu0 %v221, 64
    %v233 = vpop.permute.xlu0 %232
    %235 = vst.msk [vmem:[#allocation2 + $0x38] sm:$0xff] %vm225, %v233
    %236 = vrot.lane.b32.xlu0 %v221, 32
    %v237 = vpop.permute.xlu0 %236
    %239 = vst.msk [vmem:[#allocation2 + $0x40] sm:$0xff] %vm225, %v237
    %240 = vst.msk [vmem:[#allocation2 + $0x48] sm:$0xff] %vm225, %v222
    %242 = vrot.lane.b32.xlu0 %v222, 96
    %v243 = vpop.permute.xlu0 %242
    %245 = vst.msk [vmem:[#allocation2 + $0x50] sm:$0xff] %vm225, %v243
    %246 = vrot.lane.b32.xlu0 %v222, 64
    %v247 = vpop.permute.xlu0 %246
    %249 = vst.msk [vmem:[#allocation2 + $0x58] sm:$0xff] %vm225, %v247
    %250 = vrot.lane.b32.xlu0 %v222, 32
    %v251 = vpop.permute.xlu0 %250
    %253 = vst.msk [vmem:[#allocation2 + $0x60] sm:$0xff] %vm225, %v251
    %254 = vst.msk [vmem:[#allocation2 + $0x68] sm:$0xff] %vm225, %v223
    %256 = vrot.lane.b32.xlu0 %v223, 96
    %v257 = vpop.permute.xlu0 %256
    %259 = vst.msk [vmem:[#allocation2 + $0x70] sm:$0xff] %vm225, %v257
    %260 = vrot.lane.b32.xlu0 %v223, 64
    %v261 = vpop.permute.xlu0 %260
    %263 = vst.msk [vmem:[#allocation2 + $0x78] sm:$0xff] %vm225, %v261
    %264 = vrot.lane.b32.xlu0 %v223, 32
    %v265 = vpop.permute.xlu0 %264
    %267 = vst.msk [vmem:[#allocation2 + $0x80] sm:$0xff] %vm225, %v265
    %268 = vst.msk [vmem:[#allocation2 + $0x88] sm:$0xff] %vm225, %v224
    %270 = vrot.lane.b32.xlu0 %v224, 96
    %v271 = vpop.permute.xlu0 %270
    %273 = vst.msk [vmem:[#allocation2 + $0x90] sm:$0xff] %vm225, %v271
    %274 = vrot.lane.b32.xlu0 %v224, 64
    %v275 = vpop.permute.xlu0 %274
    %277 = vst.msk [vmem:[#allocation2 + $0x98] sm:$0xff] %vm225, %v275
    %278 = vrot.lane.b32.xlu0 %v224, 32
    %v279 = vpop.permute.xlu0 %278
    %281 = vst.msk [vmem:[#allocation2 + $0xa0] sm:$0xff] %vm225, %v279
    %v282 = vlaneseq
    %v283 = vshrl.u32 %v282, 7
    %v284 = vadd.s32 %v283, 8
    %v285 = vadd.s32 %v283, 16
    %v286 = vadd.s32 %v283, 24
    %v287 = vadd.s32 %v283, 32
    %v288 = vadd.s32 %v283, 40
    %v289 = vadd.s32 %v283, 48
    %v290 = vadd.s32 %v283, 56
    %v291 = vadd.s32 %v283, 64
    %v292 = vadd.s32 %v283, 72
    %v293 = vadd.s32 %v283, 80
    %v294 = vadd.s32 %v283, 88
    %v295 = vadd.s32 %v283, 96
    %v296 = vadd.s32 %v283, 104
    %v297 = vadd.s32 %v283, 112
    %v298 = vadd.s32 %v283, 120
    %v299 = vadd.s32 %v283, 128
    %v300 = vadd.s32 %v283, 136
    %v301 = vadd.s32 %v283, 144
    %v302 = vadd.s32 %v283, 152
    %v303 = vadd.s32 %v283, 160
    %v304 = vadd.s32 %v283, 168
    %v305 = vadd.s32 %v283, 176
    %v306 = vadd.s32 %v283, 184
    %v307 = vadd.s32 %v283, 192
    %v308 = vadd.s32 %v283, 200
    %v309 = vadd.s32 %v283, 208
    %v310 = vadd.s32 %v283, 216
    %v311 = vadd.s32 %v283, 224
    %v312 = vadd.s32 %v283, 232
    %v313 = vadd.s32 %v283, 240
    %v314 = vadd.s32 %v283, 248
    %v315 = vshra.s32 %v283, 6
    %v316 = vshra.s32 %v284, 6
    %v317 = vshra.s32 %v285, 6
    %v318 = vshra.s32 %v286, 6
    %v319 = vshra.s32 %v287, 6
    %v320 = vshra.s32 %v288, 6
    %v321 = vshra.s32 %v289, 6
    %v322 = vshra.s32 %v290, 6
    %v323 = vshra.s32 %v291, 6
    %v324 = vshra.s32 %v292, 6
    %v325 = vshra.s32 %v293, 6
    %v326 = vshra.s32 %v294, 6
    %v327 = vshra.s32 %v295, 6
    %v328 = vshra.s32 %v296, 6
    %v329 = vshra.s32 %v297, 6
    %v330 = vshra.s32 %v298, 6
    %v331 = vshra.s32 %v299, 6
    %v332 = vshra.s32 %v300, 6
    %v333 = vshra.s32 %v301, 6
    %v334 = vshra.s32 %v302, 6
    %v335 = vshra.s32 %v303, 6
    %v336 = vshra.s32 %v304, 6
    %v337 = vshra.s32 %v305, 6
    %v338 = vshra.s32 %v306, 6
    %v339 = vshra.s32 %v307, 6
    %v340 = vshra.s32 %v308, 6
    %v341 = vshra.s32 %v309, 6
    %v342 = vshra.s32 %v310, 6
    %v343 = vshra.s32 %v311, 6
    %v344 = vshra.s32 %v312, 6
    %v345 = vshra.s32 %v313, 6
    %v346 = vshra.s32 %v314, 6
    %v347 = vshra.s32 %v283, 4
    %v348 = vshra.s32 %v284, 4
    %v349 = vshra.s32 %v285, 4
    %v350 = vshra.s32 %v286, 4
    %v351 = vshra.s32 %v287, 4
    %v352 = vshra.s32 %v288, 4
    %v353 = vshra.s32 %v289, 4
    %v354 = vshra.s32 %v290, 4
    %v355 = vshra.s32 %v291, 4
    %v356 = vshra.s32 %v292, 4
    %v357 = vshra.s32 %v293, 4
    %v358 = vshra.s32 %v294, 4
    %v359 = vshra.s32 %v295, 4
    %v360 = vshra.s32 %v296, 4
    %v361 = vshra.s32 %v297, 4
    %v362 = vshra.s32 %v298, 4
    %v363 = vshra.s32 %v299, 4
    %v364 = vshra.s32 %v300, 4
    %v365 = vshra.s32 %v301, 4
    %v366 = vshra.s32 %v302, 4
    %v367 = vshra.s32 %v303, 4
    %v368 = vshra.s32 %v304, 4
    %v369 = vshra.s32 %v305, 4
    %v370 = vshra.s32 %v306, 4
    %v371 = vshra.s32 %v307, 4
    %v372 = vshra.s32 %v308, 4
    %v373 = vshra.s32 %v309, 4
    %v374 = vshra.s32 %v310, 4
    %v375 = vshra.s32 %v311, 4
    %v376 = vshra.s32 %v312, 4
    %v377 = vshra.s32 %v313, 4
    %v378 = vshra.s32 %v314, 4
    %v379 = vand.u32 %v347, 3
    %v380 = vand.u32 %v348, 3
    %v381 = vand.u32 %v349, 3
    %v382 = vand.u32 %v350, 3
    %v383 = vand.u32 %v351, 3
    %v384 = vand.u32 %v352, 3
    %v385 = vand.u32 %v353, 3
    %v386 = vand.u32 %v354, 3
    %v387 = vand.u32 %v355, 3
    %v388 = vand.u32 %v356, 3
    %v389 = vand.u32 %v357, 3
    %v390 = vand.u32 %v358, 3
    %v391 = vand.u32 %v359, 3
    %v392 = vand.u32 %v360, 3
    %v393 = vand.u32 %v361, 3
    %v394 = vand.u32 %v362, 3
    %v395 = vand.u32 %v363, 3
    %v396 = vand.u32 %v364, 3
    %v397 = vand.u32 %v365, 3
    %v398 = vand.u32 %v366, 3
    %v399 = vand.u32 %v367, 3
    %v400 = vand.u32 %v368, 3
    %v401 = vand.u32 %v369, 3
    %v402 = vand.u32 %v370, 3
    %v403 = vand.u32 %v371, 3
    %v404 = vand.u32 %v372, 3
    %v405 = vand.u32 %v373, 3
    %v406 = vand.u32 %v374, 3
    %v407 = vand.u32 %v375, 3
    %v408 = vand.u32 %v376, 3
    %v409 = vand.u32 %v377, 3
    %v410 = vand.u32 %v378, 3
    %v411 = vld [vmem:[#allocation2] sm:$0xff]
    %v412 = vld [vmem:[#allocation2 + $0x8] sm:$0xff]
    %v413 = vld [vmem:[#allocation2 + $0x10] sm:$0xff]
    %v414 = vld [vmem:[#allocation2 + $0x18] sm:$0xff]
    %v415 = vld [vmem:[#allocation2 + $0x20] sm:$0xff]
    %v416 = vld [vmem:[#allocation2 + $0x28] sm:$0xff]
    %v417 = vld [vmem:[#allocation2 + $0x30] sm:$0xff]
    %v418 = vld [vmem:[#allocation2 + $0x38] sm:$0xff]
    %v419 = vld [vmem:[#allocation2 + $0x40] sm:$0xff]
    %v420 = vld [vmem:[#allocation2 + $0x48] sm:$0xff]
    %v421 = vld [vmem:[#allocation2 + $0x50] sm:$0xff]
    %v422 = vld [vmem:[#allocation2 + $0x58] sm:$0xff]
    %v423 = vld [vmem:[#allocation2 + $0x60] sm:$0xff]
    %v424 = vld [vmem:[#allocation2 + $0x68] sm:$0xff]
    %v425 = vld [vmem:[#allocation2 + $0x70] sm:$0xff]
    %v426 = vld [vmem:[#allocation2 + $0x78] sm:$0xff]
    %vm427 = vcmp.ge.s32.totalorder %v315, 1
    %vm428 = vcmp.ge.s32.totalorder %v316, 1
    %vm429 = vcmp.ge.s32.totalorder %v317, 1
    %vm430 = vcmp.ge.s32.totalorder %v318, 1
    %vm431 = vcmp.ge.s32.totalorder %v319, 1
    %vm432 = vcmp.ge.s32.totalorder %v320, 1
    %vm433 = vcmp.ge.s32.totalorder %v321, 1
    %vm434 = vcmp.ge.s32.totalorder %v322, 1
    %vm435 = vcmp.ge.s32.totalorder %v323, 1
    %vm436 = vcmp.ge.s32.totalorder %v324, 1
    %vm437 = vcmp.ge.s32.totalorder %v325, 1
    %vm438 = vcmp.ge.s32.totalorder %v326, 1
    %vm439 = vcmp.ge.s32.totalorder %v327, 1
    %vm440 = vcmp.ge.s32.totalorder %v328, 1
    %vm441 = vcmp.ge.s32.totalorder %v329, 1
    %vm442 = vcmp.ge.s32.totalorder %v330, 1
    %vm443 = vcmp.ge.s32.totalorder %v331, 1
    %vm444 = vcmp.ge.s32.totalorder %v332, 1
    %vm445 = vcmp.ge.s32.totalorder %v333, 1
    %vm446 = vcmp.ge.s32.totalorder %v334, 1
    %vm447 = vcmp.ge.s32.totalorder %v335, 1
    %vm448 = vcmp.ge.s32.totalorder %v336, 1
    %vm449 = vcmp.ge.s32.totalorder %v337, 1
    %vm450 = vcmp.ge.s32.totalorder %v338, 1
    %vm451 = vcmp.ge.s32.totalorder %v339, 1
    %vm452 = vcmp.ge.s32.totalorder %v340, 1
    %vm453 = vcmp.ge.s32.totalorder %v341, 1
    %vm454 = vcmp.ge.s32.totalorder %v342, 1
    %vm455 = vcmp.ge.s32.totalorder %v343, 1
    %vm456 = vcmp.ge.s32.totalorder %v344, 1
    %vm457 = vcmp.ge.s32.totalorder %v345, 1
    %vm458 = vcmp.ge.s32.totalorder %v346, 1
    %vm459 = vcmp.ge.s32.totalorder %v379, 1
    %vm460 = vcmp.ge.s32.totalorder %v380, 1
    %vm461 = vcmp.ge.s32.totalorder %v381, 1
    %vm462 = vcmp.ge.s32.totalorder %v382, 1
    %vm463 = vcmp.ge.s32.totalorder %v383, 1
    %vm464 = vcmp.ge.s32.totalorder %v384, 1
    %vm465 = vcmp.ge.s32.totalorder %v385, 1
    %vm466 = vcmp.ge.s32.totalorder %v386, 1
    %vm467 = vcmp.ge.s32.totalorder %v387, 1
    %vm468 = vcmp.ge.s32.totalorder %v388, 1
    %vm469 = vcmp.ge.s32.totalorder %v389, 1
    %vm470 = vcmp.ge.s32.totalorder %v390, 1
    %vm471 = vcmp.ge.s32.totalorder %v391, 1
    %vm472 = vcmp.ge.s32.totalorder %v392, 1
    %vm473 = vcmp.ge.s32.totalorder %v393, 1
    %vm474 = vcmp.ge.s32.totalorder %v394, 1
    %vm475 = vcmp.ge.s32.totalorder %v395, 1
    %vm476 = vcmp.ge.s32.totalorder %v396, 1
    %vm477 = vcmp.ge.s32.totalorder %v397, 1
    %vm478 = vcmp.ge.s32.totalorder %v398, 1
    %vm479 = vcmp.ge.s32.totalorder %v399, 1
    %vm480 = vcmp.ge.s32.totalorder %v400, 1
    %vm481 = vcmp.ge.s32.totalorder %v401, 1
    %vm482 = vcmp.ge.s32.totalorder %v402, 1
    %vm483 = vcmp.ge.s32.totalorder %v403, 1
    %vm484 = vcmp.ge.s32.totalorder %v404, 1
    %vm485 = vcmp.ge.s32.totalorder %v405, 1
    %vm486 = vcmp.ge.s32.totalorder %v406, 1
    %vm487 = vcmp.ge.s32.totalorder %v407, 1
    %vm488 = vcmp.ge.s32.totalorder %v408, 1
    %vm489 = vcmp.ge.s32.totalorder %v409, 1
    %vm490 = vcmp.ge.s32.totalorder %v410, 1
    %vm491 = vmand %vm427, %vm459
    %vm492 = vmand %vm428, %vm460
    %vm493 = vmand %vm429, %vm461
    %vm494 = vmand %vm430, %vm462
    %vm495 = vmand %vm431, %vm463
    %vm496 = vmand %vm432, %vm464
    %vm497 = vmand %vm433, %vm465
    %vm498 = vmand %vm434, %vm466
    %vm499 = vmand %vm435, %vm467
    %vm500 = vmand %vm436, %vm468
    %vm501 = vmand %vm437, %vm469
    %vm502 = vmand %vm438, %vm470
    %vm503 = vmand %vm439, %vm471
    %vm504 = vmand %vm440, %vm472
    %vm505 = vmand %vm441, %vm473
    %vm506 = vmand %vm442, %vm474
    %vm507 = vmand %vm443, %vm475
    %vm508 = vmand %vm444, %vm476
    %vm509 = vmand %vm445, %vm477
    %vm510 = vmand %vm446, %vm478
    %vm511 = vmand %vm447, %vm479
    %vm512 = vmand %vm448, %vm480
    %vm513 = vmand %vm449, %vm481
    %vm514 = vmand %vm450, %vm482
    %vm515 = vmand %vm451, %vm483
    %vm516 = vmand %vm452, %vm484
    %vm517 = vmand %vm453, %vm485
    %vm518 = vmand %vm454, %vm486
    %vm519 = vmand %vm455, %vm487
    %vm520 = vmand %vm456, %vm488
    %vm521 = vmand %vm457, %vm489
    %vm522 = vmand %vm458, %vm490
    %v523 = vsel %vm491, 1, 0
    %v524 = vsel %vm492, 1, 0
    %v525 = vsel %vm493, 1, 0
    %v526 = vsel %vm494, 1, 0
    %v527 = vsel %vm495, 1, 0
    %v528 = vsel %vm496, 1, 0
    %v529 = vsel %vm497, 1, 0
    %v530 = vsel %vm498, 1, 0
    %v531 = vsel %vm499, 1, 0
    %v532 = vsel %vm500, 1, 0
    %v533 = vsel %vm501, 1, 0
    %v534 = vsel %vm502, 1, 0
    %v535 = vsel %vm503, 1, 0
    %v536 = vsel %vm504, 1, 0
    %v537 = vsel %vm505, 1, 0
    %v538 = vsel %vm506, 1, 0
    %v539 = vsel %vm507, 1, 0
    %v540 = vsel %vm508, 1, 0
    %v541 = vsel %vm509, 1, 0
    %v542 = vsel %vm510, 1, 0
    %v543 = vsel %vm511, 1, 0
    %v544 = vsel %vm512, 1, 0
    %v545 = vsel %vm513, 1, 0
    %v546 = vsel %vm514, 1, 0
    %v547 = vsel %vm515, 1, 0
    %v548 = vsel %vm516, 1, 0
    %v549 = vsel %vm517, 1, 0
    %v550 = vsel %vm518, 1, 0
    %v551 = vsel %vm519, 1, 0
    %v552 = vsel %vm520, 1, 0
    %v553 = vsel %vm521, 1, 0
    %v554 = vsel %vm522, 1, 0
    %vm555 = vcmp.eq.s32.totalorder %v523, 1
    %vm556 = vcmp.eq.s32.totalorder %v524, 1
    %vm557 = vcmp.eq.s32.totalorder %v525, 1
    %vm558 = vcmp.eq.s32.totalorder %v526, 1
    %vm559 = vcmp.eq.s32.totalorder %v527, 1
    %vm560 = vcmp.eq.s32.totalorder %v528, 1
    %vm561 = vcmp.eq.s32.totalorder %v529, 1
    %vm562 = vcmp.eq.s32.totalorder %v530, 1
    %vm563 = vcmp.eq.s32.totalorder %v531, 1
    %vm564 = vcmp.eq.s32.totalorder %v532, 1
    %vm565 = vcmp.eq.s32.totalorder %v533, 1
    %vm566 = vcmp.eq.s32.totalorder %v534, 1
    %vm567 = vcmp.eq.s32.totalorder %v535, 1
    %vm568 = vcmp.eq.s32.totalorder %v536, 1
    %vm569 = vcmp.eq.s32.totalorder %v537, 1
    %vm570 = vcmp.eq.s32.totalorder %v538, 1
    %vm571 = vcmp.eq.s32.totalorder %v539, 1
    %vm572 = vcmp.eq.s32.totalorder %v540, 1
    %vm573 = vcmp.eq.s32.totalorder %v541, 1
    %vm574 = vcmp.eq.s32.totalorder %v542, 1
    %vm575 = vcmp.eq.s32.totalorder %v543, 1
    %vm576 = vcmp.eq.s32.totalorder %v544, 1
    %vm577 = vcmp.eq.s32.totalorder %v545, 1
    %vm578 = vcmp.eq.s32.totalorder %v546, 1
    %vm579 = vcmp.eq.s32.totalorder %v547, 1
    %vm580 = vcmp.eq.s32.totalorder %v548, 1
    %vm581 = vcmp.eq.s32.totalorder %v549, 1
    %vm582 = vcmp.eq.s32.totalorder %v550, 1
    %vm583 = vcmp.eq.s32.totalorder %v551, 1
    %vm584 = vcmp.eq.s32.totalorder %v552, 1
    %vm585 = vcmp.eq.s32.totalorder %v553, 1
    %vm586 = vcmp.eq.s32.totalorder %v554, 1
    %vm587 = vmpackc.low %vm555, %vm555
    %vm588 = vmpackc.low %vm556, %vm556
    %vm589 = vmpackc.low %vm557, %vm557
    %vm590 = vmpackc.low %vm558, %vm558
    %vm591 = vmpackc.low %vm559, %vm559
    %vm592 = vmpackc.low %vm560, %vm560
    %vm593 = vmpackc.low %vm561, %vm561
    %vm594 = vmpackc.low %vm562, %vm562
    %vm595 = vmpackc.low %vm563, %vm563
    %vm596 = vmpackc.low %vm564, %vm564
    %vm597 = vmpackc.low %vm565, %vm565
    %vm598 = vmpackc.low %vm566, %vm566
    %vm599 = vmpackc.low %vm567, %vm567
    %vm600 = vmpackc.low %vm568, %vm568
    %vm601 = vmpackc.low %vm569, %vm569
    %vm602 = vmpackc.low %vm570, %vm570
    %vm603 = vmpackc.low %vm571, %vm571
    %vm604 = vmpackc.low %vm572, %vm572
    %vm605 = vmpackc.low %vm573, %vm573
    %vm606 = vmpackc.low %vm574, %vm574
    %vm607 = vmpackc.low %vm575, %vm575
    %vm608 = vmpackc.low %vm576, %vm576
    %vm609 = vmpackc.low %vm577, %vm577
    %vm610 = vmpackc.low %vm578, %vm578
    %vm611 = vmpackc.low %vm579, %vm579
    %vm612 = vmpackc.low %vm580, %vm580
    %vm613 = vmpackc.low %vm581, %vm581
    %vm614 = vmpackc.low %vm582, %vm582
    %vm615 = vmpackc.low %vm583, %vm583
    %vm616 = vmpackc.low %vm584, %vm584
    %vm617 = vmpackc.low %vm585, %vm585
    %vm618 = vmpackc.low %vm586, %vm586
    %v619 = vsel %vm587, 65537, 0
    %v620 = vsel %vm588, 65537, 0
    %v621 = vsel %vm589, 65537, 0
    %v622 = vsel %vm590, 65537, 0
    %v623 = vsel %vm591, 65537, 0
    %v624 = vsel %vm592, 65537, 0
    %v625 = vsel %vm593, 65537, 0
    %v626 = vsel %vm594, 65537, 0
    %v627 = vsel %vm595, 65537, 0
    %v628 = vsel %vm596, 65537, 0
    %v629 = vsel %vm597, 65537, 0
    %v630 = vsel %vm598, 65537, 0
    %v631 = vsel %vm599, 65537, 0
    %v632 = vsel %vm600, 65537, 0
    %v633 = vsel %vm601, 65537, 0
    %v634 = vsel %vm602, 65537, 0
    %v635 = vsel %vm603, 65537, 0
    %v636 = vsel %vm604, 65537, 0
    %v637 = vsel %vm605, 65537, 0
    %v638 = vsel %vm606, 65537, 0
    %v639 = vsel %vm607, 65537, 0
    %v640 = vsel %vm608, 65537, 0
    %v641 = vsel %vm609, 65537, 0
    %v642 = vsel %vm610, 65537, 0
    %v643 = vsel %vm611, 65537, 0
    %v644 = vsel %vm612, 65537, 0
    %v645 = vsel %vm613, 65537, 0
    %v646 = vsel %vm614, 65537, 0
    %v647 = vsel %vm615, 65537, 0
    %v648 = vsel %vm616, 65537, 0
    %v649 = vsel %vm617, 65537, 0
    %v650 = vsel %vm618, 65537, 0
    %v651 = vunpack.c.l.b16 %v619
    %v652 = vunpack.c.l.b16 %v620
    %v653 = vunpack.c.l.b16 %v621
    %v654 = vunpack.c.l.b16 %v622
    %v655 = vunpack.c.l.b16 %v623
    %v656 = vunpack.c.l.b16 %v624
    %v657 = vunpack.c.l.b16 %v625
    %v658 = vunpack.c.l.b16 %v626
    %v659 = vunpack.c.l.b16 %v627
    %v660 = vunpack.c.l.b16 %v628
    %v661 = vunpack.c.l.b16 %v629
    %v662 = vunpack.c.l.b16 %v630
    %v663 = vunpack.c.l.b16 %v631
    %v664 = vunpack.c.l.b16 %v632
    %v665 = vunpack.c.l.b16 %v633
    %v666 = vunpack.c.l.b16 %v634
    %v667 = vunpack.c.l.b16 %v635
    %v668 = vunpack.c.l.b16 %v636
    %v669 = vunpack.c.l.b16 %v637
    %v670 = vunpack.c.l.b16 %v638
    %v671 = vunpack.c.l.b16 %v639
    %v672 = vunpack.c.l.b16 %v640
    %v673 = vunpack.c.l.b16 %v641
    %v674 = vunpack.c.l.b16 %v642
    %v675 = vunpack.c.l.b16 %v643
    %v676 = vunpack.c.l.b16 %v644
    %v677 = vunpack.c.l.b16 %v645
    %v678 = vunpack.c.l.b16 %v646
    %v679 = vunpack.c.l.b16 %v647
    %v680 = vunpack.c.l.b16 %v648
    %v681 = vunpack.c.l.b16 %v649
    %v682 = vunpack.c.l.b16 %v650
    %v683 = vpack.c.b16 %v652, %v651
    %v684 = vpack.c.b16 %v654, %v653
    %v685 = vpack.c.b16 %v656, %v655
    %v686 = vpack.c.b16 %v658, %v657
    %v687 = vpack.c.b16 %v660, %v659
    %v688 = vpack.c.b16 %v662, %v661
    %v689 = vpack.c.b16 %v664, %v663
    %v690 = vpack.c.b16 %v666, %v665
    %v691 = vpack.c.b16 %v668, %v667
    %v692 = vpack.c.b16 %v670, %v669
    %v693 = vpack.c.b16 %v672, %v671
    %v694 = vpack.c.b16 %v674, %v673
    %v695 = vpack.c.b16 %v676, %v675
    %v696 = vpack.c.b16 %v678, %v677
    %v697 = vpack.c.b16 %v680, %v679
    %v698 = vpack.c.b16 %v682, %v681
    %vm699 = vcmp.ne.s16.totalorder %v683, 0
    %vm700 = vcmp.ne.s16.totalorder %v684, 0
    %vm701 = vcmp.ne.s16.totalorder %v685, 0
    %vm702 = vcmp.ne.s16.totalorder %v686, 0
    %vm703 = vcmp.ne.s16.totalorder %v687, 0
    %vm704 = vcmp.ne.s16.totalorder %v688, 0
    %vm705 = vcmp.ne.s16.totalorder %v689, 0
    %vm706 = vcmp.ne.s16.totalorder %v690, 0
    %vm707 = vcmp.ne.s16.totalorder %v691, 0
    %vm708 = vcmp.ne.s16.totalorder %v692, 0
    %vm709 = vcmp.ne.s16.totalorder %v693, 0
    %vm710 = vcmp.ne.s16.totalorder %v694, 0
    %vm711 = vcmp.ne.s16.totalorder %v695, 0
    %vm712 = vcmp.ne.s16.totalorder %v696, 0
    %vm713 = vcmp.ne.s16.totalorder %v697, 0
    %vm714 = vcmp.ne.s16.totalorder %v698, 0
    %v715 = vsel %vm699, %v411, 0
    %v716 = vsel %vm700, %v412, 0
    %v717 = vsel %vm701, %v413, 0
    %v718 = vsel %vm702, %v414, 0
    %v719 = vsel %vm703, %v415, 0
    %v720 = vsel %vm704, %v416, 0
    %v721 = vsel %vm705, %v417, 0
    %v722 = vsel %vm706, %v418, 0
    %v723 = vsel %vm707, %v419, 0
    %v724 = vsel %vm708, %v420, 0
    %v725 = vsel %vm709, %v421, 0
    %v726 = vsel %vm710, %v422, 0
    %v727 = vsel %vm711, %v423, 0
    %v728 = vsel %vm712, %v424, 0
    %v729 = vsel %vm713, %v425, 0
    %v730 = vsel %vm714, %v426, 0
    %731 = vst.msk [vmem:[#allocation3] sm:$0xff] %vm225, %v715
    %732 = vst.msk [vmem:[#allocation3 + $0x18] sm:$0xff] %vm225, %v716
    %733 = vst.msk [vmem:[#allocation3 + $0x30] sm:$0xff] %vm225, %v717
    %734 = vst.msk [vmem:[#allocation3 + $0x48] sm:$0xff] %vm225, %v718
    %735 = vst.msk [vmem:[#allocation3 + $0x60] sm:$0xff] %vm225, %v719
    %736 = vst.msk [vmem:[#allocation3 + $0x78] sm:$0xff] %vm225, %v720
    %737 = vst.msk [vmem:[#allocation3 + $0x90] sm:$0xff] %vm225, %v721
    %738 = vst.msk [vmem:[#allocation3 + $0xa8] sm:$0xff] %vm225, %v722
    %739 = vst.msk [vmem:[#allocation3 + $0xc0] sm:$0xff] %vm225, %v723
    %740 = vst.msk [vmem:[#allocation3 + $0xd8] sm:$0xff] %vm225, %v724
    %741 = vst.msk [vmem:[#allocation3 + $0xf0] sm:$0xff] %vm225, %v725
    %742 = vst.msk [vmem:[#allocation3 + $0x108] sm:$0xff] %vm225, %v726
    %743 = vst.msk [vmem:[#allocation3 + $0x120] sm:$0xff] %vm225, %v727
    %744 = vst.msk [vmem:[#allocation3 + $0x138] sm:$0xff] %vm225, %v728
    %745 = vst.msk [vmem:[#allocation3 + $0x150] sm:$0xff] %vm225, %v729
    %746 = vst.msk [vmem:[#allocation3 + $0x168] sm:$0xff] %vm225, %v730
    %v747 = vld [vmem:[#allocation2 + $0x8] sm:$0xff]
    %v748 = vld [vmem:[#allocation2 + $0x10] sm:$0xff]
    %v749 = vld [vmem:[#allocation2 + $0x18] sm:$0xff]
    %v750 = vld [vmem:[#allocation2 + $0x20] sm:$0xff]
    %v751 = vld [vmem:[#allocation2 + $0x28] sm:$0xff]
    %v752 = vld [vmem:[#allocation2 + $0x30] sm:$0xff]
    %v753 = vld [vmem:[#allocation2 + $0x38] sm:$0xff]
    %v754 = vld [vmem:[#allocation2 + $0x40] sm:$0xff]
    %v755 = vld [vmem:[#allocation2 + $0x48] sm:$0xff]
    %v756 = vld [vmem:[#allocation2 + $0x50] sm:$0xff]
    %v757 = vld [vmem:[#allocation2 + $0x58] sm:$0xff]
    %v758 = vld [vmem:[#allocation2 + $0x60] sm:$0xff]
    %v759 = vld [vmem:[#allocation2 + $0x68] sm:$0xff]
    %v760 = vld [vmem:[#allocation2 + $0x70] sm:$0xff]
    %v761 = vld [vmem:[#allocation2 + $0x78] sm:$0xff]
    %v762 = vld [vmem:[#allocation2 + $0x80] sm:$0xff]
    %v763 = vsel %vm427, 1, 0
    %v764 = vsel %vm428, 1, 0
    %v765 = vsel %vm429, 1, 0
    %v766 = vsel %vm430, 1, 0
    %v767 = vsel %vm431, 1, 0
    %v768 = vsel %vm432, 1, 0
    %v769 = vsel %vm433, 1, 0
    %v770 = vsel %vm434, 1, 0
    %v771 = vsel %vm435, 1, 0
    %v772 = vsel %vm436, 1, 0
    %v773 = vsel %vm437, 1, 0
    %v774 = vsel %vm438, 1, 0
    %v775 = vsel %vm439, 1, 0
    %v776 = vsel %vm440, 1, 0
    %v777 = vsel %vm441, 1, 0
    %v778 = vsel %vm442, 1, 0
    %v779 = vsel %vm443, 1, 0
    %v780 = vsel %vm444, 1, 0
    %v781 = vsel %vm445, 1, 0
    %v782 = vsel %vm446, 1, 0
    %v783 = vsel %vm447, 1, 0
    %v784 = vsel %vm448, 1, 0
    %v785 = vsel %vm449, 1, 0
    %v786 = vsel %vm450, 1, 0
    %v787 = vsel %vm451, 1, 0
    %v788 = vsel %vm452, 1, 0
    %v789 = vsel %vm453, 1, 0
    %v790 = vsel %vm454, 1, 0
    %v791 = vsel %vm455, 1, 0
    %v792 = vsel %vm456, 1, 0
    %v793 = vsel %vm457, 1, 0
    %v794 = vsel %vm458, 1, 0
    %vm795 = vcmp.eq.s32.totalorder %v763, 1
    %vm796 = vcmp.eq.s32.totalorder %v764, 1
    %vm797 = vcmp.eq.s32.totalorder %v765, 1
    %vm798 = vcmp.eq.s32.totalorder %v766, 1
    %vm799 = vcmp.eq.s32.totalorder %v767, 1
    %vm800 = vcmp.eq.s32.totalorder %v768, 1
    %vm801 = vcmp.eq.s32.totalorder %v769, 1
    %vm802 = vcmp.eq.s32.totalorder %v770, 1
    %vm803 = vcmp.eq.s32.totalorder %v771, 1
    %vm804 = vcmp.eq.s32.totalorder %v772, 1
    %vm805 = vcmp.eq.s32.totalorder %v773, 1
    %vm806 = vcmp.eq.s32.totalorder %v774, 1
    %vm807 = vcmp.eq.s32.totalorder %v775, 1
    %vm808 = vcmp.eq.s32.totalorder %v776, 1
    %vm809 = vcmp.eq.s32.totalorder %v777, 1
    %vm810 = vcmp.eq.s32.totalorder %v778, 1
    %vm811 = vcmp.eq.s32.totalorder %v779, 1
    %vm812 = vcmp.eq.s32.totalorder %v780, 1
    %vm813 = vcmp.eq.s32.totalorder %v781, 1
    %vm814 = vcmp.eq.s32.totalorder %v782, 1
    %vm815 = vcmp.eq.s32.totalorder %v783, 1
    %vm816 = vcmp.eq.s32.totalorder %v784, 1
    %vm817 = vcmp.eq.s32.totalorder %v785, 1
    %vm818 = vcmp.eq.s32.totalorder %v786, 1
    %vm819 = vcmp.eq.s32.totalorder %v787, 1
    %vm820 = vcmp.eq.s32.totalorder %v788, 1
    %vm821 = vcmp.eq.s32.totalorder %v789, 1
    %vm822 = vcmp.eq.s32.totalorder %v790, 1
    %vm823 = vcmp.eq.s32.totalorder %v791, 1
    %vm824 = vcmp.eq.s32.totalorder %v792, 1
    %vm825 = vcmp.eq.s32.totalorder %v793, 1
    %vm826 = vcmp.eq.s32.totalorder %v794, 1
    %vm827 = vmpackc.low %vm795, %vm795
    %vm828 = vmpackc.low %vm796, %vm796
    %vm829 = vmpackc.low %vm797, %vm797
    %vm830 = vmpackc.low %vm798, %vm798
    %vm831 = vmpackc.low %vm799, %vm799
    %vm832 = vmpackc.low %vm800, %vm800
    %vm833 = vmpackc.low %vm801, %vm801
    %vm834 = vmpackc.low %vm802, %vm802
    %vm835 = vmpackc.low %vm803, %vm803
    %vm836 = vmpackc.low %vm804, %vm804
    %vm837 = vmpackc.low %vm805, %vm805
    %vm838 = vmpackc.low %vm806, %vm806
    %vm839 = vmpackc.low %vm807, %vm807
    %vm840 = vmpackc.low %vm808, %vm808
    %vm841 = vmpackc.low %vm809, %vm809
    %vm842 = vmpackc.low %vm810, %vm810
    %vm843 = vmpackc.low %vm811, %vm811
    %vm844 = vmpackc.low %vm812, %vm812
    %vm845 = vmpackc.low %vm813, %vm813
    %vm846 = vmpackc.low %vm814, %vm814
    %vm847 = vmpackc.low %vm815, %vm815
    %vm848 = vmpackc.low %vm816, %vm816
    %vm849 = vmpackc.low %vm817, %vm817
    %vm850 = vmpackc.low %vm818, %vm818
    %vm851 = vmpackc.low %vm819, %vm819
    %vm852 = vmpackc.low %vm820, %vm820
    %vm853 = vmpackc.low %vm821, %vm821
    %vm854 = vmpackc.low %vm822, %vm822
    %vm855 = vmpackc.low %vm823, %vm823
    %vm856 = vmpackc.low %vm824, %vm824
    %vm857 = vmpackc.low %vm825, %vm825
    %vm858 = vmpackc.low %vm826, %vm826
    %v859 = vsel %vm827, 65537, 0
    %v860 = vsel %vm828, 65537, 0
    %v861 = vsel %vm829, 65537, 0
    %v862 = vsel %vm830, 65537, 0
    %v863 = vsel %vm831, 65537, 0
    %v864 = vsel %vm832, 65537, 0
    %v865 = vsel %vm833, 65537, 0
    %v866 = vsel %vm834, 65537, 0
    %v867 = vsel %vm835, 65537, 0
    %v868 = vsel %vm836, 65537, 0
    %v869 = vsel %vm837, 65537, 0
    %v870 = vsel %vm838, 65537, 0
    %v871 = vsel %vm839, 65537, 0
    %v872 = vsel %vm840, 65537, 0
    %v873 = vsel %vm841, 65537, 0
    %v874 = vsel %vm842, 65537, 0
    %v875 = vsel %vm843, 65537, 0
    %v876 = vsel %vm844, 65537, 0
    %v877 = vsel %vm845, 65537, 0
    %v878 = vsel %vm846, 65537, 0
    %v879 = vsel %vm847, 65537, 0
    %v880 = vsel %vm848, 65537, 0
    %v881 = vsel %vm849, 65537, 0
    %v882 = vsel %vm850, 65537, 0
    %v883 = vsel %vm851, 65537, 0
    %v884 = vsel %vm852, 65537, 0
    %v885 = vsel %vm853, 65537, 0
    %v886 = vsel %vm854, 65537, 0
    %v887 = vsel %vm855, 65537, 0
    %v888 = vsel %vm856, 65537, 0
    %v889 = vsel %vm857, 65537, 0
    %v890 = vsel %vm858, 65537, 0
    %v891 = vunpack.c.l.b16 %v859
    %v892 = vunpack.c.l.b16 %v860
    %v893 = vunpack.c.l.b16 %v861
    %v894 = vunpack.c.l.b16 %v862
    %v895 = vunpack.c.l.b16 %v863
    %v896 = vunpack.c.l.b16 %v864
    %v897 = vunpack.c.l.b16 %v865
    %v898 = vunpack.c.l.b16 %v866
    %v899 = vunpack.c.l.b16 %v867
    %v900 = vunpack.c.l.b16 %v868
    %v901 = vunpack.c.l.b16 %v869
    %v902 = vunpack.c.l.b16 %v870
    %v903 = vunpack.c.l.b16 %v871
    %v904 = vunpack.c.l.b16 %v872
    %v905 = vunpack.c.l.b16 %v873
    %v906 = vunpack.c.l.b16 %v874
    %v907 = vunpack.c.l.b16 %v875
    %v908 = vunpack.c.l.b16 %v876
    %v909 = vunpack.c.l.b16 %v877
    %v910 = vunpack.c.l.b16 %v878
    %v911 = vunpack.c.l.b16 %v879
    %v912 = vunpack.c.l.b16 %v880
    %v913 = vunpack.c.l.b16 %v881
    %v914 = vunpack.c.l.b16 %v882
    %v915 = vunpack.c.l.b16 %v883
    %v916 = vunpack.c.l.b16 %v884
    %v917 = vunpack.c.l.b16 %v885
    %v918 = vunpack.c.l.b16 %v886
    %v919 = vunpack.c.l.b16 %v887
    %v920 = vunpack.c.l.b16 %v888
    %v921 = vunpack.c.l.b16 %v889
    %v922 = vunpack.c.l.b16 %v890
    %v923 = vpack.c.b16 %v892, %v891
    %v924 = vpack.c.b16 %v894, %v893
    %v925 = vpack.c.b16 %v896, %v895
    %v926 = vpack.c.b16 %v898, %v897
    %v927 = vpack.c.b16 %v900, %v899
    %v928 = vpack.c.b16 %v902, %v901
    %v929 = vpack.c.b16 %v904, %v903
    %v930 = vpack.c.b16 %v906, %v905
    %v931 = vpack.c.b16 %v908, %v907
    %v932 = vpack.c.b16 %v910, %v909
    %v933 = vpack.c.b16 %v912, %v911
    %v934 = vpack.c.b16 %v914, %v913
    %v935 = vpack.c.b16 %v916, %v915
    %v936 = vpack.c.b16 %v918, %v917
    %v937 = vpack.c.b16 %v920, %v919
    %v938 = vpack.c.b16 %v922, %v921
    %vm939 = vcmp.ne.s16.totalorder %v923, 0
    %vm940 = vcmp.ne.s16.totalorder %v924, 0
    %vm941 = vcmp.ne.s16.totalorder %v925, 0
    %vm942 = vcmp.ne.s16.totalorder %v926, 0
    %vm943 = vcmp.ne.s16.totalorder %v927, 0
    %vm944 = vcmp.ne.s16.totalorder %v928, 0
    %vm945 = vcmp.ne.s16.totalorder %v929, 0
    %vm946 = vcmp.ne.s16.totalorder %v930, 0
    %vm947 = vcmp.ne.s16.totalorder %v931, 0
    %vm948 = vcmp.ne.s16.totalorder %v932, 0
    %vm949 = vcmp.ne.s16.totalorder %v933, 0
    %vm950 = vcmp.ne.s16.totalorder %v934, 0
    %vm951 = vcmp.ne.s16.totalorder %v935, 0
    %vm952 = vcmp.ne.s16.totalorder %v936, 0
    %vm953 = vcmp.ne.s16.totalorder %v937, 0
    %vm954 = vcmp.ne.s16.totalorder %v938, 0
    %v955 = vsel %vm939, %v747, 0
    %v956 = vsel %vm940, %v748, 0
    %v957 = vsel %vm941, %v749, 0
    %v958 = vsel %vm942, %v750, 0
    %v959 = vsel %vm943, %v751, 0
    %v960 = vsel %vm944, %v752, 0
    %v961 = vsel %vm945, %v753, 0
    %v962 = vsel %vm946, %v754, 0
    %v963 = vsel %vm947, %v755, 0
    %v964 = vsel %vm948, %v756, 0
    %v965 = vsel %vm949, %v757, 0
    %v966 = vsel %vm950, %v758, 0
    %v967 = vsel %vm951, %v759, 0
    %v968 = vsel %vm952, %v760, 0
    %v969 = vsel %vm953, %v761, 0
    %v970 = vsel %vm954, %v762, 0
    %987 = vrot.lane.b32.xlu0 %v955, 32
    %v988 = vpop.permute.xlu0 %987
    %989 = vrot.lane.b32.xlu0 %v956, 32
    %v990 = vpop.permute.xlu0 %989
    %991 = vrot.lane.b32.xlu0 %v957, 32
    %v992 = vpop.permute.xlu0 %991
    %993 = vrot.lane.b32.xlu0 %v958, 32
    %v994 = vpop.permute.xlu0 %993
    %995 = vrot.lane.b32.xlu0 %v959, 32
    %v996 = vpop.permute.xlu0 %995
    %997 = vrot.lane.b32.xlu0 %v960, 32
    %v998 = vpop.permute.xlu0 %997
    %999 = vrot.lane.b32.xlu0 %v961, 32
    %v1000 = vpop.permute.xlu0 %999
    %1001 = vrot.lane.b32.xlu0 %v962, 32
    %v1002 = vpop.permute.xlu0 %1001
    %1003 = vrot.lane.b32.xlu0 %v963, 32
    %v1004 = vpop.permute.xlu0 %1003
    %1005 = vrot.lane.b32.xlu0 %v964, 32
    %v1006 = vpop.permute.xlu0 %1005
    %1007 = vrot.lane.b32.xlu0 %v965, 32
    %v1008 = vpop.permute.xlu0 %1007
    %1009 = vrot.lane.b32.xlu0 %v966, 32
    %v1010 = vpop.permute.xlu0 %1009
    %1011 = vrot.lane.b32.xlu0 %v967, 32
    %v1012 = vpop.permute.xlu0 %1011
    %1013 = vrot.lane.b32.xlu0 %v968, 32
    %v1014 = vpop.permute.xlu0 %1013
    %1015 = vrot.lane.b32.xlu0 %v969, 32
    %v1016 = vpop.permute.xlu0 %1015
    %1017 = vrot.lane.b32.xlu0 %v970, 32
    %v1018 = vpop.permute.xlu0 %1017
    %vm1035 = vcmask 523520
    %1036 = vst.msk [vmem:[#allocation3] sm:$0xff] %vm1035, %v988
    %1037 = vst.msk [vmem:[#allocation3 + $0x18] sm:$0xff] %vm1035, %v990
    %1038 = vst.msk [vmem:[#allocation3 + $0x30] sm:$0xff] %vm1035, %v992
    %1039 = vst.msk [vmem:[#allocation3 + $0x48] sm:$0xff] %vm1035, %v994
    %1040 = vst.msk [vmem:[#allocation3 + $0x60] sm:$0xff] %vm1035, %v996
    %1041 = vst.msk [vmem:[#allocation3 + $0x78] sm:$0xff] %vm1035, %v998
    %1042 = vst.msk [vmem:[#allocation3 + $0x90] sm:$0xff] %vm1035, %v1000
    %1043 = vst.msk [vmem:[#allocation3 + $0xa8] sm:$0xff] %vm1035, %v1002
    %1044 = vst.msk [vmem:[#allocation3 + $0xc0] sm:$0xff] %vm1035, %v1004
    %1045 = vst.msk [vmem:[#allocation3 + $0xd8] sm:$0xff] %vm1035, %v1006
    %1046 = vst.msk [vmem:[#allocation3 + $0xf0] sm:$0xff] %vm1035, %v1008
    %1047 = vst.msk [vmem:[#allocation3 + $0x108] sm:$0xff] %vm1035, %v1010
    %1048 = vst.msk [vmem:[#allocation3 + $0x120] sm:$0xff] %vm1035, %v1012
    %1049 = vst.msk [vmem:[#allocation3 + $0x138] sm:$0xff] %vm1035, %v1014
    %1050 = vst.msk [vmem:[#allocation3 + $0x150] sm:$0xff] %vm1035, %v1016
    %1051 = vst.msk [vmem:[#allocation3 + $0x168] sm:$0xff] %vm1035, %v1018
    %v1052 = vld [vmem:[#allocation2 + $0x10] sm:$0xff]
    %v1053 = vld [vmem:[#allocation2 + $0x18] sm:$0xff]
    %v1054 = vld [vmem:[#allocation2 + $0x20] sm:$0xff]
    %v1055 = vld [vmem:[#allocation2 + $0x28] sm:$0xff]
    %v1056 = vld [vmem:[#allocation2 + $0x30] sm:$0xff]
    %v1057 = vld [vmem:[#allocation2 + $0x38] sm:$0xff]
    %v1058 = vld [vmem:[#allocation2 + $0x40] sm:$0xff]
    %v1059 = vld [vmem:[#allocation2 + $0x48] sm:$0xff]
    %v1060 = vld [vmem:[#allocation2 + $0x50] sm:$0xff]
    %v1061 = vld [vmem:[#allocation2 + $0x58] sm:$0xff]
    %v1062 = vld [vmem:[#allocation2 + $0x60] sm:$0xff]
    %v1063 = vld [vmem:[#allocation2 + $0x68] sm:$0xff]
    %v1064 = vld [vmem:[#allocation2 + $0x70] sm:$0xff]
    %v1065 = vld [vmem:[#allocation2 + $0x78] sm:$0xff]
    %v1066 = vld [vmem:[#allocation2 + $0x80] sm:$0xff]
    %v1067 = vld [vmem:[#allocation2 + $0x88] sm:$0xff]
    %vm1068 = vcmp.lt.s32.totalorder %v379, 3
    %vm1069 = vcmp.lt.s32.totalorder %v380, 3
    %vm1070 = vcmp.lt.s32.totalorder %v381, 3
    %vm1071 = vcmp.lt.s32.totalorder %v382, 3
    %vm1072 = vcmp.lt.s32.totalorder %v383, 3
    %vm1073 = vcmp.lt.s32.totalorder %v384, 3
    %vm1074 = vcmp.lt.s32.totalorder %v385, 3
    %vm1075 = vcmp.lt.s32.totalorder %v386, 3
    %vm1076 = vcmp.lt.s32.totalorder %v387, 3
    %vm1077 = vcmp.lt.s32.totalorder %v388, 3
    %vm1078 = vcmp.lt.s32.totalorder %v389, 3
    %vm1079 = vcmp.lt.s32.totalorder %v390, 3
    %vm1080 = vcmp.lt.s32.totalorder %v391, 3
    %vm1081 = vcmp.lt.s32.totalorder %v392, 3
    %vm1082 = vcmp.lt.s32.totalorder %v393, 3
    %vm1083 = vcmp.lt.s32.totalorder %v394, 3
    %vm1084 = vcmp.lt.s32.totalorder %v395, 3
    %vm1085 = vcmp.lt.s32.totalorder %v396, 3
    %vm1086 = vcmp.lt.s32.totalorder %v397, 3
    %vm1087 = vcmp.lt.s32.totalorder %v398, 3
    %vm1088 = vcmp.lt.s32.totalorder %v399, 3
    %vm1089 = vcmp.lt.s32.totalorder %v400, 3
    %vm1090 = vcmp.lt.s32.totalorder %v401, 3
    %vm1091 = vcmp.lt.s32.totalorder %v402, 3
    %vm1092 = vcmp.lt.s32.totalorder %v403, 3
    %vm1093 = vcmp.lt.s32.totalorder %v404, 3
    %vm1094 = vcmp.lt.s32.totalorder %v405, 3
    %vm1095 = vcmp.lt.s32.totalorder %v406, 3
    %vm1096 = vcmp.lt.s32.totalorder %v407, 3
    %vm1097 = vcmp.lt.s32.totalorder %v408, 3
    %vm1098 = vcmp.lt.s32.totalorder %v409, 3
    %vm1099 = vcmp.lt.s32.totalorder %v410, 3
    %vm1100 = vmand %vm427, %vm1068
    %vm1101 = vmand %vm428, %vm1069
    %vm1102 = vmand %vm429, %vm1070
    %vm1103 = vmand %vm430, %vm1071
    %vm1104 = vmand %vm431, %vm1072
    %vm1105 = vmand %vm432, %vm1073
    %vm1106 = vmand %vm433, %vm1074
    %vm1107 = vmand %vm434, %vm1075
    %vm1108 = vmand %vm435, %vm1076
    %vm1109 = vmand %vm436, %vm1077
    %vm1110 = vmand %vm437, %vm1078
    %vm1111 = vmand %vm438, %vm1079
    %vm1112 = vmand %vm439, %vm1080
    %vm1113 = vmand %vm440, %vm1081
    %vm1114 = vmand %vm441, %vm1082
    %vm1115 = vmand %vm442, %vm1083
    %vm1116 = vmand %vm443, %vm1084
    %vm1117 = vmand %vm444, %vm1085
    %vm1118 = vmand %vm445, %vm1086
    %vm1119 = vmand %vm446, %vm1087
    %vm1120 = vmand %vm447, %vm1088
    %vm1121 = vmand %vm448, %vm1089
    %vm1122 = vmand %vm449, %vm1090
    %vm1123 = vmand %vm450, %vm1091
    %vm1124 = vmand %vm451, %vm1092
    %vm1125 = vmand %vm452, %vm1093
    %vm1126 = vmand %vm453, %vm1094
    %vm1127 = vmand %vm454, %vm1095
    %vm1128 = vmand %vm455, %vm1096
    %vm1129 = vmand %vm456, %vm1097
    %vm1130 = vmand %vm457, %vm1098
    %vm1131 = vmand %vm458, %vm1099
    %v1132 = vsel %vm1100, 1, 0
    %v1133 = vsel %vm1101, 1, 0
    %v1134 = vsel %vm1102, 1, 0
    %v1135 = vsel %vm1103, 1, 0
    %v1136 = vsel %vm1104, 1, 0
    %v1137 = vsel %vm1105, 1, 0
    %v1138 = vsel %vm1106, 1, 0
    %v1139 = vsel %vm1107, 1, 0
    %v1140 = vsel %vm1108, 1, 0
    %v1141 = vsel %vm1109, 1, 0
    %v1142 = vsel %vm1110, 1, 0
    %v1143 = vsel %vm1111, 1, 0
    %v1144 = vsel %vm1112, 1, 0
    %v1145 = vsel %vm1113, 1, 0
    %v1146 = vsel %vm1114, 1, 0
    %v1147 = vsel %vm1115, 1, 0
    %v1148 = vsel %vm1116, 1, 0
    %v1149 = vsel %vm1117, 1, 0
    %v1150 = vsel %vm1118, 1, 0
    %v1151 = vsel %vm1119, 1, 0
    %v1152 = vsel %vm1120, 1, 0
    %v1153 = vsel %vm1121, 1, 0
    %v1154 = vsel %vm1122, 1, 0
    %v1155 = vsel %vm1123, 1, 0
    %v1156 = vsel %vm1124, 1, 0
    %v1157 = vsel %vm1125, 1, 0
    %v1158 = vsel %vm1126, 1, 0
    %v1159 = vsel %vm1127, 1, 0
    %v1160 = vsel %vm1128, 1, 0
    %v1161 = vsel %vm1129, 1, 0
    %v1162 = vsel %vm1130, 1, 0
    %v1163 = vsel %vm1131, 1, 0
    %vm1164 = vcmp.eq.s32.totalorder %v1132, 1
    %vm1165 = vcmp.eq.s32.totalorder %v1133, 1
    %vm1166 = vcmp.eq.s32.totalorder %v1134, 1
    %vm1167 = vcmp.eq.s32.totalorder %v1135, 1
    %vm1168 = vcmp.eq.s32.totalorder %v1136, 1
    %vm1169 = vcmp.eq.s32.totalorder %v1137, 1
    %vm1170 = vcmp.eq.s32.totalorder %v1138, 1
    %vm1171 = vcmp.eq.s32.totalorder %v1139, 1
    %vm1172 = vcmp.eq.s32.totalorder %v1140, 1
    %vm1173 = vcmp.eq.s32.totalorder %v1141, 1
    %vm1174 = vcmp.eq.s32.totalorder %v1142, 1
    %vm1175 = vcmp.eq.s32.totalorder %v1143, 1
    %vm1176 = vcmp.eq.s32.totalorder %v1144, 1
    %vm1177 = vcmp.eq.s32.totalorder %v1145, 1
    %vm1178 = vcmp.eq.s32.totalorder %v1146, 1
    %vm1179 = vcmp.eq.s32.totalorder %v1147, 1
    %vm1180 = vcmp.eq.s32.totalorder %v1148, 1
    %vm1181 = vcmp.eq.s32.totalorder %v1149, 1
    %vm1182 = vcmp.eq.s32.totalorder %v1150, 1
    %vm1183 = vcmp.eq.s32.totalorder %v1151, 1
    %vm1184 = vcmp.eq.s32.totalorder %v1152, 1
    %vm1185 = vcmp.eq.s32.totalorder %v1153, 1
    %vm1186 = vcmp.eq.s32.totalorder %v1154, 1
    %vm1187 = vcmp.eq.s32.totalorder %v1155, 1
    %vm1188 = vcmp.eq.s32.totalorder %v1156, 1
    %vm1189 = vcmp.eq.s32.totalorder %v1157, 1
    %vm1190 = vcmp.eq.s32.totalorder %v1158, 1
    %vm1191 = vcmp.eq.s32.totalorder %v1159, 1
    %vm1192 = vcmp.eq.s32.totalorder %v1160, 1
    %vm1193 = vcmp.eq.s32.totalorder %v1161, 1
    %vm1194 = vcmp.eq.s32.totalorder %v1162, 1
    %vm1195 = vcmp.eq.s32.totalorder %v1163, 1
    %vm1196 = vmpackc.low %vm1164, %vm1164
    %vm1197 = vmpackc.low %vm1165, %vm1165
    %vm1198 = vmpackc.low %vm1166, %vm1166
    %vm1199 = vmpackc.low %vm1167, %vm1167
    %vm1200 = vmpackc.low %vm1168, %vm1168
    %vm1201 = vmpackc.low %vm1169, %vm1169
    %vm1202 = vmpackc.low %vm1170, %vm1170
    %vm1203 = vmpackc.low %vm1171, %vm1171
    %vm1204 = vmpackc.low %vm1172, %vm1172
    %vm1205 = vmpackc.low %vm1173, %vm1173
    %vm1206 = vmpackc.low %vm1174, %vm1174
    %vm1207 = vmpackc.low %vm1175, %vm1175
    %vm1208 = vmpackc.low %vm1176, %vm1176
    %vm1209 = vmpackc.low %vm1177, %vm1177
    %vm1210 = vmpackc.low %vm1178, %vm1178
    %vm1211 = vmpackc.low %vm1179, %vm1179
    %vm1212 = vmpackc.low %vm1180, %vm1180
    %vm1213 = vmpackc.low %vm1181, %vm1181
    %vm1214 = vmpackc.low %vm1182, %vm1182
    %vm1215 = vmpackc.low %vm1183, %vm1183
    %vm1216 = vmpackc.low %vm1184, %vm1184
    %vm1217 = vmpackc.low %vm1185, %vm1185
    %vm1218 = vmpackc.low %vm1186, %vm1186
    %vm1219 = vmpackc.low %vm1187, %vm1187
    %vm1220 = vmpackc.low %vm1188, %vm1188
    %vm1221 = vmpackc.low %vm1189, %vm1189
    %vm1222 = vmpackc.low %vm1190, %vm1190
    %vm1223 = vmpackc.low %vm1191, %vm1191
    %vm1224 = vmpackc.low %vm1192, %vm1192
    %vm1225 = vmpackc.low %vm1193, %vm1193
    %vm1226 = vmpackc.low %vm1194, %vm1194
    %vm1227 = vmpackc.low %vm1195, %vm1195
    %v1228 = vsel %vm1196, 65537, 0
    %v1229 = vsel %vm1197, 65537, 0
    %v1230 = vsel %vm1198, 65537, 0
    %v1231 = vsel %vm1199, 65537, 0
    %v1232 = vsel %vm1200, 65537, 0
    %v1233 = vsel %vm1201, 65537, 0
    %v1234 = vsel %vm1202, 65537, 0
    %v1235 = vsel %vm1203, 65537, 0
    %v1236 = vsel %vm1204, 65537, 0
    %v1237 = vsel %vm1205, 65537, 0
    %v1238 = vsel %vm1206, 65537, 0
    %v1239 = vsel %vm1207, 65537, 0
    %v1240 = vsel %vm1208, 65537, 0
    %v1241 = vsel %vm1209, 65537, 0
    %v1242 = vsel %vm1210, 65537, 0
    %v1243 = vsel %vm1211, 65537, 0
    %v1244 = vsel %vm1212, 65537, 0
    %v1245 = vsel %vm1213, 65537, 0
    %v1246 = vsel %vm1214, 65537, 0
    %v1247 = vsel %vm1215, 65537, 0
    %v1248 = vsel %vm1216, 65537, 0
    %v1249 = vsel %vm1217, 65537, 0
    %v1250 = vsel %vm1218, 65537, 0
    %v1251 = vsel %vm1219, 65537, 0
    %v1252 = vsel %vm1220, 65537, 0
    %v1253 = vsel %vm1221, 65537, 0
    %v1254 = vsel %vm1222, 65537, 0
    %v1255 = vsel %vm1223, 65537, 0
    %v1256 = vsel %vm1224, 65537, 0
    %v1257 = vsel %vm1225, 65537, 0
    %v1258 = vsel %vm1226, 65537, 0
    %v1259 = vsel %vm1227, 65537, 0
    %v1260 = vunpack.c.l.b16 %v1228
    %v1261 = vunpack.c.l.b16 %v1229
    %v1262 = vunpack.c.l.b16 %v1230
    %v1263 = vunpack.c.l.b16 %v1231
    %v1264 = vunpack.c.l.b16 %v1232
    %v1265 = vunpack.c.l.b16 %v1233
    %v1266 = vunpack.c.l.b16 %v1234
    %v1267 = vunpack.c.l.b16 %v1235
    %v1268 = vunpack.c.l.b16 %v1236
    %v1269 = vunpack.c.l.b16 %v1237
    %v1270 = vunpack.c.l.b16 %v1238
    %v1271 = vunpack.c.l.b16 %v1239
    %v1272 = vunpack.c.l.b16 %v1240
    %v1273 = vunpack.c.l.b16 %v1241
    %v1274 = vunpack.c.l.b16 %v1242
    %v1275 = vunpack.c.l.b16 %v1243
    %v1276 = vunpack.c.l.b16 %v1244
    %v1277 = vunpack.c.l.b16 %v1245
    %v1278 = vunpack.c.l.b16 %v1246
    %v1279 = vunpack.c.l.b16 %v1247
    %v1280 = vunpack.c.l.b16 %v1248
    %v1281 = vunpack.c.l.b16 %v1249
    %v1282 = vunpack.c.l.b16 %v1250
    %v1283 = vunpack.c.l.b16 %v1251
    %v1284 = vunpack.c.l.b16 %v1252
    %v1285 = vunpack.c.l.b16 %v1253
    %v1286 = vunpack.c.l.b16 %v1254
    %v1287 = vunpack.c.l.b16 %v1255
    %v1288 = vunpack.c.l.b16 %v1256
    %v1289 = vunpack.c.l.b16 %v1257
    %v1290 = vunpack.c.l.b16 %v1258
    %v1291 = vunpack.c.l.b16 %v1259
    %v1292 = vpack.c.b16 %v1261, %v1260
    %v1293 = vpack.c.b16 %v1263, %v1262
    %v1294 = vpack.c.b16 %v1265, %v1264
    %v1295 = vpack.c.b16 %v1267, %v1266
    %v1296 = vpack.c.b16 %v1269, %v1268
    %v1297 = vpack.c.b16 %v1271, %v1270
    %v1298 = vpack.c.b16 %v1273, %v1272
    %v1299 = vpack.c.b16 %v1275, %v1274
    %v1300 = vpack.c.b16 %v1277, %v1276
    %v1301 = vpack.c.b16 %v1279, %v1278
    %v1302 = vpack.c.b16 %v1281, %v1280
    %v1303 = vpack.c.b16 %v1283, %v1282
    %v1304 = vpack.c.b16 %v1285, %v1284
    %v1305 = vpack.c.b16 %v1287, %v1286
    %v1306 = vpack.c.b16 %v1289, %v1288
    %v1307 = vpack.c.b16 %v1291, %v1290
    %vm1308 = vcmp.ne.s16.totalorder %v1292, 0
    %vm1309 = vcmp.ne.s16.totalorder %v1293, 0
    %vm1310 = vcmp.ne.s16.totalorder %v1294, 0
    %vm1311 = vcmp.ne.s16.totalorder %v1295, 0
    %vm1312 = vcmp.ne.s16.totalorder %v1296, 0
    %vm1313 = vcmp.ne.s16.totalorder %v1297, 0
    %vm1314 = vcmp.ne.s16.totalorder %v1298, 0
    %vm1315 = vcmp.ne.s16.totalorder %v1299, 0
    %vm1316 = vcmp.ne.s16.totalorder %v1300, 0
    %vm1317 = vcmp.ne.s16.totalorder %v1301, 0
    %vm1318 = vcmp.ne.s16.totalorder %v1302, 0
    %vm1319 = vcmp.ne.s16.totalorder %v1303, 0
    %vm1320 = vcmp.ne.s16.totalorder %v1304, 0
    %vm1321 = vcmp.ne.s16.totalorder %v1305, 0
    %vm1322 = vcmp.ne.s16.totalorder %v1306, 0
    %vm1323 = vcmp.ne.s16.totalorder %v1307, 0
    %v1324 = vsel %vm1308, %v1052, 0
    %v1325 = vsel %vm1309, %v1053, 0
    %v1326 = vsel %vm1310, %v1054, 0
    %v1327 = vsel %vm1311, %v1055, 0
    %v1328 = vsel %vm1312, %v1056, 0
    %v1329 = vsel %vm1313, %v1057, 0
    %v1330 = vsel %vm1314, %v1058, 0
    %v1331 = vsel %vm1315, %v1059, 0
    %v1332 = vsel %vm1316, %v1060, 0
    %v1333 = vsel %vm1317, %v1061, 0
    %v1334 = vsel %vm1318, %v1062, 0
    %v1335 = vsel %vm1319, %v1063, 0
    %v1336 = vsel %vm1320, %v1064, 0
    %v1337 = vsel %vm1321, %v1065, 0
    %v1338 = vsel %vm1322, %v1066, 0
    %v1339 = vsel %vm1323, %v1067, 0
    %1356 = vrot.lane.b32.xlu0 %v1324, 64
    %v1357 = vpop.permute.xlu0 %1356
    %1358 = vrot.lane.b32.xlu0 %v1325, 64
    %v1359 = vpop.permute.xlu0 %1358
    %1360 = vrot.lane.b32.xlu0 %v1326, 64
    %v1361 = vpop.permute.xlu0 %1360
    %1362 = vrot.lane.b32.xlu0 %v1327, 64
    %v1363 = vpop.permute.xlu0 %1362
    %1364 = vrot.lane.b32.xlu0 %v1328, 64
    %v1365 = vpop.permute.xlu0 %1364
    %1366 = vrot.lane.b32.xlu0 %v1329, 64
    %v1367 = vpop.permute.xlu0 %1366
    %1368 = vrot.lane.b32.xlu0 %v1330, 64
    %v1369 = vpop.permute.xlu0 %1368
    %1370 = vrot.lane.b32.xlu0 %v1331, 64
    %v1371 = vpop.permute.xlu0 %1370
    %1372 = vrot.lane.b32.xlu0 %v1332, 64
    %v1373 = vpop.permute.xlu0 %1372
    %1374 = vrot.lane.b32.xlu0 %v1333, 64
    %v1375 = vpop.permute.xlu0 %1374
    %1376 = vrot.lane.b32.xlu0 %v1334, 64
    %v1377 = vpop.permute.xlu0 %1376
    %1378 = vrot.lane.b32.xlu0 %v1335, 64
    %v1379 = vpop.permute.xlu0 %1378
    %1380 = vrot.lane.b32.xlu0 %v1336, 64
    %v1381 = vpop.permute.xlu0 %1380
    %1382 = vrot.lane.b32.xlu0 %v1337, 64
    %v1383 = vpop.permute.xlu0 %1382
    %1384 = vrot.lane.b32.xlu0 %v1338, 64
    %v1385 = vpop.permute.xlu0 %1384
    %1386 = vrot.lane.b32.xlu0 %v1339, 64
    %v1387 = vpop.permute.xlu0 %1386
    %vm1404 = vcmask 785920
    %1405 = vst.msk [vmem:[#allocation3] sm:$0xff] %vm1404, %v1357
    %1406 = vst.msk [vmem:[#allocation3 + $0x18] sm:$0xff] %vm1404, %v1359
    %1407 = vst.msk [vmem:[#allocation3 + $0x30] sm:$0xff] %vm1404, %v1361
    %1408 = vst.msk [vmem:[#allocation3 + $0x48] sm:$0xff] %vm1404, %v1363
    %1409 = vst.msk [vmem:[#allocation3 + $0x60] sm:$0xff] %vm1404, %v1365
    %1410 = vst.msk [vmem:[#allocation3 + $0x78] sm:$0xff] %vm1404, %v1367
    %1411 = vst.msk [vmem:[#allocation3 + $0x90] sm:$0xff] %vm1404, %v1369
    %1412 = vst.msk [vmem:[#allocation3 + $0xa8] sm:$0xff] %vm1404, %v1371
    %1413 = vst.msk [vmem:[#allocation3 + $0xc0] sm:$0xff] %vm1404, %v1373
    %1414 = vst.msk [vmem:[#allocation3 + $0xd8] sm:$0xff] %vm1404, %v1375
    %1415 = vst.msk [vmem:[#allocation3 + $0xf0] sm:$0xff] %vm1404, %v1377
    %1416 = vst.msk [vmem:[#allocation3 + $0x108] sm:$0xff] %vm1404, %v1379
    %1417 = vst.msk [vmem:[#allocation3 + $0x120] sm:$0xff] %vm1404, %v1381
    %1418 = vst.msk [vmem:[#allocation3 + $0x138] sm:$0xff] %vm1404, %v1383
    %1419 = vst.msk [vmem:[#allocation3 + $0x150] sm:$0xff] %vm1404, %v1385
    %1420 = vst.msk [vmem:[#allocation3 + $0x168] sm:$0xff] %vm1404, %v1387
    %v1421 = vld [vmem:[#allocation2 + $0x20] sm:$0xff]
    %v1422 = vld [vmem:[#allocation2 + $0x28] sm:$0xff]
    %v1423 = vld [vmem:[#allocation2 + $0x30] sm:$0xff]
    %v1424 = vld [vmem:[#allocation2 + $0x38] sm:$0xff]
    %v1425 = vld [vmem:[#allocation2 + $0x40] sm:$0xff]
    %v1426 = vld [vmem:[#allocation2 + $0x48] sm:$0xff]
    %v1427 = vld [vmem:[#allocation2 + $0x50] sm:$0xff]
    %v1428 = vld [vmem:[#allocation2 + $0x58] sm:$0xff]
    %v1429 = vld [vmem:[#allocation2 + $0x60] sm:$0xff]
    %v1430 = vld [vmem:[#allocation2 + $0x68] sm:$0xff]
    %v1431 = vld [vmem:[#allocation2 + $0x70] sm:$0xff]
    %v1432 = vld [vmem:[#allocation2 + $0x78] sm:$0xff]
    %v1433 = vld [vmem:[#allocation2 + $0x80] sm:$0xff]
    %v1434 = vld [vmem:[#allocation2 + $0x88] sm:$0xff]
    %v1435 = vld [vmem:[#allocation2 + $0x90] sm:$0xff]
    %v1436 = vld [vmem:[#allocation2 + $0x98] sm:$0xff]
    %v1437 = vsel %vm459, 1, 0
    %v1438 = vsel %vm460, 1, 0
    %v1439 = vsel %vm461, 1, 0
    %v1440 = vsel %vm462, 1, 0
    %v1441 = vsel %vm463, 1, 0
    %v1442 = vsel %vm464, 1, 0
    %v1443 = vsel %vm465, 1, 0
    %v1444 = vsel %vm466, 1, 0
    %v1445 = vsel %vm467, 1, 0
    %v1446 = vsel %vm468, 1, 0
    %v1447 = vsel %vm469, 1, 0
    %v1448 = vsel %vm470, 1, 0
    %v1449 = vsel %vm471, 1, 0
    %v1450 = vsel %vm472, 1, 0
    %v1451 = vsel %vm473, 1, 0
    %v1452 = vsel %vm474, 1, 0
    %v1453 = vsel %vm475, 1, 0
    %v1454 = vsel %vm476, 1, 0
    %v1455 = vsel %vm477, 1, 0
    %v1456 = vsel %vm478, 1, 0
    %v1457 = vsel %vm479, 1, 0
    %v1458 = vsel %vm480, 1, 0
    %v1459 = vsel %vm481, 1, 0
    %v1460 = vsel %vm482, 1, 0
    %v1461 = vsel %vm483, 1, 0
    %v1462 = vsel %vm484, 1, 0
    %v1463 = vsel %vm485, 1, 0
    %v1464 = vsel %vm486, 1, 0
    %v1465 = vsel %vm487, 1, 0
    %v1466 = vsel %vm488, 1, 0
    %v1467 = vsel %vm489, 1, 0
    %v1468 = vsel %vm490, 1, 0
    %vm1469 = vcmp.eq.s32.totalorder %v1437, 1
    %vm1470 = vcmp.eq.s32.totalorder %v1438, 1
    %vm1471 = vcmp.eq.s32.totalorder %v1439, 1
    %vm1472 = vcmp.eq.s32.totalorder %v1440, 1
    %vm1473 = vcmp.eq.s32.totalorder %v1441, 1
    %vm1474 = vcmp.eq.s32.totalorder %v1442, 1
    %vm1475 = vcmp.eq.s32.totalorder %v1443, 1
    %vm1476 = vcmp.eq.s32.totalorder %v1444, 1
    %vm1477 = vcmp.eq.s32.totalorder %v1445, 1
    %vm1478 = vcmp.eq.s32.totalorder %v1446, 1
    %vm1479 = vcmp.eq.s32.totalorder %v1447, 1
    %vm1480 = vcmp.eq.s32.totalorder %v1448, 1
    %vm1481 = vcmp.eq.s32.totalorder %v1449, 1
    %vm1482 = vcmp.eq.s32.totalorder %v1450, 1
    %vm1483 = vcmp.eq.s32.totalorder %v1451, 1
    %vm1484 = vcmp.eq.s32.totalorder %v1452, 1
    %vm1485 = vcmp.eq.s32.totalorder %v1453, 1
    %vm1486 = vcmp.eq.s32.totalorder %v1454, 1
    %vm1487 = vcmp.eq.s32.totalorder %v1455, 1
    %vm1488 = vcmp.eq.s32.totalorder %v1456, 1
    %vm1489 = vcmp.eq.s32.totalorder %v1457, 1
    %vm1490 = vcmp.eq.s32.totalorder %v1458, 1
    %vm1491 = vcmp.eq.s32.totalorder %v1459, 1
    %vm1492 = vcmp.eq.s32.totalorder %v1460, 1
    %vm1493 = vcmp.eq.s32.totalorder %v1461, 1
    %vm1494 = vcmp.eq.s32.totalorder %v1462, 1
    %vm1495 = vcmp.eq.s32.totalorder %v1463, 1
    %vm1496 = vcmp.eq.s32.totalorder %v1464, 1
    %vm1497 = vcmp.eq.s32.totalorder %v1465, 1
    %vm1498 = vcmp.eq.s32.totalorder %v1466, 1
    %vm1499 = vcmp.eq.s32.totalorder %v1467, 1
    %vm1500 = vcmp.eq.s32.totalorder %v1468, 1
    %vm1501 = vmpackc.low %vm1469, %vm1469
    %vm1502 = vmpackc.low %vm1470, %vm1470
    %vm1503 = vmpackc.low %vm1471, %vm1471
    %vm1504 = vmpackc.low %vm1472, %vm1472
    %vm1505 = vmpackc.low %vm1473, %vm1473
    %vm1506 = vmpackc.low %vm1474, %vm1474
    %vm1507 = vmpackc.low %vm1475, %vm1475
    %vm1508 = vmpackc.low %vm1476, %vm1476
    %vm1509 = vmpackc.low %vm1477, %vm1477
    %vm1510 = vmpackc.low %vm1478, %vm1478
    %vm1511 = vmpackc.low %vm1479, %vm1479
    %vm1512 = vmpackc.low %vm1480, %vm1480
    %vm1513 = vmpackc.low %vm1481, %vm1481
    %vm1514 = vmpackc.low %vm1482, %vm1482
    %vm1515 = vmpackc.low %vm1483, %vm1483
    %vm1516 = vmpackc.low %vm1484, %vm1484
    %vm1517 = vmpackc.low %vm1485, %vm1485
    %vm1518 = vmpackc.low %vm1486, %vm1486
    %vm1519 = vmpackc.low %vm1487, %vm1487
    %vm1520 = vmpackc.low %vm1488, %vm1488
    %vm1521 = vmpackc.low %vm1489, %vm1489
    %vm1522 = vmpackc.low %vm1490, %vm1490
    %vm1523 = vmpackc.low %vm1491, %vm1491
    %vm1524 = vmpackc.low %vm1492, %vm1492
    %vm1525 = vmpackc.low %vm1493, %vm1493
    %vm1526 = vmpackc.low %vm1494, %vm1494
    %vm1527 = vmpackc.low %vm1495, %vm1495
    %vm1528 = vmpackc.low %vm1496, %vm1496
    %vm1529 = vmpackc.low %vm1497, %vm1497
    %vm1530 = vmpackc.low %vm1498, %vm1498
    %vm1531 = vmpackc.low %vm1499, %vm1499
    %vm1532 = vmpackc.low %vm1500, %vm1500
    %v1533 = vsel %vm1501, 65537, 0
    %v1534 = vsel %vm1502, 65537, 0
    %v1535 = vsel %vm1503, 65537, 0
    %v1536 = vsel %vm1504, 65537, 0
    %v1537 = vsel %vm1505, 65537, 0
    %v1538 = vsel %vm1506, 65537, 0
    %v1539 = vsel %vm1507, 65537, 0
    %v1540 = vsel %vm1508, 65537, 0
    %v1541 = vsel %vm1509, 65537, 0
    %v1542 = vsel %vm1510, 65537, 0
    %v1543 = vsel %vm1511, 65537, 0
    %v1544 = vsel %vm1512, 65537, 0
    %v1545 = vsel %vm1513, 65537, 0
    %v1546 = vsel %vm1514, 65537, 0
    %v1547 = vsel %vm1515, 65537, 0
    %v1548 = vsel %vm1516, 65537, 0
    %v1549 = vsel %vm1517, 65537, 0
    %v1550 = vsel %vm1518, 65537, 0
    %v1551 = vsel %vm1519, 65537, 0
    %v1552 = vsel %vm1520, 65537, 0
    %v1553 = vsel %vm1521, 65537, 0
    %v1554 = vsel %vm1522, 65537, 0
    %v1555 = vsel %vm1523, 65537, 0
    %v1556 = vsel %vm1524, 65537, 0
    %v1557 = vsel %vm1525, 65537, 0
    %v1558 = vsel %vm1526, 65537, 0
    %v1559 = vsel %vm1527, 65537, 0
    %v1560 = vsel %vm1528, 65537, 0
    %v1561 = vsel %vm1529, 65537, 0
    %v1562 = vsel %vm1530, 65537, 0
    %v1563 = vsel %vm1531, 65537, 0
    %v1564 = vsel %vm1532, 65537, 0
    %v1565 = vunpack.c.l.b16 %v1533
    %v1566 = vunpack.c.l.b16 %v1534
    %v1567 = vunpack.c.l.b16 %v1535
    %v1568 = vunpack.c.l.b16 %v1536
    %v1569 = vunpack.c.l.b16 %v1537
    %v1570 = vunpack.c.l.b16 %v1538
    %v1571 = vunpack.c.l.b16 %v1539
    %v1572 = vunpack.c.l.b16 %v1540
    %v1573 = vunpack.c.l.b16 %v1541
    %v1574 = vunpack.c.l.b16 %v1542
    %v1575 = vunpack.c.l.b16 %v1543
    %v1576 = vunpack.c.l.b16 %v1544
    %v1577 = vunpack.c.l.b16 %v1545
    %v1578 = vunpack.c.l.b16 %v1546
    %v1579 = vunpack.c.l.b16 %v1547
    %v1580 = vunpack.c.l.b16 %v1548
    %v1581 = vunpack.c.l.b16 %v1549
    %v1582 = vunpack.c.l.b16 %v1550
    %v1583 = vunpack.c.l.b16 %v1551
    %v1584 = vunpack.c.l.b16 %v1552
    %v1585 = vunpack.c.l.b16 %v1553
    %v1586 = vunpack.c.l.b16 %v1554
    %v1587 = vunpack.c.l.b16 %v1555
    %v1588 = vunpack.c.l.b16 %v1556
    %v1589 = vunpack.c.l.b16 %v1557
    %v1590 = vunpack.c.l.b16 %v1558
    %v1591 = vunpack.c.l.b16 %v1559
    %v1592 = vunpack.c.l.b16 %v1560
    %v1593 = vunpack.c.l.b16 %v1561
    %v1594 = vunpack.c.l.b16 %v1562
    %v1595 = vunpack.c.l.b16 %v1563
    %v1596 = vunpack.c.l.b16 %v1564
    %v1597 = vpack.c.b16 %v1566, %v1565
    %v1598 = vpack.c.b16 %v1568, %v1567
    %v1599 = vpack.c.b16 %v1570, %v1569
    %v1600 = vpack.c.b16 %v1572, %v1571
    %v1601 = vpack.c.b16 %v1574, %v1573
    %v1602 = vpack.c.b16 %v1576, %v1575
    %v1603 = vpack.c.b16 %v1578, %v1577
    %v1604 = vpack.c.b16 %v1580, %v1579
    %v1605 = vpack.c.b16 %v1582, %v1581
    %v1606 = vpack.c.b16 %v1584, %v1583
    %v1607 = vpack.c.b16 %v1586, %v1585
    %v1608 = vpack.c.b16 %v1588, %v1587
    %v1609 = vpack.c.b16 %v1590, %v1589
    %v1610 = vpack.c.b16 %v1592, %v1591
    %v1611 = vpack.c.b16 %v1594, %v1593
    %v1612 = vpack.c.b16 %v1596, %v1595
    %vm1613 = vcmp.ne.s16.totalorder %v1597, 0
    %vm1614 = vcmp.ne.s16.totalorder %v1598, 0
    %vm1615 = vcmp.ne.s16.totalorder %v1599, 0
    %vm1616 = vcmp.ne.s16.totalorder %v1600, 0
    %vm1617 = vcmp.ne.s16.totalorder %v1601, 0
    %vm1618 = vcmp.ne.s16.totalorder %v1602, 0
    %vm1619 = vcmp.ne.s16.totalorder %v1603, 0
    %vm1620 = vcmp.ne.s16.totalorder %v1604, 0
    %vm1621 = vcmp.ne.s16.totalorder %v1605, 0
    %vm1622 = vcmp.ne.s16.totalorder %v1606, 0
    %vm1623 = vcmp.ne.s16.totalorder %v1607, 0
    %vm1624 = vcmp.ne.s16.totalorder %v1608, 0
    %vm1625 = vcmp.ne.s16.totalorder %v1609, 0
    %vm1626 = vcmp.ne.s16.totalorder %v1610, 0
    %vm1627 = vcmp.ne.s16.totalorder %v1611, 0
    %vm1628 = vcmp.ne.s16.totalorder %v1612, 0
    %v1629 = vsel %vm1613, %v1421, 0
    %v1630 = vsel %vm1614, %v1422, 0
    %v1631 = vsel %vm1615, %v1423, 0
    %v1632 = vsel %vm1616, %v1424, 0
    %v1633 = vsel %vm1617, %v1425, 0
    %v1634 = vsel %vm1618, %v1426, 0
    %v1635 = vsel %vm1619, %v1427, 0
    %v1636 = vsel %vm1620, %v1428, 0
    %v1637 = vsel %vm1621, %v1429, 0
    %v1638 = vsel %vm1622, %v1430, 0
    %v1639 = vsel %vm1623, %v1431, 0
    %v1640 = vsel %vm1624, %v1432, 0
    %v1641 = vsel %vm1625, %v1433, 0
    %v1642 = vsel %vm1626, %v1434, 0
    %v1643 = vsel %vm1627, %v1435, 0
    %v1644 = vsel %vm1628, %v1436, 0
    %1661 = vrot.lane.b32.xlu0 %v1629, 96
    %v1662 = vpop.permute.xlu0 %1661
    %1663 = vrot.lane.b32.xlu0 %v1630, 96
    %v1664 = vpop.permute.xlu0 %1663
    %1665 = vrot.lane.b32.xlu0 %v1631, 96
    %v1666 = vpop.permute.xlu0 %1665
    %1667 = vrot.lane.b32.xlu0 %v1632, 96
    %v1668 = vpop.permute.xlu0 %1667
    %1669 = vrot.lane.b32.xlu0 %v1633, 96
    %v1670 = vpop.permute.xlu0 %1669
    %1671 = vrot.lane.b32.xlu0 %v1634, 96
    %v1672 = vpop.permute.xlu0 %1671
    %1673 = vrot.lane.b32.xlu0 %v1635, 96
    %v1674 = vpop.permute.xlu0 %1673
    %1675 = vrot.lane.b32.xlu0 %v1636, 96
    %v1676 = vpop.permute.xlu0 %1675
    %1677 = vrot.lane.b32.xlu0 %v1637, 96
    %v1678 = vpop.permute.xlu0 %1677
    %1679 = vrot.lane.b32.xlu0 %v1638, 96
    %v1680 = vpop.permute.xlu0 %1679
    %1681 = vrot.lane.b32.xlu0 %v1639, 96
    %v1682 = vpop.permute.xlu0 %1681
    %1683 = vrot.lane.b32.xlu0 %v1640, 96
    %v1684 = vpop.permute.xlu0 %1683
    %1685 = vrot.lane.b32.xlu0 %v1641, 96
    %v1686 = vpop.permute.xlu0 %1685
    %1687 = vrot.lane.b32.xlu0 %v1642, 96
    %v1688 = vpop.permute.xlu0 %1687
    %1689 = vrot.lane.b32.xlu0 %v1643, 96
    %v1690 = vpop.permute.xlu0 %1689
    %1691 = vrot.lane.b32.xlu0 %v1644, 96
    %v1692 = vpop.permute.xlu0 %1691
    %vm1709 = vcmask 1048320
    %1710 = vst.msk [vmem:[#allocation3] sm:$0xff] %vm1709, %v1662
    %1711 = vst.msk [vmem:[#allocation3 + $0x18] sm:$0xff] %vm1709, %v1664
    %1712 = vst.msk [vmem:[#allocation3 + $0x30] sm:$0xff] %vm1709, %v1666
    %1713 = vst.msk [vmem:[#allocation3 + $0x48] sm:$0xff] %vm1709, %v1668
    %1714 = vst.msk [vmem:[#allocation3 + $0x60] sm:$0xff] %vm1709, %v1670
    %1715 = vst.msk [vmem:[#allocation3 + $0x78] sm:$0xff] %vm1709, %v1672
    %1716 = vst.msk [vmem:[#allocation3 + $0x90] sm:$0xff] %vm1709, %v1674
    %1717 = vst.msk [vmem:[#allocation3 + $0xa8] sm:$0xff] %vm1709, %v1676
    %1718 = vst.msk [vmem:[#allocation3 + $0xc0] sm:$0xff] %vm1709, %v1678
    %1719 = vst.msk [vmem:[#allocation3 + $0xd8] sm:$0xff] %vm1709, %v1680
    %1720 = vst.msk [vmem:[#allocation3 + $0xf0] sm:$0xff] %vm1709, %v1682
    %1721 = vst.msk [vmem:[#allocation3 + $0x108] sm:$0xff] %vm1709, %v1684
    %1722 = vst.msk [vmem:[#allocation3 + $0x120] sm:$0xff] %vm1709, %v1686
    %1723 = vst.msk [vmem:[#allocation3 + $0x138] sm:$0xff] %vm1709, %v1688
    %1724 = vst.msk [vmem:[#allocation3 + $0x150] sm:$0xff] %vm1709, %v1690
    %1725 = vst.msk [vmem:[#allocation3 + $0x168] sm:$0xff] %vm1709, %v1692
    %v1726 = vld [vmem:[#allocation2 + $0x28] sm:$0xff]
    %v1727 = vld [vmem:[#allocation2 + $0x30] sm:$0xff]
    %v1728 = vld [vmem:[#allocation2 + $0x38] sm:$0xff]
    %v1729 = vld [vmem:[#allocation2 + $0x40] sm:$0xff]
    %v1730 = vld [vmem:[#allocation2 + $0x48] sm:$0xff]
    %v1731 = vld [vmem:[#allocation2 + $0x50] sm:$0xff]
    %v1732 = vld [vmem:[#allocation2 + $0x58] sm:$0xff]
    %v1733 = vld [vmem:[#allocation2 + $0x60] sm:$0xff]
    %v1734 = vld [vmem:[#allocation2 + $0x68] sm:$0xff]
    %v1735 = vld [vmem:[#allocation2 + $0x70] sm:$0xff]
    %v1736 = vld [vmem:[#allocation2 + $0x78] sm:$0xff]
    %v1737 = vld [vmem:[#allocation2 + $0x80] sm:$0xff]
    %v1738 = vld [vmem:[#allocation2 + $0x88] sm:$0xff]
    %v1739 = vld [vmem:[#allocation2 + $0x90] sm:$0xff]
    %v1740 = vld [vmem:[#allocation2 + $0x98] sm:$0xff]
    %v1741 = vld [vmem:[#allocation2 + $0xa0] sm:$0xff]
    %1742 = vst.msk [vmem:[#allocation3 + $0x8] sm:$0xff] %vm225, %v1726
    %1743 = vst.msk [vmem:[#allocation3 + $0x20] sm:$0xff] %vm225, %v1727
    %1744 = vst.msk [vmem:[#allocation3 + $0x38] sm:$0xff] %vm225, %v1728
    %1745 = vst.msk [vmem:[#allocation3 + $0x50] sm:$0xff] %vm225, %v1729
    %1746 = vst.msk [vmem:[#allocation3 + $0x68] sm:$0xff] %vm225, %v1730
    %1747 = vst.msk [vmem:[#allocation3 + $0x80] sm:$0xff] %vm225, %v1731
    %1748 = vst.msk [vmem:[#allocation3 + $0x98] sm:$0xff] %vm225, %v1732
    %1749 = vst.msk [vmem:[#allocation3 + $0xb0] sm:$0xff] %vm225, %v1733
    %1750 = vst.msk [vmem:[#allocation3 + $0xc8] sm:$0xff] %vm225, %v1734
    %1751 = vst.msk [vmem:[#allocation3 + $0xe0] sm:$0xff] %vm225, %v1735
    %1752 = vst.msk [vmem:[#allocation3 + $0xf8] sm:$0xff] %vm225, %v1736
    %1753 = vst.msk [vmem:[#allocation3 + $0x110] sm:$0xff] %vm225, %v1737
    %1754 = vst.msk [vmem:[#allocation3 + $0x128] sm:$0xff] %vm225, %v1738
    %1755 = vst.msk [vmem:[#allocation3 + $0x140] sm:$0xff] %vm225, %v1739
    %1756 = vst.msk [vmem:[#allocation3 + $0x158] sm:$0xff] %vm225, %v1740
    %1757 = vst.msk [vmem:[#allocation3 + $0x170] sm:$0xff] %vm225, %v1741
    %v1758 = vld [vmem:[#allocation2 + $0x30] sm:$0xff]
    %v1759 = vld [vmem:[#allocation2 + $0x38] sm:$0xff]
    %v1760 = vld [vmem:[#allocation2 + $0x40] sm:$0xff]
    %v1761 = vld [vmem:[#allocation2 + $0x48] sm:$0xff]
    %v1762 = vld [vmem:[#allocation2 + $0x50] sm:$0xff]
    %v1763 = vld [vmem:[#allocation2 + $0x58] sm:$0xff]
    %v1764 = vld [vmem:[#allocation2 + $0x60] sm:$0xff]
    %v1765 = vld [vmem:[#allocation2 + $0x68] sm:$0xff]
    %v1766 = vld [vmem:[#allocation2 + $0x70] sm:$0xff]
    %v1767 = vld [vmem:[#allocation2 + $0x78] sm:$0xff]
    %v1768 = vld [vmem:[#allocation2 + $0x80] sm:$0xff]
    %v1769 = vld [vmem:[#allocation2 + $0x88] sm:$0xff]
    %v1770 = vld [vmem:[#allocation2 + $0x90] sm:$0xff]
    %v1771 = vld [vmem:[#allocation2 + $0x98] sm:$0xff]
    %v1772 = vld [vmem:[#allocation2 + $0xa0] sm:$0xff]
    %v1773 = vld [vmem:[#allocation2 + $0xa8] sm:$0xff]
    %v1774 = vsel %vm1068, 1, 0
    %v1775 = vsel %vm1069, 1, 0
    %v1776 = vsel %vm1070, 1, 0
    %v1777 = vsel %vm1071, 1, 0
    %v1778 = vsel %vm1072, 1, 0
    %v1779 = vsel %vm1073, 1, 0
    %v1780 = vsel %vm1074, 1, 0
    %v1781 = vsel %vm1075, 1, 0
    %v1782 = vsel %vm1076, 1, 0
    %v1783 = vsel %vm1077, 1, 0
    %v1784 = vsel %vm1078, 1, 0
    %v1785 = vsel %vm1079, 1, 0
    %v1786 = vsel %vm1080, 1, 0
    %v1787 = vsel %vm1081, 1, 0
    %v1788 = vsel %vm1082, 1, 0
    %v1789 = vsel %vm1083, 1, 0
    %v1790 = vsel %vm1084, 1, 0
    %v1791 = vsel %vm1085, 1, 0
    %v1792 = vsel %vm1086, 1, 0
    %v1793 = vsel %vm1087, 1, 0
    %v1794 = vsel %vm1088, 1, 0
    %v1795 = vsel %vm1089, 1, 0
    %v1796 = vsel %vm1090, 1, 0
    %v1797 = vsel %vm1091, 1, 0
    %v1798 = vsel %vm1092, 1, 0
    %v1799 = vsel %vm1093, 1, 0
    %v1800 = vsel %vm1094, 1, 0
    %v1801 = vsel %vm1095, 1, 0
    %v1802 = vsel %vm1096, 1, 0
    %v1803 = vsel %vm1097, 1, 0
    %v1804 = vsel %vm1098, 1, 0
    %v1805 = vsel %vm1099, 1, 0
    %vm1806 = vcmp.eq.s32.totalorder %v1774, 1
    %vm1807 = vcmp.eq.s32.totalorder %v1775, 1
    %vm1808 = vcmp.eq.s32.totalorder %v1776, 1
    %vm1809 = vcmp.eq.s32.totalorder %v1777, 1
    %vm1810 = vcmp.eq.s32.totalorder %v1778, 1
    %vm1811 = vcmp.eq.s32.totalorder %v1779, 1
    %vm1812 = vcmp.eq.s32.totalorder %v1780, 1
    %vm1813 = vcmp.eq.s32.totalorder %v1781, 1
    %vm1814 = vcmp.eq.s32.totalorder %v1782, 1
    %vm1815 = vcmp.eq.s32.totalorder %v1783, 1
    %vm1816 = vcmp.eq.s32.totalorder %v1784, 1
    %vm1817 = vcmp.eq.s32.totalorder %v1785, 1
    %vm1818 = vcmp.eq.s32.totalorder %v1786, 1
    %vm1819 = vcmp.eq.s32.totalorder %v1787, 1
    %vm1820 = vcmp.eq.s32.totalorder %v1788, 1
    %vm1821 = vcmp.eq.s32.totalorder %v1789, 1
    %vm1822 = vcmp.eq.s32.totalorder %v1790, 1
    %vm1823 = vcmp.eq.s32.totalorder %v1791, 1
    %vm1824 = vcmp.eq.s32.totalorder %v1792, 1
    %vm1825 = vcmp.eq.s32.totalorder %v1793, 1
    %vm1826 = vcmp.eq.s32.totalorder %v1794, 1
    %vm1827 = vcmp.eq.s32.totalorder %v1795, 1
    %vm1828 = vcmp.eq.s32.totalorder %v1796, 1
    %vm1829 = vcmp.eq.s32.totalorder %v1797, 1
    %vm1830 = vcmp.eq.s32.totalorder %v1798, 1
    %vm1831 = vcmp.eq.s32.totalorder %v1799, 1
    %vm1832 = vcmp.eq.s32.totalorder %v1800, 1
    %vm1833 = vcmp.eq.s32.totalorder %v1801, 1
    %vm1834 = vcmp.eq.s32.totalorder %v1802, 1
    %vm1835 = vcmp.eq.s32.totalorder %v1803, 1
    %vm1836 = vcmp.eq.s32.totalorder %v1804, 1
    %vm1837 = vcmp.eq.s32.totalorder %v1805, 1
    %vm1838 = vmpackc.low %vm1806, %vm1806
    %vm1839 = vmpackc.low %vm1807, %vm1807
    %vm1840 = vmpackc.low %vm1808, %vm1808
    %vm1841 = vmpackc.low %vm1809, %vm1809
    %vm1842 = vmpackc.low %vm1810, %vm1810
    %vm1843 = vmpackc.low %vm1811, %vm1811
    %vm1844 = vmpackc.low %vm1812, %vm1812
    %vm1845 = vmpackc.low %vm1813, %vm1813
    %vm1846 = vmpackc.low %vm1814, %vm1814
    %vm1847 = vmpackc.low %vm1815, %vm1815
    %vm1848 = vmpackc.low %vm1816, %vm1816
    %vm1849 = vmpackc.low %vm1817, %vm1817
    %vm1850 = vmpackc.low %vm1818, %vm1818
    %vm1851 = vmpackc.low %vm1819, %vm1819
    %vm1852 = vmpackc.low %vm1820, %vm1820
    %vm1853 = vmpackc.low %vm1821, %vm1821
    %vm1854 = vmpackc.low %vm1822, %vm1822
    %vm1855 = vmpackc.low %vm1823, %vm1823
    %vm1856 = vmpackc.low %vm1824, %vm1824
    %vm1857 = vmpackc.low %vm1825, %vm1825
    %vm1858 = vmpackc.low %vm1826, %vm1826
    %vm1859 = vmpackc.low %vm1827, %vm1827
    %vm1860 = vmpackc.low %vm1828, %vm1828
    %vm1861 = vmpackc.low %vm1829, %vm1829
    %vm1862 = vmpackc.low %vm1830, %vm1830
    %vm1863 = vmpackc.low %vm1831, %vm1831
    %vm1864 = vmpackc.low %vm1832, %vm1832
    %vm1865 = vmpackc.low %vm1833, %vm1833
    %vm1866 = vmpackc.low %vm1834, %vm1834
    %vm1867 = vmpackc.low %vm1835, %vm1835
    %vm1868 = vmpackc.low %vm1836, %vm1836
    %vm1869 = vmpackc.low %vm1837, %vm1837
    %v1870 = vsel %vm1838, 65537, 0
    %v1871 = vsel %vm1839, 65537, 0
    %v1872 = vsel %vm1840, 65537, 0
    %v1873 = vsel %vm1841, 65537, 0
    %v1874 = vsel %vm1842, 65537, 0
    %v1875 = vsel %vm1843, 65537, 0
    %v1876 = vsel %vm1844, 65537, 0
    %v1877 = vsel %vm1845, 65537, 0
    %v1878 = vsel %vm1846, 65537, 0
    %v1879 = vsel %vm1847, 65537, 0
    %v1880 = vsel %vm1848, 65537, 0
    %v1881 = vsel %vm1849, 65537, 0
    %v1882 = vsel %vm1850, 65537, 0
    %v1883 = vsel %vm1851, 65537, 0
    %v1884 = vsel %vm1852, 65537, 0
    %v1885 = vsel %vm1853, 65537, 0
    %v1886 = vsel %vm1854, 65537, 0
    %v1887 = vsel %vm1855, 65537, 0
    %v1888 = vsel %vm1856, 65537, 0
    %v1889 = vsel %vm1857, 65537, 0
    %v1890 = vsel %vm1858, 65537, 0
    %v1891 = vsel %vm1859, 65537, 0
    %v1892 = vsel %vm1860, 65537, 0
    %v1893 = vsel %vm1861, 65537, 0
    %v1894 = vsel %vm1862, 65537, 0
    %v1895 = vsel %vm1863, 65537, 0
    %v1896 = vsel %vm1864, 65537, 0
    %v1897 = vsel %vm1865, 65537, 0
    %v1898 = vsel %vm1866, 65537, 0
    %v1899 = vsel %vm1867, 65537, 0
    %v1900 = vsel %vm1868, 65537, 0
    %v1901 = vsel %vm1869, 65537, 0
    %v1902 = vunpack.c.l.b16 %v1870
    %v1903 = vunpack.c.l.b16 %v1871
    %v1904 = vunpack.c.l.b16 %v1872
    %v1905 = vunpack.c.l.b16 %v1873
    %v1906 = vunpack.c.l.b16 %v1874
    %v1907 = vunpack.c.l.b16 %v1875
    %v1908 = vunpack.c.l.b16 %v1876
    %v1909 = vunpack.c.l.b16 %v1877
    %v1910 = vunpack.c.l.b16 %v1878
    %v1911 = vunpack.c.l.b16 %v1879
    %v1912 = vunpack.c.l.b16 %v1880
    %v1913 = vunpack.c.l.b16 %v1881
    %v1914 = vunpack.c.l.b16 %v1882
    %v1915 = vunpack.c.l.b16 %v1883
    %v1916 = vunpack.c.l.b16 %v1884
    %v1917 = vunpack.c.l.b16 %v1885
    %v1918 = vunpack.c.l.b16 %v1886
    %v1919 = vunpack.c.l.b16 %v1887
    %v1920 = vunpack.c.l.b16 %v1888
    %v1921 = vunpack.c.l.b16 %v1889
    %v1922 = vunpack.c.l.b16 %v1890
    %v1923 = vunpack.c.l.b16 %v1891
    %v1924 = vunpack.c.l.b16 %v1892
    %v1925 = vunpack.c.l.b16 %v1893
    %v1926 = vunpack.c.l.b16 %v1894
    %v1927 = vunpack.c.l.b16 %v1895
    %v1928 = vunpack.c.l.b16 %v1896
    %v1929 = vunpack.c.l.b16 %v1897
    %v1930 = vunpack.c.l.b16 %v1898
    %v1931 = vunpack.c.l.b16 %v1899
    %v1932 = vunpack.c.l.b16 %v1900
    %v1933 = vunpack.c.l.b16 %v1901
    %v1934 = vpack.c.b16 %v1903, %v1902
    %v1935 = vpack.c.b16 %v1905, %v1904
    %v1936 = vpack.c.b16 %v1907, %v1906
    %v1937 = vpack.c.b16 %v1909, %v1908
    %v1938 = vpack.c.b16 %v1911, %v1910
    %v1939 = vpack.c.b16 %v1913, %v1912
    %v1940 = vpack.c.b16 %v1915, %v1914
    %v1941 = vpack.c.b16 %v1917, %v1916
    %v1942 = vpack.c.b16 %v1919, %v1918
    %v1943 = vpack.c.b16 %v1921, %v1920
    %v1944 = vpack.c.b16 %v1923, %v1922
    %v1945 = vpack.c.b16 %v1925, %v1924
    %v1946 = vpack.c.b16 %v1927, %v1926
    %v1947 = vpack.c.b16 %v1929, %v1928
    %v1948 = vpack.c.b16 %v1931, %v1930
    %v1949 = vpack.c.b16 %v1933, %v1932
    %vm1950 = vcmp.ne.s16.totalorder %v1934, 0
    %vm1951 = vcmp.ne.s16.totalorder %v1935, 0
    %vm1952 = vcmp.ne.s16.totalorder %v1936, 0
    %vm1953 = vcmp.ne.s16.totalorder %v1937, 0
    %vm1954 = vcmp.ne.s16.totalorder %v1938, 0
    %vm1955 = vcmp.ne.s16.totalorder %v1939, 0
    %vm1956 = vcmp.ne.s16.totalorder %v1940, 0
    %vm1957 = vcmp.ne.s16.totalorder %v1941, 0
    %vm1958 = vcmp.ne.s16.totalorder %v1942, 0
    %vm1959 = vcmp.ne.s16.totalorder %v1943, 0
    %vm1960 = vcmp.ne.s16.totalorder %v1944, 0
    %vm1961 = vcmp.ne.s16.totalorder %v1945, 0
    %vm1962 = vcmp.ne.s16.totalorder %v1946, 0
    %vm1963 = vcmp.ne.s16.totalorder %v1947, 0
    %vm1964 = vcmp.ne.s16.totalorder %v1948, 0
    %vm1965 = vcmp.ne.s16.totalorder %v1949, 0
    %v1966 = vsel %vm1950, %v1758, 0
    %v1967 = vsel %vm1951, %v1759, 0
    %v1968 = vsel %vm1952, %v1760, 0
    %v1969 = vsel %vm1953, %v1761, 0
    %v1970 = vsel %vm1954, %v1762, 0
    %v1971 = vsel %vm1955, %v1763, 0
    %v1972 = vsel %vm1956, %v1764, 0
    %v1973 = vsel %vm1957, %v1765, 0
    %v1974 = vsel %vm1958, %v1766, 0
    %v1975 = vsel %vm1959, %v1767, 0
    %v1976 = vsel %vm1960, %v1768, 0
    %v1977 = vsel %vm1961, %v1769, 0
    %v1978 = vsel %vm1962, %v1770, 0
    %v1979 = vsel %vm1963, %v1771, 0
    %v1980 = vsel %vm1964, %v1772, 0
    %v1981 = vsel %vm1965, %v1773, 0
    %1998 = vrot.lane.b32.xlu0 %v1966, 32
    %v1999 = vpop.permute.xlu0 %1998
    %2000 = vrot.lane.b32.xlu0 %v1967, 32
    %v2001 = vpop.permute.xlu0 %2000
    %2002 = vrot.lane.b32.xlu0 %v1968, 32
    %v2003 = vpop.permute.xlu0 %2002
    %2004 = vrot.lane.b32.xlu0 %v1969, 32
    %v2005 = vpop.permute.xlu0 %2004
    %2006 = vrot.lane.b32.xlu0 %v1970, 32
    %v2007 = vpop.permute.xlu0 %2006
    %2008 = vrot.lane.b32.xlu0 %v1971, 32
    %v2009 = vpop.permute.xlu0 %2008
    %2010 = vrot.lane.b32.xlu0 %v1972, 32
    %v2011 = vpop.permute.xlu0 %2010
    %2012 = vrot.lane.b32.xlu0 %v1973, 32
    %v2013 = vpop.permute.xlu0 %2012
    %2014 = vrot.lane.b32.xlu0 %v1974, 32
    %v2015 = vpop.permute.xlu0 %2014
    %2016 = vrot.lane.b32.xlu0 %v1975, 32
    %v2017 = vpop.permute.xlu0 %2016
    %2018 = vrot.lane.b32.xlu0 %v1976, 32
    %v2019 = vpop.permute.xlu0 %2018
    %2020 = vrot.lane.b32.xlu0 %v1977, 32
    %v2021 = vpop.permute.xlu0 %2020
    %2022 = vrot.lane.b32.xlu0 %v1978, 32
    %v2023 = vpop.permute.xlu0 %2022
    %2024 = vrot.lane.b32.xlu0 %v1979, 32
    %v2025 = vpop.permute.xlu0 %2024
    %2026 = vrot.lane.b32.xlu0 %v1980, 32
    %v2027 = vpop.permute.xlu0 %2026
    %2028 = vrot.lane.b32.xlu0 %v1981, 32
    %v2029 = vpop.permute.xlu0 %2028
    %2046 = vst.msk [vmem:[#allocation3 + $0x8] sm:$0xff] %vm1035, %v1999
    %2047 = vst.msk [vmem:[#allocation3 + $0x20] sm:$0xff] %vm1035, %v2001
    %2048 = vst.msk [vmem:[#allocation3 + $0x38] sm:$0xff] %vm1035, %v2003
    %2049 = vst.msk [vmem:[#allocation3 + $0x50] sm:$0xff] %vm1035, %v2005
    %2050 = vst.msk [vmem:[#allocation3 + $0x68] sm:$0xff] %vm1035, %v2007
    %2051 = vst.msk [vmem:[#allocation3 + $0x80] sm:$0xff] %vm1035, %v2009
    %2052 = vst.msk [vmem:[#allocation3 + $0x98] sm:$0xff] %vm1035, %v2011
    %2053 = vst.msk [vmem:[#allocation3 + $0xb0] sm:$0xff] %vm1035, %v2013
    %2054 = vst.msk [vmem:[#allocation3 + $0xc8] sm:$0xff] %vm1035, %v2015
    %2055 = vst.msk [vmem:[#allocation3 + $0xe0] sm:$0xff] %vm1035, %v2017
    %2056 = vst.msk [vmem:[#allocation3 + $0xf8] sm:$0xff] %vm1035, %v2019
    %2057 = vst.msk [vmem:[#allocation3 + $0x110] sm:$0xff] %vm1035, %v2021
    %2058 = vst.msk [vmem:[#allocation3 + $0x128] sm:$0xff] %vm1035, %v2023
    %2059 = vst.msk [vmem:[#allocation3 + $0x140] sm:$0xff] %vm1035, %v2025
    %2060 = vst.msk [vmem:[#allocation3 + $0x158] sm:$0xff] %vm1035, %v2027
    %2061 = vst.msk [vmem:[#allocation3 + $0x170] sm:$0xff] %vm1035, %v2029
    %v2062 = vld [vmem:[#allocation2 + $0x40] sm:$0xff]
    %v2063 = vld [vmem:[#allocation2 + $0x48] sm:$0xff]
    %v2064 = vld [vmem:[#allocation2 + $0x50] sm:$0xff]
    %v2065 = vld [vmem:[#allocation2 + $0x58] sm:$0xff]
    %v2066 = vld [vmem:[#allocation2 + $0x60] sm:$0xff]
    %v2067 = vld [vmem:[#allocation2 + $0x68] sm:$0xff]
    %v2068 = vld [vmem:[#allocation2 + $0x70] sm:$0xff]
    %v2069 = vld [vmem:[#allocation2 + $0x78] sm:$0xff]
    %v2070 = vld [vmem:[#allocation2 + $0x80] sm:$0xff]
    %v2071 = vld [vmem:[#allocation2 + $0x88] sm:$0xff]
    %v2072 = vld [vmem:[#allocation2 + $0x90] sm:$0xff]
    %v2073 = vld [vmem:[#allocation2 + $0x98] sm:$0xff]
    %v2074 = vld [vmem:[#allocation2 + $0xa0] sm:$0xff]
    %v2075 = vld [vmem:[#allocation2 + $0xa8] sm:$0xff]
    %v2076 = vld [vmem:[#allocation2 + $0xb0] sm:$0xff]
    %v2077 = vld [vmem:[#allocation2 + $0xb8] sm:$0xff]
    %vm2078 = vcmp.lt.s32.totalorder %v315, 3
    %vm2079 = vcmp.lt.s32.totalorder %v316, 3
    %vm2080 = vcmp.lt.s32.totalorder %v317, 3
    %vm2081 = vcmp.lt.s32.totalorder %v318, 3
    %vm2082 = vcmp.lt.s32.totalorder %v319, 3
    %vm2083 = vcmp.lt.s32.totalorder %v320, 3
    %vm2084 = vcmp.lt.s32.totalorder %v321, 3
    %vm2085 = vcmp.lt.s32.totalorder %v322, 3
    %vm2086 = vcmp.lt.s32.totalorder %v323, 3
    %vm2087 = vcmp.lt.s32.totalorder %v324, 3
    %vm2088 = vcmp.lt.s32.totalorder %v325, 3
    %vm2089 = vcmp.lt.s32.totalorder %v326, 3
    %vm2090 = vcmp.lt.s32.totalorder %v327, 3
    %vm2091 = vcmp.lt.s32.totalorder %v328, 3
    %vm2092 = vcmp.lt.s32.totalorder %v329, 3
    %vm2093 = vcmp.lt.s32.totalorder %v330, 3
    %vm2094 = vcmp.lt.s32.totalorder %v331, 3
    %vm2095 = vcmp.lt.s32.totalorder %v332, 3
    %vm2096 = vcmp.lt.s32.totalorder %v333, 3
    %vm2097 = vcmp.lt.s32.totalorder %v334, 3
    %vm2098 = vcmp.lt.s32.totalorder %v335, 3
    %vm2099 = vcmp.lt.s32.totalorder %v336, 3
    %vm2100 = vcmp.lt.s32.totalorder %v337, 3
    %vm2101 = vcmp.lt.s32.totalorder %v338, 3
    %vm2102 = vcmp.lt.s32.totalorder %v339, 3
    %vm2103 = vcmp.lt.s32.totalorder %v340, 3
    %vm2104 = vcmp.lt.s32.totalorder %v341, 3
    %vm2105 = vcmp.lt.s32.totalorder %v342, 3
    %vm2106 = vcmp.lt.s32.totalorder %v343, 3
    %vm2107 = vcmp.lt.s32.totalorder %v344, 3
    %vm2108 = vcmp.lt.s32.totalorder %v345, 3
    %vm2109 = vcmp.lt.s32.totalorder %v346, 3
    %vm2110 = vmand %vm2078, %vm459
    %vm2111 = vmand %vm2079, %vm460
    %vm2112 = vmand %vm2080, %vm461
    %vm2113 = vmand %vm2081, %vm462
    %vm2114 = vmand %vm2082, %vm463
    %vm2115 = vmand %vm2083, %vm464
    %vm2116 = vmand %vm2084, %vm465
    %vm2117 = vmand %vm2085, %vm466
    %vm2118 = vmand %vm2086, %vm467
    %vm2119 = vmand %vm2087, %vm468
    %vm2120 = vmand %vm2088, %vm469
    %vm2121 = vmand %vm2089, %vm470
    %vm2122 = vmand %vm2090, %vm471
    %vm2123 = vmand %vm2091, %vm472
    %vm2124 = vmand %vm2092, %vm473
    %vm2125 = vmand %vm2093, %vm474
    %vm2126 = vmand %vm2094, %vm475
    %vm2127 = vmand %vm2095, %vm476
    %vm2128 = vmand %vm2096, %vm477
    %vm2129 = vmand %vm2097, %vm478
    %vm2130 = vmand %vm2098, %vm479
    %vm2131 = vmand %vm2099, %vm480
    %vm2132 = vmand %vm2100, %vm481
    %vm2133 = vmand %vm2101, %vm482
    %vm2134 = vmand %vm2102, %vm483
    %vm2135 = vmand %vm2103, %vm484
    %vm2136 = vmand %vm2104, %vm485
    %vm2137 = vmand %vm2105, %vm486
    %vm2138 = vmand %vm2106, %vm487
    %vm2139 = vmand %vm2107, %vm488
    %vm2140 = vmand %vm2108, %vm489
    %vm2141 = vmand %vm2109, %vm490
    %v2142 = vsel %vm2110, 1, 0
    %v2143 = vsel %vm2111, 1, 0
    %v2144 = vsel %vm2112, 1, 0
    %v2145 = vsel %vm2113, 1, 0
    %v2146 = vsel %vm2114, 1, 0
    %v2147 = vsel %vm2115, 1, 0
    %v2148 = vsel %vm2116, 1, 0
    %v2149 = vsel %vm2117, 1, 0
    %v2150 = vsel %vm2118, 1, 0
    %v2151 = vsel %vm2119, 1, 0
    %v2152 = vsel %vm2120, 1, 0
    %v2153 = vsel %vm2121, 1, 0
    %v2154 = vsel %vm2122, 1, 0
    %v2155 = vsel %vm2123, 1, 0
    %v2156 = vsel %vm2124, 1, 0
    %v2157 = vsel %vm2125, 1, 0
    %v2158 = vsel %vm2126, 1, 0
    %v2159 = vsel %vm2127, 1, 0
    %v2160 = vsel %vm2128, 1, 0
    %v2161 = vsel %vm2129, 1, 0
    %v2162 = vsel %vm2130, 1, 0
    %v2163 = vsel %vm2131, 1, 0
    %v2164 = vsel %vm2132, 1, 0
    %v2165 = vsel %vm2133, 1, 0
    %v2166 = vsel %vm2134, 1, 0
    %v2167 = vsel %vm2135, 1, 0
    %v2168 = vsel %vm2136, 1, 0
    %v2169 = vsel %vm2137, 1, 0
    %v2170 = vsel %vm2138, 1, 0
    %v2171 = vsel %vm2139, 1, 0
    %v2172 = vsel %vm2140, 1, 0
    %v2173 = vsel %vm2141, 1, 0
    %vm2174 = vcmp.eq.s32.totalorder %v2142, 1
    %vm2175 = vcmp.eq.s32.totalorder %v2143, 1
    %vm2176 = vcmp.eq.s32.totalorder %v2144, 1
    %vm2177 = vcmp.eq.s32.totalorder %v2145, 1
    %vm2178 = vcmp.eq.s32.totalorder %v2146, 1
    %vm2179 = vcmp.eq.s32.totalorder %v2147, 1
    %vm2180 = vcmp.eq.s32.totalorder %v2148, 1
    %vm2181 = vcmp.eq.s32.totalorder %v2149, 1
    %vm2182 = vcmp.eq.s32.totalorder %v2150, 1
    %vm2183 = vcmp.eq.s32.totalorder %v2151, 1
    %vm2184 = vcmp.eq.s32.totalorder %v2152, 1
    %vm2185 = vcmp.eq.s32.totalorder %v2153, 1
    %vm2186 = vcmp.eq.s32.totalorder %v2154, 1
    %vm2187 = vcmp.eq.s32.totalorder %v2155, 1
    %vm2188 = vcmp.eq.s32.totalorder %v2156, 1
    %vm2189 = vcmp.eq.s32.totalorder %v2157, 1
    %vm2190 = vcmp.eq.s32.totalorder %v2158, 1
    %vm2191 = vcmp.eq.s32.totalorder %v2159, 1
    %vm2192 = vcmp.eq.s32.totalorder %v2160, 1
    %vm2193 = vcmp.eq.s32.totalorder %v2161, 1
    %vm2194 = vcmp.eq.s32.totalorder %v2162, 1
    %vm2195 = vcmp.eq.s32.totalorder %v2163, 1
    %vm2196 = vcmp.eq.s32.totalorder %v2164, 1
    %vm2197 = vcmp.eq.s32.totalorder %v2165, 1
    %vm2198 = vcmp.eq.s32.totalorder %v2166, 1
    %vm2199 = vcmp.eq.s32.totalorder %v2167, 1
    %vm2200 = vcmp.eq.s32.totalorder %v2168, 1
    %vm2201 = vcmp.eq.s32.totalorder %v2169, 1
    %vm2202 = vcmp.eq.s32.totalorder %v2170, 1
    %vm2203 = vcmp.eq.s32.totalorder %v2171, 1
    %vm2204 = vcmp.eq.s32.totalorder %v2172, 1
    %vm2205 = vcmp.eq.s32.totalorder %v2173, 1
    %vm2206 = vmpackc.low %vm2174, %vm2174
    %vm2207 = vmpackc.low %vm2175, %vm2175
    %vm2208 = vmpackc.low %vm2176, %vm2176
    %vm2209 = vmpackc.low %vm2177, %vm2177
    %vm2210 = vmpackc.low %vm2178, %vm2178
    %vm2211 = vmpackc.low %vm2179, %vm2179
    %vm2212 = vmpackc.low %vm2180, %vm2180
    %vm2213 = vmpackc.low %vm2181, %vm2181
    %vm2214 = vmpackc.low %vm2182, %vm2182
    %vm2215 = vmpackc.low %vm2183, %vm2183
    %vm2216 = vmpackc.low %vm2184, %vm2184
    %vm2217 = vmpackc.low %vm2185, %vm2185
    %vm2218 = vmpackc.low %vm2186, %vm2186
    %vm2219 = vmpackc.low %vm2187, %vm2187
    %vm2220 = vmpackc.low %vm2188, %vm2188
    %vm2221 = vmpackc.low %vm2189, %vm2189
    %vm2222 = vmpackc.low %vm2190, %vm2190
    %vm2223 = vmpackc.low %vm2191, %vm2191
    %vm2224 = vmpackc.low %vm2192, %vm2192
    %vm2225 = vmpackc.low %vm2193, %vm2193
    %vm2226 = vmpackc.low %vm2194, %vm2194
    %vm2227 = vmpackc.low %vm2195, %vm2195
    %vm2228 = vmpackc.low %vm2196, %vm2196
    %vm2229 = vmpackc.low %vm2197, %vm2197
    %vm2230 = vmpackc.low %vm2198, %vm2198
    %vm2231 = vmpackc.low %vm2199, %vm2199
    %vm2232 = vmpackc.low %vm2200, %vm2200
    %vm2233 = vmpackc.low %vm2201, %vm2201
    %vm2234 = vmpackc.low %vm2202, %vm2202
    %vm2235 = vmpackc.low %vm2203, %vm2203
    %vm2236 = vmpackc.low %vm2204, %vm2204
    %vm2237 = vmpackc.low %vm2205, %vm2205
    %v2238 = vsel %vm2206, 65537, 0
    %v2239 = vsel %vm2207, 65537, 0
    %v2240 = vsel %vm2208, 65537, 0
    %v2241 = vsel %vm2209, 65537, 0
    %v2242 = vsel %vm2210, 65537, 0
    %v2243 = vsel %vm2211, 65537, 0
    %v2244 = vsel %vm2212, 65537, 0
    %v2245 = vsel %vm2213, 65537, 0
    %v2246 = vsel %vm2214, 65537, 0
    %v2247 = vsel %vm2215, 65537, 0
    %v2248 = vsel %vm2216, 65537, 0
    %v2249 = vsel %vm2217, 65537, 0
    %v2250 = vsel %vm2218, 65537, 0
    %v2251 = vsel %vm2219, 65537, 0
    %v2252 = vsel %vm2220, 65537, 0
    %v2253 = vsel %vm2221, 65537, 0
    %v2254 = vsel %vm2222, 65537, 0
    %v2255 = vsel %vm2223, 65537, 0
    %v2256 = vsel %vm2224, 65537, 0
    %v2257 = vsel %vm2225, 65537, 0
    %v2258 = vsel %vm2226, 65537, 0
    %v2259 = vsel %vm2227, 65537, 0
    %v2260 = vsel %vm2228, 65537, 0
    %v2261 = vsel %vm2229, 65537, 0
    %v2262 = vsel %vm2230, 65537, 0
    %v2263 = vsel %vm2231, 65537, 0
    %v2264 = vsel %vm2232, 65537, 0
    %v2265 = vsel %vm2233, 65537, 0
    %v2266 = vsel %vm2234, 65537, 0
    %v2267 = vsel %vm2235, 65537, 0
    %v2268 = vsel %vm2236, 65537, 0
    %v2269 = vsel %vm2237, 65537, 0
    %v2270 = vunpack.c.l.b16 %v2238
    %v2271 = vunpack.c.l.b16 %v2239
    %v2272 = vunpack.c.l.b16 %v2240
    %v2273 = vunpack.c.l.b16 %v2241
    %v2274 = vunpack.c.l.b16 %v2242
    %v2275 = vunpack.c.l.b16 %v2243
    %v2276 = vunpack.c.l.b16 %v2244
    %v2277 = vunpack.c.l.b16 %v2245
    %v2278 = vunpack.c.l.b16 %v2246
    %v2279 = vunpack.c.l.b16 %v2247
    %v2280 = vunpack.c.l.b16 %v2248
    %v2281 = vunpack.c.l.b16 %v2249
    %v2282 = vunpack.c.l.b16 %v2250
    %v2283 = vunpack.c.l.b16 %v2251
    %v2284 = vunpack.c.l.b16 %v2252
    %v2285 = vunpack.c.l.b16 %v2253
    %v2286 = vunpack.c.l.b16 %v2254
    %v2287 = vunpack.c.l.b16 %v2255
    %v2288 = vunpack.c.l.b16 %v2256
    %v2289 = vunpack.c.l.b16 %v2257
    %v2290 = vunpack.c.l.b16 %v2258
    %v2291 = vunpack.c.l.b16 %v2259
    %v2292 = vunpack.c.l.b16 %v2260
    %v2293 = vunpack.c.l.b16 %v2261
    %v2294 = vunpack.c.l.b16 %v2262
    %v2295 = vunpack.c.l.b16 %v2263
    %v2296 = vunpack.c.l.b16 %v2264
    %v2297 = vunpack.c.l.b16 %v2265
    %v2298 = vunpack.c.l.b16 %v2266
    %v2299 = vunpack.c.l.b16 %v2267
    %v2300 = vunpack.c.l.b16 %v2268
    %v2301 = vunpack.c.l.b16 %v2269
    %v2302 = vpack.c.b16 %v2271, %v2270
    %v2303 = vpack.c.b16 %v2273, %v2272
    %v2304 = vpack.c.b16 %v2275, %v2274
    %v2305 = vpack.c.b16 %v2277, %v2276
    %v2306 = vpack.c.b16 %v2279, %v2278
    %v2307 = vpack.c.b16 %v2281, %v2280
    %v2308 = vpack.c.b16 %v2283, %v2282
    %v2309 = vpack.c.b16 %v2285, %v2284
    %v2310 = vpack.c.b16 %v2287, %v2286
    %v2311 = vpack.c.b16 %v2289, %v2288
    %v2312 = vpack.c.b16 %v2291, %v2290
    %v2313 = vpack.c.b16 %v2293, %v2292
    %v2314 = vpack.c.b16 %v2295, %v2294
    %v2315 = vpack.c.b16 %v2297, %v2296
    %v2316 = vpack.c.b16 %v2299, %v2298
    %v2317 = vpack.c.b16 %v2301, %v2300
    %vm2318 = vcmp.ne.s16.totalorder %v2302, 0
    %vm2319 = vcmp.ne.s16.totalorder %v2303, 0
    %vm2320 = vcmp.ne.s16.totalorder %v2304, 0
    %vm2321 = vcmp.ne.s16.totalorder %v2305, 0
    %vm2322 = vcmp.ne.s16.totalorder %v2306, 0
    %vm2323 = vcmp.ne.s16.totalorder %v2307, 0
    %vm2324 = vcmp.ne.s16.totalorder %v2308, 0
    %vm2325 = vcmp.ne.s16.totalorder %v2309, 0
    %vm2326 = vcmp.ne.s16.totalorder %v2310, 0
    %vm2327 = vcmp.ne.s16.totalorder %v2311, 0
    %vm2328 = vcmp.ne.s16.totalorder %v2312, 0
    %vm2329 = vcmp.ne.s16.totalorder %v2313, 0
    %vm2330 = vcmp.ne.s16.totalorder %v2314, 0
    %vm2331 = vcmp.ne.s16.totalorder %v2315, 0
    %vm2332 = vcmp.ne.s16.totalorder %v2316, 0
    %vm2333 = vcmp.ne.s16.totalorder %v2317, 0
    %v2334 = vsel %vm2318, %v2062, 0
    %v2335 = vsel %vm2319, %v2063, 0
    %v2336 = vsel %vm2320, %v2064, 0
    %v2337 = vsel %vm2321, %v2065, 0
    %v2338 = vsel %vm2322, %v2066, 0
    %v2339 = vsel %vm2323, %v2067, 0
    %v2340 = vsel %vm2324, %v2068, 0
    %v2341 = vsel %vm2325, %v2069, 0
    %v2342 = vsel %vm2326, %v2070, 0
    %v2343 = vsel %vm2327, %v2071, 0
    %v2344 = vsel %vm2328, %v2072, 0
    %v2345 = vsel %vm2329, %v2073, 0
    %v2346 = vsel %vm2330, %v2074, 0
    %v2347 = vsel %vm2331, %v2075, 0
    %v2348 = vsel %vm2332, %v2076, 0
    %v2349 = vsel %vm2333, %v2077, 0
    %2366 = vrot.lane.b32.xlu0 %v2334, 64
    %v2367 = vpop.permute.xlu0 %2366
    %2368 = vrot.lane.b32.xlu0 %v2335, 64
    %v2369 = vpop.permute.xlu0 %2368
    %2370 = vrot.lane.b32.xlu0 %v2336, 64
    %v2371 = vpop.permute.xlu0 %2370
    %2372 = vrot.lane.b32.xlu0 %v2337, 64
    %v2373 = vpop.permute.xlu0 %2372
    %2374 = vrot.lane.b32.xlu0 %v2338, 64
    %v2375 = vpop.permute.xlu0 %2374
    %2376 = vrot.lane.b32.xlu0 %v2339, 64
    %v2377 = vpop.permute.xlu0 %2376
    %2378 = vrot.lane.b32.xlu0 %v2340, 64
    %v2379 = vpop.permute.xlu0 %2378
    %2380 = vrot.lane.b32.xlu0 %v2341, 64
    %v2381 = vpop.permute.xlu0 %2380
    %2382 = vrot.lane.b32.xlu0 %v2342, 64
    %v2383 = vpop.permute.xlu0 %2382
    %2384 = vrot.lane.b32.xlu0 %v2343, 64
    %v2385 = vpop.permute.xlu0 %2384
    %2386 = vrot.lane.b32.xlu0 %v2344, 64
    %v2387 = vpop.permute.xlu0 %2386
    %2388 = vrot.lane.b32.xlu0 %v2345, 64
    %v2389 = vpop.permute.xlu0 %2388
    %2390 = vrot.lane.b32.xlu0 %v2346, 64
    %v2391 = vpop.permute.xlu0 %2390
    %2392 = vrot.lane.b32.xlu0 %v2347, 64
    %v2393 = vpop.permute.xlu0 %2392
    %2394 = vrot.lane.b32.xlu0 %v2348, 64
    %v2395 = vpop.permute.xlu0 %2394
    %2396 = vrot.lane.b32.xlu0 %v2349, 64
    %v2397 = vpop.permute.xlu0 %2396
    %2414 = vst.msk [vmem:[#allocation3 + $0x8] sm:$0xff] %vm1404, %v2367
    %2415 = vst.msk [vmem:[#allocation3 + $0x20] sm:$0xff] %vm1404, %v2369
    %2416 = vst.msk [vmem:[#allocation3 + $0x38] sm:$0xff] %vm1404, %v2371
    %2417 = vst.msk [vmem:[#allocation3 + $0x50] sm:$0xff] %vm1404, %v2373
    %2418 = vst.msk [vmem:[#allocation3 + $0x68] sm:$0xff] %vm1404, %v2375
    %2419 = vst.msk [vmem:[#allocation3 + $0x80] sm:$0xff] %vm1404, %v2377
    %2420 = vst.msk [vmem:[#allocation3 + $0x98] sm:$0xff] %vm1404, %v2379
    %2421 = vst.msk [vmem:[#allocation3 + $0xb0] sm:$0xff] %vm1404, %v2381
    %2422 = vst.msk [vmem:[#allocation3 + $0xc8] sm:$0xff] %vm1404, %v2383
    %2423 = vst.msk [vmem:[#allocation3 + $0xe0] sm:$0xff] %vm1404, %v2385
    %2424 = vst.msk [vmem:[#allocation3 + $0xf8] sm:$0xff] %vm1404, %v2387
    %2425 = vst.msk [vmem:[#allocation3 + $0x110] sm:$0xff] %vm1404, %v2389
    %2426 = vst.msk [vmem:[#allocation3 + $0x128] sm:$0xff] %vm1404, %v2391
    %2427 = vst.msk [vmem:[#allocation3 + $0x140] sm:$0xff] %vm1404, %v2393
    %2428 = vst.msk [vmem:[#allocation3 + $0x158] sm:$0xff] %vm1404, %v2395
    %2429 = vst.msk [vmem:[#allocation3 + $0x170] sm:$0xff] %vm1404, %v2397
    %v2430 = vld [vmem:[#allocation2 + $0x48] sm:$0xff]
    %v2431 = vld [vmem:[#allocation2 + $0x50] sm:$0xff]
    %v2432 = vld [vmem:[#allocation2 + $0x58] sm:$0xff]
    %v2433 = vld [vmem:[#allocation2 + $0x60] sm:$0xff]
    %v2434 = vld [vmem:[#allocation2 + $0x68] sm:$0xff]
    %v2435 = vld [vmem:[#allocation2 + $0x70] sm:$0xff]
    %v2436 = vld [vmem:[#allocation2 + $0x78] sm:$0xff]
    %v2437 = vld [vmem:[#allocation2 + $0x80] sm:$0xff]
    %v2438 = vld [vmem:[#allocation2 + $0x88] sm:$0xff]
    %v2439 = vld [vmem:[#allocation2 + $0x90] sm:$0xff]
    %v2440 = vld [vmem:[#allocation2 + $0x98] sm:$0xff]
    %v2441 = vld [vmem:[#allocation2 + $0xa0] sm:$0xff]
    %v2442 = vld [vmem:[#allocation2 + $0xa8] sm:$0xff]
    %v2443 = vld [vmem:[#allocation2 + $0xb0] sm:$0xff]
    %v2444 = vld [vmem:[#allocation2 + $0xb8] sm:$0xff]
    %v2445 = vld [vmem:[#allocation2 + $0xc0] sm:$0xff]
    %v2446 = vsel %vm2078, 1, 0
    %v2447 = vsel %vm2079, 1, 0
    %v2448 = vsel %vm2080, 1, 0
    %v2449 = vsel %vm2081, 1, 0
    %v2450 = vsel %vm2082, 1, 0
    %v2451 = vsel %vm2083, 1, 0
    %v2452 = vsel %vm2084, 1, 0
    %v2453 = vsel %vm2085, 1, 0
    %v2454 = vsel %vm2086, 1, 0
    %v2455 = vsel %vm2087, 1, 0
    %v2456 = vsel %vm2088, 1, 0
    %v2457 = vsel %vm2089, 1, 0
    %v2458 = vsel %vm2090, 1, 0
    %v2459 = vsel %vm2091, 1, 0
    %v2460 = vsel %vm2092, 1, 0
    %v2461 = vsel %vm2093, 1, 0
    %v2462 = vsel %vm2094, 1, 0
    %v2463 = vsel %vm2095, 1, 0
    %v2464 = vsel %vm2096, 1, 0
    %v2465 = vsel %vm2097, 1, 0
    %v2466 = vsel %vm2098, 1, 0
    %v2467 = vsel %vm2099, 1, 0
    %v2468 = vsel %vm2100, 1, 0
    %v2469 = vsel %vm2101, 1, 0
    %v2470 = vsel %vm2102, 1, 0
    %v2471 = vsel %vm2103, 1, 0
    %v2472 = vsel %vm2104, 1, 0
    %v2473 = vsel %vm2105, 1, 0
    %v2474 = vsel %vm2106, 1, 0
    %v2475 = vsel %vm2107, 1, 0
    %v2476 = vsel %vm2108, 1, 0
    %v2477 = vsel %vm2109, 1, 0
    %vm2478 = vcmp.eq.s32.totalorder %v2446, 1
    %vm2479 = vcmp.eq.s32.totalorder %v2447, 1
    %vm2480 = vcmp.eq.s32.totalorder %v2448, 1
    %vm2481 = vcmp.eq.s32.totalorder %v2449, 1
    %vm2482 = vcmp.eq.s32.totalorder %v2450, 1
    %vm2483 = vcmp.eq.s32.totalorder %v2451, 1
    %vm2484 = vcmp.eq.s32.totalorder %v2452, 1
    %vm2485 = vcmp.eq.s32.totalorder %v2453, 1
    %vm2486 = vcmp.eq.s32.totalorder %v2454, 1
    %vm2487 = vcmp.eq.s32.totalorder %v2455, 1
    %vm2488 = vcmp.eq.s32.totalorder %v2456, 1
    %vm2489 = vcmp.eq.s32.totalorder %v2457, 1
    %vm2490 = vcmp.eq.s32.totalorder %v2458, 1
    %vm2491 = vcmp.eq.s32.totalorder %v2459, 1
    %vm2492 = vcmp.eq.s32.totalorder %v2460, 1
    %vm2493 = vcmp.eq.s32.totalorder %v2461, 1
    %vm2494 = vcmp.eq.s32.totalorder %v2462, 1
    %vm2495 = vcmp.eq.s32.totalorder %v2463, 1
    %vm2496 = vcmp.eq.s32.totalorder %v2464, 1
    %vm2497 = vcmp.eq.s32.totalorder %v2465, 1
    %vm2498 = vcmp.eq.s32.totalorder %v2466, 1
    %vm2499 = vcmp.eq.s32.totalorder %v2467, 1
    %vm2500 = vcmp.eq.s32.totalorder %v2468, 1
    %vm2501 = vcmp.eq.s32.totalorder %v2469, 1
    %vm2502 = vcmp.eq.s32.totalorder %v2470, 1
    %vm2503 = vcmp.eq.s32.totalorder %v2471, 1
    %vm2504 = vcmp.eq.s32.totalorder %v2472, 1
    %vm2505 = vcmp.eq.s32.totalorder %v2473, 1
    %vm2506 = vcmp.eq.s32.totalorder %v2474, 1
    %vm2507 = vcmp.eq.s32.totalorder %v2475, 1
    %vm2508 = vcmp.eq.s32.totalorder %v2476, 1
    %vm2509 = vcmp.eq.s32.totalorder %v2477, 1
    %vm2510 = vmpackc.low %vm2478, %vm2478
    %vm2511 = vmpackc.low %vm2479, %vm2479
    %vm2512 = vmpackc.low %vm2480, %vm2480
    %vm2513 = vmpackc.low %vm2481, %vm2481
    %vm2514 = vmpackc.low %vm2482, %vm2482
    %vm2515 = vmpackc.low %vm2483, %vm2483
    %vm2516 = vmpackc.low %vm2484, %vm2484
    %vm2517 = vmpackc.low %vm2485, %vm2485
    %vm2518 = vmpackc.low %vm2486, %vm2486
    %vm2519 = vmpackc.low %vm2487, %vm2487
    %vm2520 = vmpackc.low %vm2488, %vm2488
    %vm2521 = vmpackc.low %vm2489, %vm2489
    %vm2522 = vmpackc.low %vm2490, %vm2490
    %vm2523 = vmpackc.low %vm2491, %vm2491
    %vm2524 = vmpackc.low %vm2492, %vm2492
    %vm2525 = vmpackc.low %vm2493, %vm2493
    %vm2526 = vmpackc.low %vm2494, %vm2494
    %vm2527 = vmpackc.low %vm2495, %vm2495
    %vm2528 = vmpackc.low %vm2496, %vm2496
    %vm2529 = vmpackc.low %vm2497, %vm2497
    %vm2530 = vmpackc.low %vm2498, %vm2498
    %vm2531 = vmpackc.low %vm2499, %vm2499
    %vm2532 = vmpackc.low %vm2500, %vm2500
    %vm2533 = vmpackc.low %vm2501, %vm2501
    %vm2534 = vmpackc.low %vm2502, %vm2502
    %vm2535 = vmpackc.low %vm2503, %vm2503
    %vm2536 = vmpackc.low %vm2504, %vm2504
    %vm2537 = vmpackc.low %vm2505, %vm2505
    %vm2538 = vmpackc.low %vm2506, %vm2506
    %vm2539 = vmpackc.low %vm2507, %vm2507
    %vm2540 = vmpackc.low %vm2508, %vm2508
    %vm2541 = vmpackc.low %vm2509, %vm2509
    %v2542 = vsel %vm2510, 65537, 0
    %v2543 = vsel %vm2511, 65537, 0
    %v2544 = vsel %vm2512, 65537, 0
    %v2545 = vsel %vm2513, 65537, 0
    %v2546 = vsel %vm2514, 65537, 0
    %v2547 = vsel %vm2515, 65537, 0
    %v2548 = vsel %vm2516, 65537, 0
    %v2549 = vsel %vm2517, 65537, 0
    %v2550 = vsel %vm2518, 65537, 0
    %v2551 = vsel %vm2519, 65537, 0
    %v2552 = vsel %vm2520, 65537, 0
    %v2553 = vsel %vm2521, 65537, 0
    %v2554 = vsel %vm2522, 65537, 0
    %v2555 = vsel %vm2523, 65537, 0
    %v2556 = vsel %vm2524, 65537, 0
    %v2557 = vsel %vm2525, 65537, 0
    %v2558 = vsel %vm2526, 65537, 0
    %v2559 = vsel %vm2527, 65537, 0
    %v2560 = vsel %vm2528, 65537, 0
    %v2561 = vsel %vm2529, 65537, 0
    %v2562 = vsel %vm2530, 65537, 0
    %v2563 = vsel %vm2531, 65537, 0
    %v2564 = vsel %vm2532, 65537, 0
    %v2565 = vsel %vm2533, 65537, 0
    %v2566 = vsel %vm2534, 65537, 0
    %v2567 = vsel %vm2535, 65537, 0
    %v2568 = vsel %vm2536, 65537, 0
    %v2569 = vsel %vm2537, 65537, 0
    %v2570 = vsel %vm2538, 65537, 0
    %v2571 = vsel %vm2539, 65537, 0
    %v2572 = vsel %vm2540, 65537, 0
    %v2573 = vsel %vm2541, 65537, 0
    %v2574 = vunpack.c.l.b16 %v2542
    %v2575 = vunpack.c.l.b16 %v2543
    %v2576 = vunpack.c.l.b16 %v2544
    %v2577 = vunpack.c.l.b16 %v2545
    %v2578 = vunpack.c.l.b16 %v2546
    %v2579 = vunpack.c.l.b16 %v2547
    %v2580 = vunpack.c.l.b16 %v2548
    %v2581 = vunpack.c.l.b16 %v2549
    %v2582 = vunpack.c.l.b16 %v2550
    %v2583 = vunpack.c.l.b16 %v2551
    %v2584 = vunpack.c.l.b16 %v2552
    %v2585 = vunpack.c.l.b16 %v2553
    %v2586 = vunpack.c.l.b16 %v2554
    %v2587 = vunpack.c.l.b16 %v2555
    %v2588 = vunpack.c.l.b16 %v2556
    %v2589 = vunpack.c.l.b16 %v2557
    %v2590 = vunpack.c.l.b16 %v2558
    %v2591 = vunpack.c.l.b16 %v2559
    %v2592 = vunpack.c.l.b16 %v2560
    %v2593 = vunpack.c.l.b16 %v2561
    %v2594 = vunpack.c.l.b16 %v2562
    %v2595 = vunpack.c.l.b16 %v2563
    %v2596 = vunpack.c.l.b16 %v2564
    %v2597 = vunpack.c.l.b16 %v2565
    %v2598 = vunpack.c.l.b16 %v2566
    %v2599 = vunpack.c.l.b16 %v2567
    %v2600 = vunpack.c.l.b16 %v2568
    %v2601 = vunpack.c.l.b16 %v2569
    %v2602 = vunpack.c.l.b16 %v2570
    %v2603 = vunpack.c.l.b16 %v2571
    %v2604 = vunpack.c.l.b16 %v2572
    %v2605 = vunpack.c.l.b16 %v2573
    %v2606 = vpack.c.b16 %v2575, %v2574
    %v2607 = vpack.c.b16 %v2577, %v2576
    %v2608 = vpack.c.b16 %v2579, %v2578
    %v2609 = vpack.c.b16 %v2581, %v2580
    %v2610 = vpack.c.b16 %v2583, %v2582
    %v2611 = vpack.c.b16 %v2585, %v2584
    %v2612 = vpack.c.b16 %v2587, %v2586
    %v2613 = vpack.c.b16 %v2589, %v2588
    %v2614 = vpack.c.b16 %v2591, %v2590
    %v2615 = vpack.c.b16 %v2593, %v2592
    %v2616 = vpack.c.b16 %v2595, %v2594
    %v2617 = vpack.c.b16 %v2597, %v2596
    %v2618 = vpack.c.b16 %v2599, %v2598
    %v2619 = vpack.c.b16 %v2601, %v2600
    %v2620 = vpack.c.b16 %v2603, %v2602
    %v2621 = vpack.c.b16 %v2605, %v2604
    %vm2622 = vcmp.ne.s16.totalorder %v2606, 0
    %vm2623 = vcmp.ne.s16.totalorder %v2607, 0
    %vm2624 = vcmp.ne.s16.totalorder %v2608, 0
    %vm2625 = vcmp.ne.s16.totalorder %v2609, 0
    %vm2626 = vcmp.ne.s16.totalorder %v2610, 0
    %vm2627 = vcmp.ne.s16.totalorder %v2611, 0
    %vm2628 = vcmp.ne.s16.totalorder %v2612, 0
    %vm2629 = vcmp.ne.s16.totalorder %v2613, 0
    %vm2630 = vcmp.ne.s16.totalorder %v2614, 0
    %vm2631 = vcmp.ne.s16.totalorder %v2615, 0
    %vm2632 = vcmp.ne.s16.totalorder %v2616, 0
    %vm2633 = vcmp.ne.s16.totalorder %v2617, 0
    %vm2634 = vcmp.ne.s16.totalorder %v2618, 0
    %vm2635 = vcmp.ne.s16.totalorder %v2619, 0
    %vm2636 = vcmp.ne.s16.totalorder %v2620, 0
    %vm2637 = vcmp.ne.s16.totalorder %v2621, 0
    %v2638 = vsel %vm2622, %v2430, 0
    %v2639 = vsel %vm2623, %v2431, 0
    %v2640 = vsel %vm2624, %v2432, 0
    %v2641 = vsel %vm2625, %v2433, 0
    %v2642 = vsel %vm2626, %v2434, 0
    %v2643 = vsel %vm2627, %v2435, 0
    %v2644 = vsel %vm2628, %v2436, 0
    %v2645 = vsel %vm2629, %v2437, 0
    %v2646 = vsel %vm2630, %v2438, 0
    %v2647 = vsel %vm2631, %v2439, 0
    %v2648 = vsel %vm2632, %v2440, 0
    %v2649 = vsel %vm2633, %v2441, 0
    %v2650 = vsel %vm2634, %v2442, 0
    %v2651 = vsel %vm2635, %v2443, 0
    %v2652 = vsel %vm2636, %v2444, 0
    %v2653 = vsel %vm2637, %v2445, 0
    %2670 = vrot.lane.b32.xlu0 %v2638, 96
    %v2671 = vpop.permute.xlu0 %2670
    %2672 = vrot.lane.b32.xlu0 %v2639, 96
    %v2673 = vpop.permute.xlu0 %2672
    %2674 = vrot.lane.b32.xlu0 %v2640, 96
    %v2675 = vpop.permute.xlu0 %2674
    %2676 = vrot.lane.b32.xlu0 %v2641, 96
    %v2677 = vpop.permute.xlu0 %2676
    %2678 = vrot.lane.b32.xlu0 %v2642, 96
    %v2679 = vpop.permute.xlu0 %2678
    %2680 = vrot.lane.b32.xlu0 %v2643, 96
    %v2681 = vpop.permute.xlu0 %2680
    %2682 = vrot.lane.b32.xlu0 %v2644, 96
    %v2683 = vpop.permute.xlu0 %2682
    %2684 = vrot.lane.b32.xlu0 %v2645, 96
    %v2685 = vpop.permute.xlu0 %2684
    %2686 = vrot.lane.b32.xlu0 %v2646, 96
    %v2687 = vpop.permute.xlu0 %2686
    %2688 = vrot.lane.b32.xlu0 %v2647, 96
    %v2689 = vpop.permute.xlu0 %2688
    %2690 = vrot.lane.b32.xlu0 %v2648, 96
    %v2691 = vpop.permute.xlu0 %2690
    %2692 = vrot.lane.b32.xlu0 %v2649, 96
    %v2693 = vpop.permute.xlu0 %2692
    %2694 = vrot.lane.b32.xlu0 %v2650, 96
    %v2695 = vpop.permute.xlu0 %2694
    %2696 = vrot.lane.b32.xlu0 %v2651, 96
    %v2697 = vpop.permute.xlu0 %2696
    %2698 = vrot.lane.b32.xlu0 %v2652, 96
    %v2699 = vpop.permute.xlu0 %2698
    %2700 = vrot.lane.b32.xlu0 %v2653, 96
    %v2701 = vpop.permute.xlu0 %2700
    %2718 = vst.msk [vmem:[#allocation3 + $0x8] sm:$0xff] %vm1709, %v2671
    %2719 = vst.msk [vmem:[#allocation3 + $0x20] sm:$0xff] %vm1709, %v2673
    %2720 = vst.msk [vmem:[#allocation3 + $0x38] sm:$0xff] %vm1709, %v2675
    %2721 = vst.msk [vmem:[#allocation3 + $0x50] sm:$0xff] %vm1709, %v2677
    %2722 = vst.msk [vmem:[#allocation3 + $0x68] sm:$0xff] %vm1709, %v2679
    %2723 = vst.msk [vmem:[#allocation3 + $0x80] sm:$0xff] %vm1709, %v2681
    %2724 = vst.msk [vmem:[#allocation3 + $0x98] sm:$0xff] %vm1709, %v2683
    %2725 = vst.msk [vmem:[#allocation3 + $0xb0] sm:$0xff] %vm1709, %v2685
    %2726 = vst.msk [vmem:[#allocation3 + $0xc8] sm:$0xff] %vm1709, %v2687
    %2727 = vst.msk [vmem:[#allocation3 + $0xe0] sm:$0xff] %vm1709, %v2689
    %2728 = vst.msk [vmem:[#allocation3 + $0xf8] sm:$0xff] %vm1709, %v2691
    %2729 = vst.msk [vmem:[#allocation3 + $0x110] sm:$0xff] %vm1709, %v2693
    %2730 = vst.msk [vmem:[#allocation3 + $0x128] sm:$0xff] %vm1709, %v2695
    %2731 = vst.msk [vmem:[#allocation3 + $0x140] sm:$0xff] %vm1709, %v2697
    %2732 = vst.msk [vmem:[#allocation3 + $0x158] sm:$0xff] %vm1709, %v2699
    %2733 = vst.msk [vmem:[#allocation3 + $0x170] sm:$0xff] %vm1709, %v2701
    %v2734 = vld [vmem:[#allocation2 + $0x50] sm:$0xff]
    %v2735 = vld [vmem:[#allocation2 + $0x58] sm:$0xff]
    %v2736 = vld [vmem:[#allocation2 + $0x60] sm:$0xff]
    %v2737 = vld [vmem:[#allocation2 + $0x68] sm:$0xff]
    %v2738 = vld [vmem:[#allocation2 + $0x70] sm:$0xff]
    %v2739 = vld [vmem:[#allocation2 + $0x78] sm:$0xff]
    %v2740 = vld [vmem:[#allocation2 + $0x80] sm:$0xff]
    %v2741 = vld [vmem:[#allocation2 + $0x88] sm:$0xff]
    %v2742 = vld [vmem:[#allocation2 + $0x90] sm:$0xff]
    %v2743 = vld [vmem:[#allocation2 + $0x98] sm:$0xff]
    %v2744 = vld [vmem:[#allocation2 + $0xa0] sm:$0xff]
    %v2745 = vld [vmem:[#allocation2 + $0xa8] sm:$0xff]
    %v2746 = vld [vmem:[#allocation2 + $0xb0] sm:$0xff]
    %v2747 = vld [vmem:[#allocation2 + $0xb8] sm:$0xff]
    %v2748 = vld [vmem:[#allocation2 + $0xc0] sm:$0xff]
    %v2749 = vld [vmem:[#allocation2 + $0xc8] sm:$0xff]
    %vm2750 = vmand %vm2078, %vm1068
    %vm2751 = vmand %vm2079, %vm1069
    %vm2752 = vmand %vm2080, %vm1070
    %vm2753 = vmand %vm2081, %vm1071
    %vm2754 = vmand %vm2082, %vm1072
    %vm2755 = vmand %vm2083, %vm1073
    %vm2756 = vmand %vm2084, %vm1074
    %vm2757 = vmand %vm2085, %vm1075
    %vm2758 = vmand %vm2086, %vm1076
    %vm2759 = vmand %vm2087, %vm1077
    %vm2760 = vmand %vm2088, %vm1078
    %vm2761 = vmand %vm2089, %vm1079
    %vm2762 = vmand %vm2090, %vm1080
    %vm2763 = vmand %vm2091, %vm1081
    %vm2764 = vmand %vm2092, %vm1082
    %vm2765 = vmand %vm2093, %vm1083
    %vm2766 = vmand %vm2094, %vm1084
    %vm2767 = vmand %vm2095, %vm1085
    %vm2768 = vmand %vm2096, %vm1086
    %vm2769 = vmand %vm2097, %vm1087
    %vm2770 = vmand %vm2098, %vm1088
    %vm2771 = vmand %vm2099, %vm1089
    %vm2772 = vmand %vm2100, %vm1090
    %vm2773 = vmand %vm2101, %vm1091
    %vm2774 = vmand %vm2102, %vm1092
    %vm2775 = vmand %vm2103, %vm1093
    %vm2776 = vmand %vm2104, %vm1094
    %vm2777 = vmand %vm2105, %vm1095
    %vm2778 = vmand %vm2106, %vm1096
    %vm2779 = vmand %vm2107, %vm1097
    %vm2780 = vmand %vm2108, %vm1098
    %vm2781 = vmand %vm2109, %vm1099
    %v2782 = vsel %vm2750, 1, 0
    %v2783 = vsel %vm2751, 1, 0
    %v2784 = vsel %vm2752, 1, 0
    %v2785 = vsel %vm2753, 1, 0
    %v2786 = vsel %vm2754, 1, 0
    %v2787 = vsel %vm2755, 1, 0
    %v2788 = vsel %vm2756, 1, 0
    %v2789 = vsel %vm2757, 1, 0
    %v2790 = vsel %vm2758, 1, 0
    %v2791 = vsel %vm2759, 1, 0
    %v2792 = vsel %vm2760, 1, 0
    %v2793 = vsel %vm2761, 1, 0
    %v2794 = vsel %vm2762, 1, 0
    %v2795 = vsel %vm2763, 1, 0
    %v2796 = vsel %vm2764, 1, 0
    %v2797 = vsel %vm2765, 1, 0
    %v2798 = vsel %vm2766, 1, 0
    %v2799 = vsel %vm2767, 1, 0
    %v2800 = vsel %vm2768, 1, 0
    %v2801 = vsel %vm2769, 1, 0
    %v2802 = vsel %vm2770, 1, 0
    %v2803 = vsel %vm2771, 1, 0
    %v2804 = vsel %vm2772, 1, 0
    %v2805 = vsel %vm2773, 1, 0
    %v2806 = vsel %vm2774, 1, 0
    %v2807 = vsel %vm2775, 1, 0
    %v2808 = vsel %vm2776, 1, 0
    %v2809 = vsel %vm2777, 1, 0
    %v2810 = vsel %vm2778, 1, 0
    %v2811 = vsel %vm2779, 1, 0
    %v2812 = vsel %vm2780, 1, 0
    %v2813 = vsel %vm2781, 1, 0
    %vm2814 = vcmp.eq.s32.totalorder %v2782, 1
    %vm2815 = vcmp.eq.s32.totalorder %v2783, 1
    %vm2816 = vcmp.eq.s32.totalorder %v2784, 1
    %vm2817 = vcmp.eq.s32.totalorder %v2785, 1
    %vm2818 = vcmp.eq.s32.totalorder %v2786, 1
    %vm2819 = vcmp.eq.s32.totalorder %v2787, 1
    %vm2820 = vcmp.eq.s32.totalorder %v2788, 1
    %vm2821 = vcmp.eq.s32.totalorder %v2789, 1
    %vm2822 = vcmp.eq.s32.totalorder %v2790, 1
    %vm2823 = vcmp.eq.s32.totalorder %v2791, 1
    %vm2824 = vcmp.eq.s32.totalorder %v2792, 1
    %vm2825 = vcmp.eq.s32.totalorder %v2793, 1
    %vm2826 = vcmp.eq.s32.totalorder %v2794, 1
    %vm2827 = vcmp.eq.s32.totalorder %v2795, 1
    %vm2828 = vcmp.eq.s32.totalorder %v2796, 1
    %vm2829 = vcmp.eq.s32.totalorder %v2797, 1
    %vm2830 = vcmp.eq.s32.totalorder %v2798, 1
    %vm2831 = vcmp.eq.s32.totalorder %v2799, 1
    %vm2832 = vcmp.eq.s32.totalorder %v2800, 1
    %vm2833 = vcmp.eq.s32.totalorder %v2801, 1
    %vm2834 = vcmp.eq.s32.totalorder %v2802, 1
    %vm2835 = vcmp.eq.s32.totalorder %v2803, 1
    %vm2836 = vcmp.eq.s32.totalorder %v2804, 1
    %vm2837 = vcmp.eq.s32.totalorder %v2805, 1
    %vm2838 = vcmp.eq.s32.totalorder %v2806, 1
    %vm2839 = vcmp.eq.s32.totalorder %v2807, 1
    %vm2840 = vcmp.eq.s32.totalorder %v2808, 1
    %vm2841 = vcmp.eq.s32.totalorder %v2809, 1
    %vm2842 = vcmp.eq.s32.totalorder %v2810, 1
    %vm2843 = vcmp.eq.s32.totalorder %v2811, 1
    %vm2844 = vcmp.eq.s32.totalorder %v2812, 1
    %vm2845 = vcmp.eq.s32.totalorder %v2813, 1
    %vm2846 = vmpackc.low %vm2814, %vm2814
    %vm2847 = vmpackc.low %vm2815, %vm2815
    %vm2848 = vmpackc.low %vm2816, %vm2816
    %vm2849 = vmpackc.low %vm2817, %vm2817
    %vm2850 = vmpackc.low %vm2818, %vm2818
    %vm2851 = vmpackc.low %vm2819, %vm2819
    %vm2852 = vmpackc.low %vm2820, %vm2820
    %vm2853 = vmpackc.low %vm2821, %vm2821
    %vm2854 = vmpackc.low %vm2822, %vm2822
    %vm2855 = vmpackc.low %vm2823, %vm2823
    %vm2856 = vmpackc.low %vm2824, %vm2824
    %vm2857 = vmpackc.low %vm2825, %vm2825
    %vm2858 = vmpackc.low %vm2826, %vm2826
    %vm2859 = vmpackc.low %vm2827, %vm2827
    %vm2860 = vmpackc.low %vm2828, %vm2828
    %vm2861 = vmpackc.low %vm2829, %vm2829
    %vm2862 = vmpackc.low %vm2830, %vm2830
    %vm2863 = vmpackc.low %vm2831, %vm2831
    %vm2864 = vmpackc.low %vm2832, %vm2832
    %vm2865 = vmpackc.low %vm2833, %vm2833
    %vm2866 = vmpackc.low %vm2834, %vm2834
    %vm2867 = vmpackc.low %vm2835, %vm2835
    %vm2868 = vmpackc.low %vm2836, %vm2836
    %vm2869 = vmpackc.low %vm2837, %vm2837
    %vm2870 = vmpackc.low %vm2838, %vm2838
    %vm2871 = vmpackc.low %vm2839, %vm2839
    %vm2872 = vmpackc.low %vm2840, %vm2840
    %vm2873 = vmpackc.low %vm2841, %vm2841
    %vm2874 = vmpackc.low %vm2842, %vm2842
    %vm2875 = vmpackc.low %vm2843, %vm2843
    %vm2876 = vmpackc.low %vm2844, %vm2844
    %vm2877 = vmpackc.low %vm2845, %vm2845
    %v2878 = vsel %vm2846, 65537, 0
    %v2879 = vsel %vm2847, 65537, 0
    %v2880 = vsel %vm2848, 65537, 0
    %v2881 = vsel %vm2849, 65537, 0
    %v2882 = vsel %vm2850, 65537, 0
    %v2883 = vsel %vm2851, 65537, 0
    %v2884 = vsel %vm2852, 65537, 0
    %v2885 = vsel %vm2853, 65537, 0
    %v2886 = vsel %vm2854, 65537, 0
    %v2887 = vsel %vm2855, 65537, 0
    %v2888 = vsel %vm2856, 65537, 0
    %v2889 = vsel %vm2857, 65537, 0
    %v2890 = vsel %vm2858, 65537, 0
    %v2891 = vsel %vm2859, 65537, 0
    %v2892 = vsel %vm2860, 65537, 0
    %v2893 = vsel %vm2861, 65537, 0
    %v2894 = vsel %vm2862, 65537, 0
    %v2895 = vsel %vm2863, 65537, 0
    %v2896 = vsel %vm2864, 65537, 0
    %v2897 = vsel %vm2865, 65537, 0
    %v2898 = vsel %vm2866, 65537, 0
    %v2899 = vsel %vm2867, 65537, 0
    %v2900 = vsel %vm2868, 65537, 0
    %v2901 = vsel %vm2869, 65537, 0
    %v2902 = vsel %vm2870, 65537, 0
    %v2903 = vsel %vm2871, 65537, 0
    %v2904 = vsel %vm2872, 65537, 0
    %v2905 = vsel %vm2873, 65537, 0
    %v2906 = vsel %vm2874, 65537, 0
    %v2907 = vsel %vm2875, 65537, 0
    %v2908 = vsel %vm2876, 65537, 0
    %v2909 = vsel %vm2877, 65537, 0
    %v2910 = vunpack.c.l.b16 %v2878
    %v2911 = vunpack.c.l.b16 %v2879
    %v2912 = vunpack.c.l.b16 %v2880
    %v2913 = vunpack.c.l.b16 %v2881
    %v2914 = vunpack.c.l.b16 %v2882
    %v2915 = vunpack.c.l.b16 %v2883
    %v2916 = vunpack.c.l.b16 %v2884
    %v2917 = vunpack.c.l.b16 %v2885
    %v2918 = vunpack.c.l.b16 %v2886
    %v2919 = vunpack.c.l.b16 %v2887
    %v2920 = vunpack.c.l.b16 %v2888
    %v2921 = vunpack.c.l.b16 %v2889
    %v2922 = vunpack.c.l.b16 %v2890
    %v2923 = vunpack.c.l.b16 %v2891
    %v2924 = vunpack.c.l.b16 %v2892
    %v2925 = vunpack.c.l.b16 %v2893
    %v2926 = vunpack.c.l.b16 %v2894
    %v2927 = vunpack.c.l.b16 %v2895
    %v2928 = vunpack.c.l.b16 %v2896
    %v2929 = vunpack.c.l.b16 %v2897
    %v2930 = vunpack.c.l.b16 %v2898
    %v2931 = vunpack.c.l.b16 %v2899
    %v2932 = vunpack.c.l.b16 %v2900
    %v2933 = vunpack.c.l.b16 %v2901
    %v2934 = vunpack.c.l.b16 %v2902
    %v2935 = vunpack.c.l.b16 %v2903
    %v2936 = vunpack.c.l.b16 %v2904
    %v2937 = vunpack.c.l.b16 %v2905
    %v2938 = vunpack.c.l.b16 %v2906
    %v2939 = vunpack.c.l.b16 %v2907
    %v2940 = vunpack.c.l.b16 %v2908
    %v2941 = vunpack.c.l.b16 %v2909
    %v2942 = vpack.c.b16 %v2911, %v2910
    %v2943 = vpack.c.b16 %v2913, %v2912
    %v2944 = vpack.c.b16 %v2915, %v2914
    %v2945 = vpack.c.b16 %v2917, %v2916
    %v2946 = vpack.c.b16 %v2919, %v2918
    %v2947 = vpack.c.b16 %v2921, %v2920
    %v2948 = vpack.c.b16 %v2923, %v2922
    %v2949 = vpack.c.b16 %v2925, %v2924
    %v2950 = vpack.c.b16 %v2927, %v2926
    %v2951 = vpack.c.b16 %v2929, %v2928
    %v2952 = vpack.c.b16 %v2931, %v2930
    %v2953 = vpack.c.b16 %v2933, %v2932
    %v2954 = vpack.c.b16 %v2935, %v2934
    %v2955 = vpack.c.b16 %v2937, %v2936
    %v2956 = vpack.c.b16 %v2939, %v2938
    %v2957 = vpack.c.b16 %v2941, %v2940
    %vm2958 = vcmp.ne.s16.totalorder %v2942, 0
    %vm2959 = vcmp.ne.s16.totalorder %v2943, 0
    %vm2960 = vcmp.ne.s16.totalorder %v2944, 0
    %vm2961 = vcmp.ne.s16.totalorder %v2945, 0
    %vm2962 = vcmp.ne.s16.totalorder %v2946, 0
    %vm2963 = vcmp.ne.s16.totalorder %v2947, 0
    %vm2964 = vcmp.ne.s16.totalorder %v2948, 0
    %vm2965 = vcmp.ne.s16.totalorder %v2949, 0
    %vm2966 = vcmp.ne.s16.totalorder %v2950, 0
    %vm2967 = vcmp.ne.s16.totalorder %v2951, 0
    %vm2968 = vcmp.ne.s16.totalorder %v2952, 0
    %vm2969 = vcmp.ne.s16.totalorder %v2953, 0
    %vm2970 = vcmp.ne.s16.totalorder %v2954, 0
    %vm2971 = vcmp.ne.s16.totalorder %v2955, 0
    %vm2972 = vcmp.ne.s16.totalorder %v2956, 0
    %vm2973 = vcmp.ne.s16.totalorder %v2957, 0
    %v2974 = vsel %vm2958, %v2734, 0
    %v2975 = vsel %vm2959, %v2735, 0
    %v2976 = vsel %vm2960, %v2736, 0
    %v2977 = vsel %vm2961, %v2737, 0
    %v2978 = vsel %vm2962, %v2738, 0
    %v2979 = vsel %vm2963, %v2739, 0
    %v2980 = vsel %vm2964, %v2740, 0
    %v2981 = vsel %vm2965, %v2741, 0
    %v2982 = vsel %vm2966, %v2742, 0
    %v2983 = vsel %vm2967, %v2743, 0
    %v2984 = vsel %vm2968, %v2744, 0
    %v2985 = vsel %vm2969, %v2745, 0
    %v2986 = vsel %vm2970, %v2746, 0
    %v2987 = vsel %vm2971, %v2747, 0
    %v2988 = vsel %vm2972, %v2748, 0
    %v2989 = vsel %vm2973, %v2749, 0
    %2990 = vst.msk [vmem:[#allocation3 + $0x10] sm:$0xff] %vm225, %v2974
    %2991 = vst.msk [vmem:[#allocation3 + $0x28] sm:$0xff] %vm225, %v2975
    %2992 = vst.msk [vmem:[#allocation3 + $0x40] sm:$0xff] %vm225, %v2976
    %2993 = vst.msk [vmem:[#allocation3 + $0x58] sm:$0xff] %vm225, %v2977
    %2994 = vst.msk [vmem:[#allocation3 + $0x70] sm:$0xff] %vm225, %v2978
    %2995 = vst.msk [vmem:[#allocation3 + $0x88] sm:$0xff] %vm225, %v2979
    %2996 = vst.msk [vmem:[#allocation3 + $0xa0] sm:$0xff] %vm225, %v2980
    %2997 = vst.msk [vmem:[#allocation3 + $0xb8] sm:$0xff] %vm225, %v2981
    %2998 = vst.msk [vmem:[#allocation3 + $0xd0] sm:$0xff] %vm225, %v2982
    %2999 = vst.msk [vmem:[#allocation3 + $0xe8] sm:$0xff] %vm225, %v2983
    %3000 = vst.msk [vmem:[#allocation3 + $0x100] sm:$0xff] %vm225, %v2984
    %3001 = vst.msk [vmem:[#allocation3 + $0x118] sm:$0xff] %vm225, %v2985
    %3002 = vst.msk [vmem:[#allocation3 + $0x130] sm:$0xff] %vm225, %v2986
    %3003 = vst.msk [vmem:[#allocation3 + $0x148] sm:$0xff] %vm225, %v2987
    %3004 = vst.msk [vmem:[#allocation3 + $0x160] sm:$0xff] %vm225, %v2988
    %3005 = vst.msk [vmem:[#allocation3 + $0x178] sm:$0xff] %vm225, %v2989
    %v3006 = vld [vmem:[#allocation3] sm:$0xff]
    %v3007 = vld [vmem:[#allocation3 + $0x8] sm:$0xff]
    %v3008 = vld [vmem:[#allocation3 + $0x10] sm:$0xff]
    %v3009 = vld [vmem:[#allocation3 + $0x18] sm:$0xff]
    %v3010 = vld [vmem:[#allocation3 + $0x20] sm:$0xff]
    %v3011 = vld [vmem:[#allocation3 + $0x28] sm:$0xff]
    %v3012 = vld [vmem:[#allocation3 + $0x30] sm:$0xff]
    %v3013 = vld [vmem:[#allocation3 + $0x38] sm:$0xff]
    %v3014 = vld [vmem:[#allocation3 + $0x40] sm:$0xff]
    %v3015 = vld [vmem:[#allocation3 + $0x48] sm:$0xff]
    %v3016 = vld [vmem:[#allocation3 + $0x50] sm:$0xff]
    %v3017 = vld [vmem:[#allocation3 + $0x58] sm:$0xff]
    %v3018 = vld [vmem:[#allocation3 + $0x60] sm:$0xff]
    %v3019 = vld [vmem:[#allocation3 + $0x68] sm:$0xff]
    %v3020 = vld [vmem:[#allocation3 + $0x70] sm:$0xff]
    %v3021 = vld [vmem:[#allocation3 + $0x78] sm:$0xff]
    %v3022 = vld [vmem:[#allocation3 + $0x80] sm:$0xff]
    %v3023 = vld [vmem:[#allocation3 + $0x88] sm:$0xff]
    %v3024 = vld [vmem:[#allocation3 + $0x90] sm:$0xff]
    %v3025 = vld [vmem:[#allocation3 + $0x98] sm:$0xff]
    %v3026 = vld [vmem:[#allocation3 + $0xa0] sm:$0xff]
    %v3027 = vld [vmem:[#allocation3 + $0xa8] sm:$0xff]
    %v3028 = vld [vmem:[#allocation3 + $0xb0] sm:$0xff]
    %v3029 = vld [vmem:[#allocation3 + $0xb8] sm:$0xff]
    %v3030 = vld [vmem:[#allocation3 + $0xc0] sm:$0xff]
    %v3031 = vld [vmem:[#allocation3 + $0xc8] sm:$0xff]
    %v3032 = vld [vmem:[#allocation3 + $0xd0] sm:$0xff]
    %v3033 = vld [vmem:[#allocation3 + $0xd8] sm:$0xff]
    %v3034 = vld [vmem:[#allocation3 + $0xe0] sm:$0xff]
    %v3035 = vld [vmem:[#allocation3 + $0xe8] sm:$0xff]
    %v3036 = vld [vmem:[#allocation3 + $0xf0] sm:$0xff]
    %v3037 = vld [vmem:[#allocation3 + $0xf8] sm:$0xff]
    %v3038 = vld [vmem:[#allocation3 + $0x100] sm:$0xff]
    %v3039 = vld [vmem:[#allocation3 + $0x108] sm:$0xff]
    %v3040 = vld [vmem:[#allocation3 + $0x110] sm:$0xff]
    %v3041 = vld [vmem:[#allocation3 + $0x118] sm:$0xff]
    %v3042 = vld [vmem:[#allocation3 + $0x120] sm:$0xff]
    %v3043 = vld [vmem:[#allocation3 + $0x128] sm:$0xff]
    %v3044 = vld [vmem:[#allocation3 + $0x130] sm:$0xff]
    %v3045 = vld [vmem:[#allocation3 + $0x138] sm:$0xff]
    %v3046 = vld [vmem:[#allocation3 + $0x140] sm:$0xff]
    %v3047 = vld [vmem:[#allocation3 + $0x148] sm:$0xff]
    %v3048 = vld [vmem:[#allocation3 + $0x150] sm:$0xff]
    %v3049 = vld [vmem:[#allocation3 + $0x158] sm:$0xff]
    %v3050 = vld [vmem:[#allocation3 + $0x160] sm:$0xff]
    %v3051 = vld [vmem:[#allocation3 + $0x168] sm:$0xff]
    %v3052 = vld [vmem:[#allocation3 + $0x170] sm:$0xff]
    %v3053 = vld [vmem:[#allocation3 + $0x178] sm:$0xff]
    %v3054 = vld [vmem:[#allocation4] sm:$0xf]
    %v3055 = vld [vmem:[#allocation4 + $0x4] sm:$0xf]
    %v3056 = vld [vmem:[#allocation4 + $0x8] sm:$0xf]
    %v3057 = vld [vmem:[#allocation4 + $0xc] sm:$0xf]
    %v3058 = vld [vmem:[#allocation4 + $0x10] sm:$0xf]
    %v3059 = vld [vmem:[#allocation4 + $0x14] sm:$0xf]
    %v3060 = vld [vmem:[#allocation4 + $0x18] sm:$0xf]
    %v3061 = vld [vmem:[#allocation4 + $0x1c] sm:$0xf]
    %v3062 = vld [vmem:[#allocation4 + $0x20] sm:$0xf]
    %v3063 = vld [vmem:[#allocation4 + $0x24] sm:$0xf]
    %v3064 = vld [vmem:[#allocation4 + $0x28] sm:$0xf]
    %v3065 = vld [vmem:[#allocation4 + $0x2c] sm:$0xf]
    %v3066 = vld [vmem:[#allocation4 + $0x30] sm:$0xf]
    %v3067 = vld [vmem:[#allocation4 + $0x34] sm:$0xf]
    %v3068 = vld [vmem:[#allocation4 + $0x38] sm:$0xf]
    %v3069 = vld [vmem:[#allocation4 + $0x3c] sm:$0xf]
    %v3070 = vld [vmem:[#allocation4 + $0x40] sm:$0xf]
    %v3071 = vld [vmem:[#allocation4 + $0x44] sm:$0xf]
    %v3072 = vld [vmem:[#allocation4 + $0x48] sm:$0xf]
    %v3073 = vld [vmem:[#allocation4 + $0x4c] sm:$0xf]
    %v3074 = vld [vmem:[#allocation4 + $0x50] sm:$0xf]
    %v3075 = vld [vmem:[#allocation4 + $0x54] sm:$0xf]
    %v3076 = vld [vmem:[#allocation4 + $0x58] sm:$0xf]
    %v3077 = vld [vmem:[#allocation4 + $0x5c] sm:$0xf]
    %v3078 = vld [vmem:[#allocation4 + $0x60] sm:$0xf]
    %v3079 = vld [vmem:[#allocation4 + $0x64] sm:$0xf]
    %v3080 = vld [vmem:[#allocation4 + $0x68] sm:$0xf]
    %v3081 = vld [vmem:[#allocation4 + $0x6c] sm:$0xf]
    %v3082 = vld [vmem:[#allocation4 + $0x70] sm:$0xf]
    %v3083 = vld [vmem:[#allocation4 + $0x74] sm:$0xf]
    %v3084 = vld [vmem:[#allocation4 + $0x78] sm:$0xf]
    %v3085 = vld [vmem:[#allocation4 + $0x7c] sm:$0xf]
    %v3086 = vld [vmem:[#allocation4 + $0x80] sm:$0xf]
    %v3087 = vld [vmem:[#allocation4 + $0x84] sm:$0xf]
    %v3088 = vld [vmem:[#allocation4 + $0x88] sm:$0xf]
    %v3089 = vld [vmem:[#allocation4 + $0x8c] sm:$0xf]
    %v3090 = vld [vmem:[%s4] sm:$0x1]
    %v3092 = vlaneseq
    %v3093 = vshrl.u32 %v3092, 7
    %v3094 = vsub.s32 0, %v3093
    %v3095 = vrot.slane %v3090, %v3094
    %v3133 = vunpack.c.l.b16 %v3054
    %v3134 = vunpack.c.l.b16 %v3055
    %v3135 = vunpack.c.l.b16 %v3056
    %v3136 = vunpack.c.l.b16 %v3057
    %v3137 = vunpack.c.l.b16 %v3058
    %v3138 = vunpack.c.l.b16 %v3059
    %v3139 = vunpack.c.l.b16 %v3060
    %v3140 = vunpack.c.l.b16 %v3061
    %v3141 = vunpack.c.l.b16 %v3062
    %v3142 = vunpack.c.l.b16 %v3063
    %v3143 = vunpack.c.l.b16 %v3064
    %v3144 = vunpack.c.l.b16 %v3065
    %v3145 = vunpack.c.l.b16 %v3066
    %v3146 = vunpack.c.l.b16 %v3067
    %v3147 = vunpack.c.l.b16 %v3068
    %v3148 = vunpack.c.l.b16 %v3069
    %v3149 = vunpack.c.l.b16 %v3070
    %v3150 = vunpack.c.l.b16 %v3071
    %v3151 = vunpack.c.l.b16 %v3072
    %v3152 = vunpack.c.l.b16 %v3073
    %v3153 = vunpack.c.l.b16 %v3074
    %v3154 = vunpack.c.l.b16 %v3075
    %v3155 = vunpack.c.l.b16 %v3076
    %v3156 = vunpack.c.l.b16 %v3077
    %v3157 = vunpack.c.l.b16 %v3078
    %v3158 = vunpack.c.l.b16 %v3079
    %v3159 = vunpack.c.l.b16 %v3080
    %v3160 = vunpack.c.l.b16 %v3081
    %v3161 = vunpack.c.l.b16 %v3082
    %v3162 = vunpack.c.l.b16 %v3083
    %v3163 = vunpack.c.l.b16 %v3084
    %v3164 = vunpack.c.l.b16 %v3085
    %v3165 = vunpack.c.l.b16 %v3086
    %v3166 = vunpack.c.l.b16 %v3087
    %v3167 = vunpack.c.l.b16 %v3088
    %v3168 = vunpack.c.l.b16 %v3089
    %v3169 = vpack.c.b16 %v3134, %v3133
    %v3170 = vpack.c.b16 %v3136, %v3135
    %v3171 = vpack.c.b16 %v3138, %v3137
    %v3172 = vpack.c.b16 %v3140, %v3139
    %v3173 = vpack.c.b16 %v3142, %v3141
    %v3174 = vpack.c.b16 %v3144, %v3143
    %v3175 = vpack.c.b16 %v3146, %v3145
    %v3176 = vpack.c.b16 %v3148, %v3147
    %v3177 = vpack.c.b16 %v3150, %v3149
    %v3178 = vpack.c.b16 %v3152, %v3151
    %v3179 = vpack.c.b16 %v3154, %v3153
    %v3180 = vpack.c.b16 %v3156, %v3155
    %v3181 = vpack.c.b16 %v3158, %v3157
    %v3182 = vpack.c.b16 %v3160, %v3159
    %v3183 = vpack.c.b16 %v3162, %v3161
    %v3184 = vpack.c.b16 %v3164, %v3163
    %v3185 = vpack.c.b16 %v3166, %v3165
    %v3186 = vpack.c.b16 %v3168, %v3167
    %v3206 = vsel %vm225, %v3008, 0
    %v3209 = vsel %vm225, %v3011, 0
    %v3212 = vsel %vm225, %v3014, 0
    %v3215 = vsel %vm225, %v3017, 0
    %v3218 = vsel %vm225, %v3020, 0
    %v3221 = vsel %vm225, %v3023, 0
    %v3224 = vsel %vm225, %v3026, 0
    %v3227 = vsel %vm225, %v3029, 0
    %v3230 = vsel %vm225, %v3032, 0
    %v3233 = vsel %vm225, %v3035, 0
    %v3236 = vsel %vm225, %v3038, 0
    %v3239 = vsel %vm225, %v3041, 0
    %v3242 = vsel %vm225, %v3044, 0
    %v3245 = vsel %vm225, %v3047, 0
    %v3248 = vsel %vm225, %v3050, 0
    %v3251 = vsel %vm225, %v3053, 0
    %3253 = vmatprep.subr.bf16.mxu0 0
    %3254 = vmatpush1.bf16.msra.mxu0 %v3169
    %3255 = vmatprep.subr.bf16.mxu0 0
    %3256 = vmatpush1.bf16.msra.mxu0 %v3170
    %3257 = vmatprep.subr.bf16.mxu0 0
    %3258 = vmatpush1.bf16.msra.mxu0 %v3171
    %3259 = vmatprep.subr.bf16.mxu0 0
    %3260 = vmatpush1.bf16.msra.mxu0 %v3172
    %3261 = vmatprep.subr.bf16.mxu0 0
    %3262 = vmatpush1.bf16.msra.mxu0 %v3173
    %3263 = vmatprep.subr.bf16.mxu0 0
    %3264 = vmatpush1.bf16.msra.mxu0 %v3174
    %3265 = vmatprep.subr.bf16.mxu0 0
    %3266 = vmatpush1.bf16.msra.mxu0 %v3175
    %3267 = vmatprep.subr.bf16.mxu0 0
    %3268 = vmatpush1.bf16.msra.mxu0 %v3176
    %3269 = vmatprep.subr.bf16.mxu0 0
    %3270 = vmatpush1.bf16.msra.mxu0 %v3177
    %3271 = vmatprep.subr.bf16.mxu0 0
    %3272 = vmatpush1.bf16.msra.mxu0 %v3178
    %3273 = vmatprep.subr.bf16.mxu0 0
    %3274 = vmatpush1.bf16.msra.mxu0 %v3179
    %3275 = vmatprep.subr.bf16.mxu0 0
    %3276 = vmatpush1.bf16.msra.mxu0 %v3180
    %3277 = vmatprep.subr.bf16.mxu0 0
    %3278 = vmatpush1.bf16.msra.mxu0 %v3181
    %3279 = vmatprep.subr.bf16.mxu0 0
    %3280 = vmatpush1.bf16.msra.mxu0 %v3182
    %3281 = vmatprep.subr.bf16.mxu0 0
    %3282 = vmatpush1.bf16.msra.mxu0 %v3183
    %3283 = vmatprep.subr.bf16.mxu0 0
    %3284 = vmatpush1.bf16.msra.mxu0 %v3184
    %3285 = vmatprep.mubr.bf16.mxu0 %v3007
    %3286 = vmatmul.mubr.bf16.gmra.mrb[0].mxu0 %v3006
    %v3287 = vpop.f32.mrb[0].mxu0
    %v3288 = vadd.f32 %v3095, %v3287
    %v3289 = vpop.f32.mrb[0].mxu0
    %v3290 = vpop.f32.mrb[0].mxu0
    %v3291 = vadd.f32 %v3095, %v3290
    %v3292 = vpop.f32.mrb[0].mxu0
    %3293 = vmatprep.mubr.bf16.mxu0 %v3010
    %3294 = vmatmul.mubr.bf16.gmra.mrb[0].mxu0 %v3009
    %v3295 = vpop.f32.mrb[0].mxu0
    %v3296 = vadd.f32 %v3095, %v3295
    %v3297 = vpop.f32.mrb[0].mxu0
    %v3298 = vpop.f32.mrb[0].mxu0
    %v3299 = vadd.f32 %v3095, %v3298
    %v3300 = vpop.f32.mrb[0].mxu0
    %3301 = vmatprep.mubr.bf16.mxu0 %v3013
    %3302 = vmatmul.mubr.bf16.gmra.mrb[0].mxu0 %v3012
    %v3303 = vpop.f32.mrb[0].mxu0
    %v3304 = vadd.f32 %v3095, %v3303
    %v3305 = vpop.f32.mrb[0].mxu0
    %v3306 = vpop.f32.mrb[0].mxu0
    %v3307 = vadd.f32 %v3095, %v3306
    %v3308 = vpop.f32.mrb[0].mxu0
    %3309 = vmatprep.mubr.bf16.mxu0 %v3016
    %3310 = vmatmul.mubr.bf16.gmra.mrb[0].mxu0 %v3015
    %v3311 = vpop.f32.mrb[0].mxu0
    %v3312 = vadd.f32 %v3095, %v3311
    %v3313 = vpop.f32.mrb[0].mxu0
    %v3314 = vpop.f32.mrb[0].mxu0
    %v3315 = vadd.f32 %v3095, %v3314
    %v3316 = vpop.f32.mrb[0].mxu0
    %3317 = vmatprep.mubr.bf16.mxu0 %v3019
    %3318 = vmatmul.mubr.bf16.gmra.mrb[0].mxu0 %v3018
    %v3319 = vpop.f32.mrb[0].mxu0
    %v3320 = vadd.f32 %v3095, %v3319
    %v3321 = vpop.f32.mrb[0].mxu0
    %v3322 = vpop.f32.mrb[0].mxu0
    %v3323 = vadd.f32 %v3095, %v3322
    %v3324 = vpop.f32.mrb[0].mxu0
    %3325 = vmatprep.mubr.bf16.mxu0 %v3022
    %3326 = vmatmul.mubr.bf16.gmra.mrb[0].mxu0 %v3021
    %v3327 = vpop.f32.mrb[0].mxu0
    %v3328 = vadd.f32 %v3095, %v3327
    %v3329 = vpop.f32.mrb[0].mxu0
    %v3330 = vpop.f32.mrb[0].mxu0
    %v3331 = vadd.f32 %v3095, %v3330
    %v3332 = vpop.f32.mrb[0].mxu0
    %3333 = vmatprep.mubr.bf16.mxu0 %v3025
    %3334 = vmatmul.mubr.bf16.gmra.mrb[0].mxu0 %v3024
    %v3335 = vpop.f32.mrb[0].mxu0
    %v3336 = vadd.f32 %v3095, %v3335
    %v3337 = vpop.f32.mrb[0].mxu0
    %v3338 = vpop.f32.mrb[0].mxu0
    %v3339 = vadd.f32 %v3095, %v3338
    %v3340 = vpop.f32.mrb[0].mxu0
    %3341 = vmatprep.mubr.bf16.mxu0 %v3028
    %3342 = vmatmul.mubr.bf16.gmra.mrb[0].mxu0 %v3027
    %v3343 = vpop.f32.mrb[0].mxu0
    %v3344 = vadd.f32 %v3095, %v3343
    %v3345 = vpop.f32.mrb[0].mxu0
    %v3346 = vpop.f32.mrb[0].mxu0
    %v3347 = vadd.f32 %v3095, %v3346
    %v3348 = vpop.f32.mrb[0].mxu0
    %3349 = vmatprep.mubr.bf16.mxu0 %v3031
    %3350 = vmatmul.mubr.bf16.gmra.mrb[0].mxu0 %v3030
    %v3351 = vpop.f32.mrb[0].mxu0
    %v3352 = vadd.f32 %v3095, %v3351
    %v3353 = vpop.f32.mrb[0].mxu0
    %v3354 = vpop.f32.mrb[0].mxu0
    %v3355 = vadd.f32 %v3095, %v3354
    %v3356 = vpop.f32.mrb[0].mxu0
    %3357 = vmatprep.mubr.bf16.mxu0 %v3034
    %3358 = vmatmul.mubr.bf16.gmra.mrb[0].mxu0 %v3033
    %v3359 = vpop.f32.mrb[0].mxu0
    %v3360 = vadd.f32 %v3095, %v3359
    %v3361 = vpop.f32.mrb[0].mxu0
    %v3362 = vpop.f32.mrb[0].mxu0
    %v3363 = vadd.f32 %v3095, %v3362
    %v3364 = vpop.f32.mrb[0].mxu0
    %3365 = vmatprep.mubr.bf16.mxu0 %v3037
    %3366 = vmatmul.mubr.bf16.gmra.mrb[0].mxu0 %v3036
    %v3367 = vpop.f32.mrb[0].mxu0
    %v3368 = vadd.f32 %v3095, %v3367
    %v3369 = vpop.f32.mrb[0].mxu0
    %v3370 = vpop.f32.mrb[0].mxu0
    %v3371 = vadd.f32 %v3095, %v3370
    %v3372 = vpop.f32.mrb[0].mxu0
    %3373 = vmatprep.mubr.bf16.mxu0 %v3040
    %3374 = vmatmul.mubr.bf16.gmra.mrb[0].mxu0 %v3039
    %v3375 = vpop.f32.mrb[0].mxu0
    %v3376 = vadd.f32 %v3095, %v3375
    %v3377 = vpop.f32.mrb[0].mxu0
    %v3378 = vpop.f32.mrb[0].mxu0
    %v3379 = vadd.f32 %v3095, %v3378
    %v3380 = vpop.f32.mrb[0].mxu0
    %3381 = vmatprep.mubr.bf16.mxu0 %v3043
    %3382 = vmatmul.mubr.bf16.gmra.mrb[0].mxu0 %v3042
    %v3383 = vpop.f32.mrb[0].mxu0
    %v3384 = vadd.f32 %v3095, %v3383
    %v3385 = vpop.f32.mrb[0].mxu0
    %v3386 = vpop.f32.mrb[0].mxu0
    %v3387 = vadd.f32 %v3095, %v3386
    %v3388 = vpop.f32.mrb[0].mxu0
    %3389 = vmatprep.mubr.bf16.mxu0 %v3046
    %3390 = vmatmul.mubr.bf16.gmra.mrb[0].mxu0 %v3045
    %v3391 = vpop.f32.mrb[0].mxu0
    %v3392 = vadd.f32 %v3095, %v3391
    %v3393 = vpop.f32.mrb[0].mxu0
    %v3394 = vpop.f32.mrb[0].mxu0
    %v3395 = vadd.f32 %v3095, %v3394
    %v3396 = vpop.f32.mrb[0].mxu0
    %3397 = vmatprep.mubr.bf16.mxu0 %v3049
    %3398 = vmatmul.mubr.bf16.gmra.mrb[0].mxu0 %v3048
    %v3399 = vpop.f32.mrb[0].mxu0
    %v3400 = vadd.f32 %v3095, %v3399
    %v3401 = vpop.f32.mrb[0].mxu0
    %v3402 = vpop.f32.mrb[0].mxu0
    %v3403 = vadd.f32 %v3095, %v3402
    %v3404 = vpop.f32.mrb[0].mxu0
    %3405 = vmatprep.mubr.bf16.mxu0 %v3052
    %3406 = vmatmul.mubr.bf16.gmra.mrb[0].mxu0 %v3051
    %v3407 = vpop.f32.mrb[0].mxu0
    %v3408 = vadd.f32 %v3095, %v3407
    %v3409 = vpop.f32.mrb[0].mxu0
    %v3410 = vpop.f32.mrb[0].mxu0
    %v3411 = vadd.f32 %v3095, %v3410
    %v3412 = vpop.f32.mrb[0].mxu0
    %3413 = vdwg.mxu0
    %3414 = vmatprep.subr.bf16.mxu0 0
    %3415 = vmatpush1.bf16.msra.mxu0 %v3185
    %3416 = vmatprep.subr.bf16.mxu0 0
    %3417 = vmatpush1.bf16.msra.mxu0 %v3186
    %3418 = vmatprep.subr.bf16.mxu0 0
    %3419 = vmatpush1.bf16.msra.mxu0 0
    %3420 = vmatprep.subr.bf16.mxu0 0
    %3421 = vmatpush1.bf16.msra.mxu0 0
    %3422 = vmatprep.subr.bf16.mxu0 0
    %3423 = vmatpush1.bf16.msra.mxu0 0
    %3424 = vmatprep.subr.bf16.mxu0 0
    %3425 = vmatpush1.bf16.msra.mxu0 0
    %3426 = vmatprep.subr.bf16.mxu0 0
    %3427 = vmatpush1.bf16.msra.mxu0 0
    %3428 = vmatprep.subr.bf16.mxu0 0
    %3429 = vmatpush1.bf16.msra.mxu0 0
    %3430 = vmatprep.subr.bf16.mxu0 0
    %3431 = vmatpush1.bf16.msra.mxu0 0
    %3432 = vmatprep.subr.bf16.mxu0 0
    %3433 = vmatpush1.bf16.msra.mxu0 0
    %3434 = vmatprep.subr.bf16.mxu0 0
    %3435 = vmatpush1.bf16.msra.mxu0 0
    %3436 = vmatprep.subr.bf16.mxu0 0
    %3437 = vmatpush1.bf16.msra.mxu0 0
    %3438 = vmatprep.subr.bf16.mxu0 0
    %3439 = vmatpush1.bf16.msra.mxu0 0
    %3440 = vmatprep.subr.bf16.mxu0 0
    %3441 = vmatpush1.bf16.msra.mxu0 0
    %3442 = vmatprep.subr.bf16.mxu0 0
    %3443 = vmatpush1.bf16.msra.mxu0 0
    %3444 = vmatprep.subr.bf16.mxu0 0
    %3445 = vmatpush1.bf16.msra.mxu0 0
    %3446 = vmatprep.mubr.bf16.mxu0 0
    %3447 = vmatmul.mubr.bf16.gmra.mrb[0].mxu0 %v3206
    %v3448 = vpop.f32.mrb[0].mxu0
    %v3449 = vadd.f32 %v3288, %v3448
    %v3450 = vpop.f32.mrb[0].mxu0
    %v3451 = vpop.f32.mrb[0].mxu0
    %v3452 = vadd.f32 %v3291, %v3451
    %v3453 = vpop.f32.mrb[0].mxu0
    %3454 = vmatprep.mubr.bf16.mxu0 0
    %3455 = vmatmul.mubr.bf16.gmra.mrb[0].mxu0 %v3209
    %v3456 = vpop.f32.mrb[0].mxu0
    %v3457 = vadd.f32 %v3296, %v3456
    %v3458 = vpop.f32.mrb[0].mxu0
    %v3459 = vpop.f32.mrb[0].mxu0
    %v3460 = vadd.f32 %v3299, %v3459
    %v3461 = vpop.f32.mrb[0].mxu0
    %3462 = vmatprep.mubr.bf16.mxu0 0
    %3463 = vmatmul.mubr.bf16.gmra.mrb[0].mxu0 %v3212
    %v3464 = vpop.f32.mrb[0].mxu0
    %v3465 = vadd.f32 %v3304, %v3464
    %v3466 = vpop.f32.mrb[0].mxu0
    %v3467 = vpop.f32.mrb[0].mxu0
    %v3468 = vadd.f32 %v3307, %v3467
    %v3469 = vpop.f32.mrb[0].mxu0
    %3470 = vmatprep.mubr.bf16.mxu0 0
    %3471 = vmatmul.mubr.bf16.gmra.mrb[0].mxu0 %v3215
    %v3472 = vpop.f32.mrb[0].mxu0
    %v3473 = vadd.f32 %v3312, %v3472
    %v3474 = vpop.f32.mrb[0].mxu0
    %v3475 = vpop.f32.mrb[0].mxu0
    %v3476 = vadd.f32 %v3315, %v3475
    %v3477 = vpop.f32.mrb[0].mxu0
    %3478 = vmatprep.mubr.bf16.mxu0 0
    %3479 = vmatmul.mubr.bf16.gmra.mrb[0].mxu0 %v3218
    %v3480 = vpop.f32.mrb[0].mxu0
    %v3481 = vadd.f32 %v3320, %v3480
    %v3482 = vpop.f32.mrb[0].mxu0
    %v3483 = vpop.f32.mrb[0].mxu0
    %v3484 = vadd.f32 %v3323, %v3483
    %v3485 = vpop.f32.mrb[0].mxu0
    %3486 = vmatprep.mubr.bf16.mxu0 0
    %3487 = vmatmul.mubr.bf16.gmra.mrb[0].mxu0 %v3221
    %v3488 = vpop.f32.mrb[0].mxu0
    %v3489 = vadd.f32 %v3328, %v3488
    %v3490 = vpop.f32.mrb[0].mxu0
    %v3491 = vpop.f32.mrb[0].mxu0
    %v3492 = vadd.f32 %v3331, %v3491
    %v3493 = vpop.f32.mrb[0].mxu0
    %3494 = vmatprep.mubr.bf16.mxu0 0
    %3495 = vmatmul.mubr.bf16.gmra.mrb[0].mxu0 %v3224
    %v3496 = vpop.f32.mrb[0].mxu0
    %v3497 = vadd.f32 %v3336, %v3496
    %v3498 = vpop.f32.mrb[0].mxu0
    %v3499 = vpop.f32.mrb[0].mxu0
    %v3500 = vadd.f32 %v3339, %v3499
    %v3501 = vpop.f32.mrb[0].mxu0
    %3502 = vmatprep.mubr.bf16.mxu0 0
    %3503 = vmatmul.mubr.bf16.gmra.mrb[0].mxu0 %v3227
    %v3504 = vpop.f32.mrb[0].mxu0
    %v3505 = vadd.f32 %v3344, %v3504
    %v3506 = vpop.f32.mrb[0].mxu0
    %v3507 = vpop.f32.mrb[0].mxu0
    %v3508 = vadd.f32 %v3347, %v3507
    %v3509 = vpop.f32.mrb[0].mxu0
    %3510 = vmatprep.mubr.bf16.mxu0 0
    %3511 = vmatmul.mubr.bf16.gmra.mrb[0].mxu0 %v3230
    %v3512 = vpop.f32.mrb[0].mxu0
    %v3513 = vadd.f32 %v3352, %v3512
    %v3514 = vpop.f32.mrb[0].mxu0
    %v3515 = vpop.f32.mrb[0].mxu0
    %v3516 = vadd.f32 %v3355, %v3515
    %v3517 = vpop.f32.mrb[0].mxu0
    %3518 = vmatprep.mubr.bf16.mxu0 0
    %3519 = vmatmul.mubr.bf16.gmra.mrb[0].mxu0 %v3233
    %v3520 = vpop.f32.mrb[0].mxu0
    %v3521 = vadd.f32 %v3360, %v3520
    %v3522 = vpop.f32.mrb[0].mxu0
    %v3523 = vpop.f32.mrb[0].mxu0
    %v3524 = vadd.f32 %v3363, %v3523
    %v3525 = vpop.f32.mrb[0].mxu0
    %3526 = vmatprep.mubr.bf16.mxu0 0
    %3527 = vmatmul.mubr.bf16.gmra.mrb[0].mxu0 %v3236
    %v3528 = vpop.f32.mrb[0].mxu0
    %v3529 = vadd.f32 %v3368, %v3528
    %v3530 = vpop.f32.mrb[0].mxu0
    %v3531 = vpop.f32.mrb[0].mxu0
    %v3532 = vadd.f32 %v3371, %v3531
    %v3533 = vpop.f32.mrb[0].mxu0
    %3534 = vmatprep.mubr.bf16.mxu0 0
    %3535 = vmatmul.mubr.bf16.gmra.mrb[0].mxu0 %v3239
    %v3536 = vpop.f32.mrb[0].mxu0
    %v3537 = vadd.f32 %v3376, %v3536
    %v3538 = vpop.f32.mrb[0].mxu0
    %v3539 = vpop.f32.mrb[0].mxu0
    %v3540 = vadd.f32 %v3379, %v3539
    %v3541 = vpop.f32.mrb[0].mxu0
    %3542 = vmatprep.mubr.bf16.mxu0 0
    %3543 = vmatmul.mubr.bf16.gmra.mrb[0].mxu0 %v3242
    %v3544 = vpop.f32.mrb[0].mxu0
    %v3545 = vadd.f32 %v3384, %v3544
    %v3546 = vpop.f32.mrb[0].mxu0
    %v3547 = vpop.f32.mrb[0].mxu0
    %v3548 = vadd.f32 %v3387, %v3547
    %v3549 = vpop.f32.mrb[0].mxu0
    %3550 = vmatprep.mubr.bf16.mxu0 0
    %3551 = vmatmul.mubr.bf16.gmra.mrb[0].mxu0 %v3245
    %v3552 = vpop.f32.mrb[0].mxu0
    %v3553 = vadd.f32 %v3392, %v3552
    %v3554 = vpop.f32.mrb[0].mxu0
    %v3555 = vpop.f32.mrb[0].mxu0
    %v3556 = vadd.f32 %v3395, %v3555
    %v3557 = vpop.f32.mrb[0].mxu0
    %3558 = vmatprep.mubr.bf16.mxu0 0
    %3559 = vmatmul.mubr.bf16.gmra.mrb[0].mxu0 %v3248
    %v3560 = vpop.f32.mrb[0].mxu0
    %v3561 = vadd.f32 %v3400, %v3560
    %v3562 = vpop.f32.mrb[0].mxu0
    %v3563 = vpop.f32.mrb[0].mxu0
    %v3564 = vadd.f32 %v3403, %v3563
    %v3565 = vpop.f32.mrb[0].mxu0
    %3566 = vmatprep.mubr.bf16.mxu0 0
    %3567 = vmatmul.mubr.bf16.gmra.mrb[0].mxu0 %v3251
    %v3568 = vpop.f32.mrb[0].mxu0
    %v3569 = vadd.f32 %v3408, %v3568
    %v3570 = vpop.f32.mrb[0].mxu0
    %v3571 = vpop.f32.mrb[0].mxu0
    %v3572 = vadd.f32 %v3411, %v3571
    %v3573 = vpop.f32.mrb[0].mxu0
    %3574 = vdwg.mxu0
    %v3575 = vmul.f32 %v3449, %v3449
    %v3576 = vmul.f32 %v3452, %v3452
    %v3577 = vmul.f32 %v3457, %v3457
    %v3578 = vmul.f32 %v3460, %v3460
    %v3579 = vmul.f32 %v3465, %v3465
    %v3580 = vmul.f32 %v3468, %v3468
    %v3581 = vmul.f32 %v3473, %v3473
    %v3582 = vmul.f32 %v3476, %v3476
    %v3583 = vmul.f32 %v3481, %v3481
    %v3584 = vmul.f32 %v3484, %v3484
    %v3585 = vmul.f32 %v3489, %v3489
    %v3586 = vmul.f32 %v3492, %v3492
    %v3587 = vmul.f32 %v3497, %v3497
    %v3588 = vmul.f32 %v3500, %v3500
    %v3589 = vmul.f32 %v3505, %v3505
    %v3590 = vmul.f32 %v3508, %v3508
    %v3591 = vmul.f32 %v3513, %v3513
    %v3592 = vmul.f32 %v3516, %v3516
    %v3593 = vmul.f32 %v3521, %v3521
    %v3594 = vmul.f32 %v3524, %v3524
    %v3595 = vmul.f32 %v3529, %v3529
    %v3596 = vmul.f32 %v3532, %v3532
    %v3597 = vmul.f32 %v3537, %v3537
    %v3598 = vmul.f32 %v3540, %v3540
    %v3599 = vmul.f32 %v3545, %v3545
    %v3600 = vmul.f32 %v3548, %v3548
    %v3601 = vmul.f32 %v3553, %v3553
    %v3602 = vmul.f32 %v3556, %v3556
    %v3603 = vmul.f32 %v3561, %v3561
    %v3604 = vmul.f32 %v3564, %v3564
    %v3605 = vmul.f32 %v3569, %v3569
    %v3606 = vmul.f32 %v3572, %v3572
    %v3607 = vsel %vm225, %v3575, 0.0
    %3608 = vadd.xlane.f32.xlu0 %v3607
    %v3609 = vpop.xlane.xlu0 %3608
    %v3610 = vsel %vm225, %v3576, 0.0
    %3611 = vadd.xlane.f32.xlu0 %v3610
    %v3612 = vpop.xlane.xlu0 %3611
    %v3613 = vsel %vm225, %v3577, 0.0
    %3614 = vadd.xlane.f32.xlu0 %v3613
    %v3615 = vpop.xlane.xlu0 %3614
    %v3616 = vsel %vm225, %v3578, 0.0
    %3617 = vadd.xlane.f32.xlu0 %v3616
    %v3618 = vpop.xlane.xlu0 %3617
    %v3619 = vsel %vm225, %v3579, 0.0
    %3620 = vadd.xlane.f32.xlu0 %v3619
    %v3621 = vpop.xlane.xlu0 %3620
    %v3622 = vsel %vm225, %v3580, 0.0
    %3623 = vadd.xlane.f32.xlu0 %v3622
    %v3624 = vpop.xlane.xlu0 %3623
    %v3625 = vsel %vm225, %v3581, 0.0
    %3626 = vadd.xlane.f32.xlu0 %v3625
    %v3627 = vpop.xlane.xlu0 %3626
    %v3628 = vsel %vm225, %v3582, 0.0
    %3629 = vadd.xlane.f32.xlu0 %v3628
    %v3630 = vpop.xlane.xlu0 %3629
    %v3631 = vsel %vm225, %v3583, 0.0
    %3632 = vadd.xlane.f32.xlu0 %v3631
    %v3633 = vpop.xlane.xlu0 %3632
    %v3634 = vsel %vm225, %v3584, 0.0
    %3635 = vadd.xlane.f32.xlu0 %v3634
    %v3636 = vpop.xlane.xlu0 %3635
    %v3637 = vsel %vm225, %v3585, 0.0
    %3638 = vadd.xlane.f32.xlu0 %v3637
    %v3639 = vpop.xlane.xlu0 %3638
    %v3640 = vsel %vm225, %v3586, 0.0
    %3641 = vadd.xlane.f32.xlu0 %v3640
    %v3642 = vpop.xlane.xlu0 %3641
    %v3643 = vsel %vm225, %v3587, 0.0
    %3644 = vadd.xlane.f32.xlu0 %v3643
    %v3645 = vpop.xlane.xlu0 %3644
    %v3646 = vsel %vm225, %v3588, 0.0
    %3647 = vadd.xlane.f32.xlu0 %v3646
    %v3648 = vpop.xlane.xlu0 %3647
    %v3649 = vsel %vm225, %v3589, 0.0
    %3650 = vadd.xlane.f32.xlu0 %v3649
    %v3651 = vpop.xlane.xlu0 %3650
    %v3652 = vsel %vm225, %v3590, 0.0
    %3653 = vadd.xlane.f32.xlu0 %v3652
    %v3654 = vpop.xlane.xlu0 %3653
    %v3655 = vsel %vm225, %v3591, 0.0
    %3656 = vadd.xlane.f32.xlu0 %v3655
    %v3657 = vpop.xlane.xlu0 %3656
    %v3658 = vsel %vm225, %v3592, 0.0
    %3659 = vadd.xlane.f32.xlu0 %v3658
    %v3660 = vpop.xlane.xlu0 %3659
    %v3661 = vsel %vm225, %v3593, 0.0
    %3662 = vadd.xlane.f32.xlu0 %v3661
    %v3663 = vpop.xlane.xlu0 %3662
    %v3664 = vsel %vm225, %v3594, 0.0
    %3665 = vadd.xlane.f32.xlu0 %v3664
    %v3666 = vpop.xlane.xlu0 %3665
    %v3667 = vsel %vm225, %v3595, 0.0
    %3668 = vadd.xlane.f32.xlu0 %v3667
    %v3669 = vpop.xlane.xlu0 %3668
    %v3670 = vsel %vm225, %v3596, 0.0
    %3671 = vadd.xlane.f32.xlu0 %v3670
    %v3672 = vpop.xlane.xlu0 %3671
    %v3673 = vsel %vm225, %v3597, 0.0
    %3674 = vadd.xlane.f32.xlu0 %v3673
    %v3675 = vpop.xlane.xlu0 %3674
    %v3676 = vsel %vm225, %v3598, 0.0
    %3677 = vadd.xlane.f32.xlu0 %v3676
    %v3678 = vpop.xlane.xlu0 %3677
    %v3679 = vsel %vm225, %v3599, 0.0
    %3680 = vadd.xlane.f32.xlu0 %v3679
    %v3681 = vpop.xlane.xlu0 %3680
    %v3682 = vsel %vm225, %v3600, 0.0
    %3683 = vadd.xlane.f32.xlu0 %v3682
    %v3684 = vpop.xlane.xlu0 %3683
    %v3685 = vsel %vm225, %v3601, 0.0
    %3686 = vadd.xlane.f32.xlu0 %v3685
    %v3687 = vpop.xlane.xlu0 %3686
    %v3688 = vsel %vm225, %v3602, 0.0
    %3689 = vadd.xlane.f32.xlu0 %v3688
    %v3690 = vpop.xlane.xlu0 %3689
    %v3691 = vsel %vm225, %v3603, 0.0
    %3692 = vadd.xlane.f32.xlu0 %v3691
    %v3693 = vpop.xlane.xlu0 %3692
    %v3694 = vsel %vm225, %v3604, 0.0
    %3695 = vadd.xlane.f32.xlu0 %v3694
    %v3696 = vpop.xlane.xlu0 %3695
    %v3697 = vsel %vm225, %v3605, 0.0
    %3698 = vadd.xlane.f32.xlu0 %v3697
    %v3699 = vpop.xlane.xlu0 %3698
    %v3700 = vsel %vm225, %v3606, 0.0
    %3701 = vadd.xlane.f32.xlu0 %v3700
    %v3702 = vpop.xlane.xlu0 %3701
    %v3703 = vadd.f32 %v3609, 1e-16
    %v3704 = vadd.f32 %v3612, 1e-16
    %v3705 = vadd.f32 %v3615, 1e-16
    %v3706 = vadd.f32 %v3618, 1e-16
    %v3707 = vadd.f32 %v3621, 1e-16
    %v3708 = vadd.f32 %v3624, 1e-16
    %v3709 = vadd.f32 %v3627, 1e-16
    %v3710 = vadd.f32 %v3630, 1e-16
    %v3711 = vadd.f32 %v3633, 1e-16
    %v3712 = vadd.f32 %v3636, 1e-16
    %v3713 = vadd.f32 %v3639, 1e-16
    %v3714 = vadd.f32 %v3642, 1e-16
    %v3715 = vadd.f32 %v3645, 1e-16
    %v3716 = vadd.f32 %v3648, 1e-16
    %v3717 = vadd.f32 %v3651, 1e-16
    %v3718 = vadd.f32 %v3654, 1e-16
    %v3719 = vadd.f32 %v3657, 1e-16
    %v3720 = vadd.f32 %v3660, 1e-16
    %v3721 = vadd.f32 %v3663, 1e-16
    %v3722 = vadd.f32 %v3666, 1e-16
    %v3723 = vadd.f32 %v3669, 1e-16
    %v3724 = vadd.f32 %v3672, 1e-16
    %v3725 = vadd.f32 %v3675, 1e-16
    %v3726 = vadd.f32 %v3678, 1e-16
    %v3727 = vadd.f32 %v3681, 1e-16
    %v3728 = vadd.f32 %v3684, 1e-16
    %v3729 = vadd.f32 %v3687, 1e-16
    %v3730 = vadd.f32 %v3690, 1e-16
    %v3731 = vadd.f32 %v3693, 1e-16
    %v3732 = vadd.f32 %v3696, 1e-16
    %v3733 = vadd.f32 %v3699, 1e-16
    %v3734 = vadd.f32 %v3702, 1e-16
    %v3735 = vrsqrt.pop %v3703
    %v3736 = vrsqrt.pop %v3704
    %v3737 = vrsqrt.pop %v3705
    %v3738 = vrsqrt.pop %v3706
    %v3739 = vrsqrt.pop %v3707
    %v3740 = vrsqrt.pop %v3708
    %v3741 = vrsqrt.pop %v3709
    %v3742 = vrsqrt.pop %v3710
    %v3743 = vrsqrt.pop %v3711
    %v3744 = vrsqrt.pop %v3712
    %v3745 = vrsqrt.pop %v3713
    %v3746 = vrsqrt.pop %v3714
    %v3747 = vrsqrt.pop %v3715
    %v3748 = vrsqrt.pop %v3716
    %v3749 = vrsqrt.pop %v3717
    %v3750 = vrsqrt.pop %v3718
    %v3751 = vrsqrt.pop %v3719
    %v3752 = vrsqrt.pop %v3720
    %v3753 = vrsqrt.pop %v3721
    %v3754 = vrsqrt.pop %v3722
    %v3755 = vrsqrt.pop %v3723
    %v3756 = vrsqrt.pop %v3724
    %v3757 = vrsqrt.pop %v3725
    %v3758 = vrsqrt.pop %v3726
    %v3759 = vrsqrt.pop %v3727
    %v3760 = vrsqrt.pop %v3728
    %v3761 = vrsqrt.pop %v3729
    %v3762 = vrsqrt.pop %v3730
    %v3763 = vrsqrt.pop %v3731
    %v3764 = vrsqrt.pop %v3732
    %v3765 = vrsqrt.pop %v3733
    %v3766 = vrsqrt.pop %v3734
    %v3767 = vmul.f32 %v3449, %v3735
    %v3768 = vmul.f32 %v3452, %v3736
    %v3769 = vmul.f32 %v3457, %v3737
    %v3770 = vmul.f32 %v3460, %v3738
    %v3771 = vmul.f32 %v3465, %v3739
    %v3772 = vmul.f32 %v3468, %v3740
    %v3773 = vmul.f32 %v3473, %v3741
    %v3774 = vmul.f32 %v3476, %v3742
    %v3775 = vmul.f32 %v3481, %v3743
    %v3776 = vmul.f32 %v3484, %v3744
    %v3777 = vmul.f32 %v3489, %v3745
    %v3778 = vmul.f32 %v3492, %v3746
    %v3779 = vmul.f32 %v3497, %v3747
    %v3780 = vmul.f32 %v3500, %v3748
    %v3781 = vmul.f32 %v3505, %v3749
    %v3782 = vmul.f32 %v3508, %v3750
    %v3783 = vmul.f32 %v3513, %v3751
    %v3784 = vmul.f32 %v3516, %v3752
    %v3785 = vmul.f32 %v3521, %v3753
    %v3786 = vmul.f32 %v3524, %v3754
    %v3787 = vmul.f32 %v3529, %v3755
    %v3788 = vmul.f32 %v3532, %v3756
    %v3789 = vmul.f32 %v3537, %v3757
    %v3790 = vmul.f32 %v3540, %v3758
    %v3791 = vmul.f32 %v3545, %v3759
    %v3792 = vmul.f32 %v3548, %v3760
    %v3793 = vmul.f32 %v3553, %v3761
    %v3794 = vmul.f32 %v3556, %v3762
    %v3795 = vmul.f32 %v3561, %v3763
    %v3796 = vmul.f32 %v3564, %v3764
    %v3797 = vmul.f32 %v3569, %v3765
    %v3798 = vmul.f32 %v3572, %v3766
    %vm3799 = vcmp.gt.f32.partialorder %v3767, 0.0
    %vm3800 = vcmp.gt.f32.partialorder %v3768, 0.0
    %vm3801 = vcmp.gt.f32.partialorder %v3769, 0.0
    %vm3802 = vcmp.gt.f32.partialorder %v3770, 0.0
    %vm3803 = vcmp.gt.f32.partialorder %v3771, 0.0
    %vm3804 = vcmp.gt.f32.partialorder %v3772, 0.0
    %vm3805 = vcmp.gt.f32.partialorder %v3773, 0.0
    %vm3806 = vcmp.gt.f32.partialorder %v3774, 0.0
    %vm3807 = vcmp.gt.f32.partialorder %v3775, 0.0
    %vm3808 = vcmp.gt.f32.partialorder %v3776, 0.0
    %vm3809 = vcmp.gt.f32.partialorder %v3777, 0.0
    %vm3810 = vcmp.gt.f32.partialorder %v3778, 0.0
    %vm3811 = vcmp.gt.f32.partialorder %v3779, 0.0
    %vm3812 = vcmp.gt.f32.partialorder %v3780, 0.0
    %vm3813 = vcmp.gt.f32.partialorder %v3781, 0.0
    %vm3814 = vcmp.gt.f32.partialorder %v3782, 0.0
    %vm3815 = vcmp.gt.f32.partialorder %v3783, 0.0
    %vm3816 = vcmp.gt.f32.partialorder %v3784, 0.0
    %vm3817 = vcmp.gt.f32.partialorder %v3785, 0.0
    %vm3818 = vcmp.gt.f32.partialorder %v3786, 0.0
    %vm3819 = vcmp.gt.f32.partialorder %v3787, 0.0
    %vm3820 = vcmp.gt.f32.partialorder %v3788, 0.0
    %vm3821 = vcmp.gt.f32.partialorder %v3789, 0.0
    %vm3822 = vcmp.gt.f32.partialorder %v3790, 0.0
    %vm3823 = vcmp.gt.f32.partialorder %v3791, 0.0
    %vm3824 = vcmp.gt.f32.partialorder %v3792, 0.0
    %vm3825 = vcmp.gt.f32.partialorder %v3793, 0.0
    %vm3826 = vcmp.gt.f32.partialorder %v3794, 0.0
    %vm3827 = vcmp.gt.f32.partialorder %v3795, 0.0
    %vm3828 = vcmp.gt.f32.partialorder %v3796, 0.0
    %vm3829 = vcmp.gt.f32.partialorder %v3797, 0.0
    %vm3830 = vcmp.gt.f32.partialorder %v3798, 0.0
    %v3831 = vmul.f32 %v3767, 0.2
    %v3832 = vmul.f32 %v3768, 0.2
    %v3833 = vmul.f32 %v3769, 0.2
    %v3834 = vmul.f32 %v3770, 0.2
    %v3835 = vmul.f32 %v3771, 0.2
    %v3836 = vmul.f32 %v3772, 0.2
    %v3837 = vmul.f32 %v3773, 0.2
    %v3838 = vmul.f32 %v3774, 0.2
    %v3839 = vmul.f32 %v3775, 0.2
    %v3840 = vmul.f32 %v3776, 0.2
    %v3841 = vmul.f32 %v3777, 0.2
    %v3842 = vmul.f32 %v3778, 0.2
    %v3843 = vmul.f32 %v3779, 0.2
    %v3844 = vmul.f32 %v3780, 0.2
    %v3845 = vmul.f32 %v3781, 0.2
    %v3846 = vmul.f32 %v3782, 0.2
    %v3847 = vmul.f32 %v3783, 0.2
    %v3848 = vmul.f32 %v3784, 0.2
    %v3849 = vmul.f32 %v3785, 0.2
    %v3850 = vmul.f32 %v3786, 0.2
    %v3851 = vmul.f32 %v3787, 0.2
    %v3852 = vmul.f32 %v3788, 0.2
    %v3853 = vmul.f32 %v3789, 0.2
    %v3854 = vmul.f32 %v3790, 0.2
    %v3855 = vmul.f32 %v3791, 0.2
    %v3856 = vmul.f32 %v3792, 0.2
    %v3857 = vmul.f32 %v3793, 0.2
    %v3858 = vmul.f32 %v3794, 0.2
    %v3859 = vmul.f32 %v3795, 0.2
    %v3860 = vmul.f32 %v3796, 0.2
    %v3861 = vmul.f32 %v3797, 0.2
    %v3862 = vmul.f32 %v3798, 0.2
    %v3863 = vsel %vm3799, %v3767, %v3831
    %v3864 = vsel %vm3800, %v3768, %v3832
    %v3865 = vsel %vm3801, %v3769, %v3833
    %v3866 = vsel %vm3802, %v3770, %v3834
    %v3867 = vsel %vm3803, %v3771, %v3835
    %v3868 = vsel %vm3804, %v3772, %v3836
    %v3869 = vsel %vm3805, %v3773, %v3837
    %v3870 = vsel %vm3806, %v3774, %v3838
    %v3871 = vsel %vm3807, %v3775, %v3839
    %v3872 = vsel %vm3808, %v3776, %v3840
    %v3873 = vsel %vm3809, %v3777, %v3841
    %v3874 = vsel %vm3810, %v3778, %v3842
    %v3875 = vsel %vm3811, %v3779, %v3843
    %v3876 = vsel %vm3812, %v3780, %v3844
    %v3877 = vsel %vm3813, %v3781, %v3845
    %v3878 = vsel %vm3814, %v3782, %v3846
    %v3879 = vsel %vm3815, %v3783, %v3847
    %v3880 = vsel %vm3816, %v3784, %v3848
    %v3881 = vsel %vm3817, %v3785, %v3849
    %v3882 = vsel %vm3818, %v3786, %v3850
    %v3883 = vsel %vm3819, %v3787, %v3851
    %v3884 = vsel %vm3820, %v3788, %v3852
    %v3885 = vsel %vm3821, %v3789, %v3853
    %v3886 = vsel %vm3822, %v3790, %v3854
    %v3887 = vsel %vm3823, %v3791, %v3855
    %v3888 = vsel %vm3824, %v3792, %v3856
    %v3889 = vsel %vm3825, %v3793, %v3857
    %v3890 = vsel %vm3826, %v3794, %v3858
    %v3891 = vsel %vm3827, %v3795, %v3859
    %v3892 = vsel %vm3828, %v3796, %v3860
    %v3893 = vsel %vm3829, %v3797, %v3861
    %v3894 = vsel %vm3830, %v3798, %v3862
    %v3895 = vpack.c.bf16 %v3864, %v3863
    %v3896 = vpack.c.bf16 %v3866, %v3865
    %v3897 = vpack.c.bf16 %v3868, %v3867
    %v3898 = vpack.c.bf16 %v3870, %v3869
    %v3899 = vpack.c.bf16 %v3872, %v3871
    %v3900 = vpack.c.bf16 %v3874, %v3873
    %v3901 = vpack.c.bf16 %v3876, %v3875
    %v3902 = vpack.c.bf16 %v3878, %v3877
    %v3903 = vpack.c.bf16 %v3880, %v3879
    %v3904 = vpack.c.bf16 %v3882, %v3881
    %v3905 = vpack.c.bf16 %v3884, %v3883
    %v3906 = vpack.c.bf16 %v3886, %v3885
    %v3907 = vpack.c.bf16 %v3888, %v3887
    %v3908 = vpack.c.bf16 %v3890, %v3889
    %v3909 = vpack.c.bf16 %v3892, %v3891
    %v3910 = vpack.c.bf16 %v3894, %v3893
    %v3911 = vld [vmem:[#allocation6] sm:$0xf]
    %v3912 = vld [vmem:[#allocation6 + $0x4] sm:$0xf]
    %v3913 = vld [vmem:[#allocation6 + $0x8] sm:$0xf]
    %v3914 = vld [vmem:[#allocation6 + $0xc] sm:$0xf]
    %s3915 = scalar_lea.vmem [#allocation6], 16
    %v3916 = vld [vmem:[%s3915] sm:$0xf]
    %v3917 = vld [vmem:[%s3915 + $0x4] sm:$0xf]
    %v3918 = vld [vmem:[%s3915 + $0x8] sm:$0xf]
    %v3919 = vld [vmem:[%s3915 + $0xc] sm:$0xf]
    %v3924 = vunpack.c.l.b16 %v3916
    %v3925 = vunpack.c.l.b16 %v3917
    %v3926 = vunpack.c.l.b16 %v3918
    %v3927 = vunpack.c.l.b16 %v3919
    %v3928 = vpack.c.b16 %v3925, %v3924
    %v3929 = vpack.c.b16 %v3927, %v3926
    %v3933 = vsel %vm225, %v3896, 0
    %3935 = vmatprep.subr.bf16.mxu0 0
    %3936 = vmatpush1.bf16.msra.mxu0 %v3928
    %3937 = vmatprep.subr.bf16.mxu0 0
    %3938 = vmatpush1.bf16.msra.mxu0 %v3929
    %3939 = vmatprep.subr.bf16.mxu0 0
    %3940 = vmatpush1.bf16.msra.mxu0 0
    %3941 = vmatprep.subr.bf16.mxu0 0
    %3942 = vmatpush1.bf16.msra.mxu0 0
    %3943 = vmatprep.subr.bf16.mxu0 0
    %3944 = vmatpush1.bf16.msra.mxu0 0
    %3945 = vmatprep.subr.bf16.mxu0 0
    %3946 = vmatpush1.bf16.msra.mxu0 0
    %3947 = vmatprep.subr.bf16.mxu0 0
    %3948 = vmatpush1.bf16.msra.mxu0 0
    %3949 = vmatprep.subr.bf16.mxu0 0
    %3950 = vmatpush1.bf16.msra.mxu0 0
    %3951 = vmatprep.subr.bf16.mxu0 0
    %3952 = vmatpush1.bf16.msra.mxu0 0
    %3953 = vmatprep.subr.bf16.mxu0 0
    %3954 = vmatpush1.bf16.msra.mxu0 0
    %3955 = vmatprep.subr.bf16.mxu0 0
    %3956 = vmatpush1.bf16.msra.mxu0 0
    %3957 = vmatprep.subr.bf16.mxu0 0
    %3958 = vmatpush1.bf16.msra.mxu0 0
    %3959 = vmatprep.subr.bf16.mxu0 0
    %3960 = vmatpush1.bf16.msra.mxu0 0
    %3961 = vmatprep.subr.bf16.mxu0 0
    %3962 = vmatpush1.bf16.msra.mxu0 0
    %3963 = vmatprep.subr.bf16.mxu0 0
    %3964 = vmatpush1.bf16.msra.mxu0 0
    %3965 = vmatprep.subr.bf16.mxu0 0
    %3966 = vmatpush1.bf16.msra.mxu0 0
    %3967 = vmatprep.mubr.bf16.mxu0 0
    %3968 = vmatmul.mubr.bf16.gmra.mrb[0].mxu0 %v3933
    %v3969 = vpop.f32.mrb[0].mxu0
    %v3970 = vadd.f32 0.0, %v3969
    %v3971 = vpop.f32.mrb[0].mxu0
    %v3972 = vpop.f32.mrb[0].mxu0
    %v3973 = vadd.f32 0.0, %v3972
    %v3974 = vpop.f32.mrb[0].mxu0
    %3975 = vdwg.mxu0
    %v3980 = vunpack.c.l.b16 %v3911
    %v3981 = vunpack.c.l.b16 %v3912
    %v3982 = vunpack.c.l.b16 %v3913
    %v3983 = vunpack.c.l.b16 %v3914
    %v3984 = vpack.c.b16 %v3981, %v3980
    %v3985 = vpack.c.b16 %v3983, %v3982
    %v3989 = vsel %vm225, %v3895, 0
    %3991 = vmatprep.subr.bf16.mxu0 0
    %3992 = vmatpush1.bf16.msra.mxu0 %v3984
    %3993 = vmatprep.subr.bf16.mxu0 0
    %3994 = vmatpush1.bf16.msra.mxu0 %v3985
    %3995 = vmatprep.subr.bf16.mxu0 0
    %3996 = vmatpush1.bf16.msra.mxu0 0
    %3997 = vmatprep.subr.bf16.mxu0 0
    %3998 = vmatpush1.bf16.msra.mxu0 0
    %3999 = vmatprep.subr.bf16.mxu0 0
    %4000 = vmatpush1.bf16.msra.mxu0 0
    %4001 = vmatprep.subr.bf16.mxu0 0
    %4002 = vmatpush1.bf16.msra.mxu0 0
    %4003 = vmatprep.subr.bf16.mxu0 0
    %4004 = vmatpush1.bf16.msra.mxu0 0
    %4005 = vmatprep.subr.bf16.mxu0 0
    %4006 = vmatpush1.bf16.msra.mxu0 0
    %4007 = vmatprep.subr.bf16.mxu0 0
    %4008 = vmatpush1.bf16.msra.mxu0 0
    %4009 = vmatprep.subr.bf16.mxu0 0
    %4010 = vmatpush1.bf16.msra.mxu0 0
    %4011 = vmatprep.subr.bf16.mxu0 0
    %4012 = vmatpush1.bf16.msra.mxu0 0
    %4013 = vmatprep.subr.bf16.mxu0 0
    %4014 = vmatpush1.bf16.msra.mxu0 0
    %4015 = vmatprep.subr.bf16.mxu0 0
    %4016 = vmatpush1.bf16.msra.mxu0 0
    %4017 = vmatprep.subr.bf16.mxu0 0
    %4018 = vmatpush1.bf16.msra.mxu0 0
    %4019 = vmatprep.subr.bf16.mxu0 0
    %4020 = vmatpush1.bf16.msra.mxu0 0
    %4021 = vmatprep.subr.bf16.mxu0 0
    %4022 = vmatpush1.bf16.msra.mxu0 0
    %4023 = vmatprep.mubr.bf16.mxu0 0
    %4024 = vmatmul.mubr.bf16.gmra.mrb[0].mxu0 %v3989
    %v4025 = vpop.f32.mrb[0].mxu0
    %v4026 = vadd.f32 %v3970, %v4025
    %v4027 = vpop.f32.mrb[0].mxu0
    %v4028 = vpop.f32.mrb[0].mxu0
    %v4029 = vadd.f32 %v3973, %v4028
    %v4030 = vpop.f32.mrb[0].mxu0
    %4031 = vdwg.mxu0
    %s4032 = scalar_lea.vmem [#allocation6], 32
    %v4033 = vld [vmem:[%s4032] sm:$0xf]
    %v4034 = vld [vmem:[%s4032 + $0x4] sm:$0xf]
    %v4035 = vld [vmem:[%s4032 + $0x8] sm:$0xf]
    %v4036 = vld [vmem:[%s4032 + $0xc] sm:$0xf]
    %v4041 = vunpack.c.l.b16 %v4033
    %v4042 = vunpack.c.l.b16 %v4034
    %v4043 = vunpack.c.l.b16 %v4035
    %v4044 = vunpack.c.l.b16 %v4036
    %v4045 = vpack.c.b16 %v4042, %v4041
    %v4046 = vpack.c.b16 %v4044, %v4043
    %v4050 = vsel %vm225, %v3897, 0
    %4052 = vmatprep.subr.bf16.mxu0 0
    %4053 = vmatpush1.bf16.msra.mxu0 %v4045
    %4054 = vmatprep.subr.bf16.mxu0 0
    %4055 = vmatpush1.bf16.msra.mxu0 %v4046
    %4056 = vmatprep.subr.bf16.mxu0 0
    %4057 = vmatpush1.bf16.msra.mxu0 0
    %4058 = vmatprep.subr.bf16.mxu0 0
    %4059 = vmatpush1.bf16.msra.mxu0 0
    %4060 = vmatprep.subr.bf16.mxu0 0
    %4061 = vmatpush1.bf16.msra.mxu0 0
    %4062 = vmatprep.subr.bf16.mxu0 0
    %4063 = vmatpush1.bf16.msra.mxu0 0
    %4064 = vmatprep.subr.bf16.mxu0 0
    %4065 = vmatpush1.bf16.msra.mxu0 0
    %4066 = vmatprep.subr.bf16.mxu0 0
    %4067 = vmatpush1.bf16.msra.mxu0 0
    %4068 = vmatprep.subr.bf16.mxu0 0
    %4069 = vmatpush1.bf16.msra.mxu0 0
    %4070 = vmatprep.subr.bf16.mxu0 0
    %4071 = vmatpush1.bf16.msra.mxu0 0
    %4072 = vmatprep.subr.bf16.mxu0 0
    %4073 = vmatpush1.bf16.msra.mxu0 0
    %4074 = vmatprep.subr.bf16.mxu0 0
    %4075 = vmatpush1.bf16.msra.mxu0 0
    %4076 = vmatprep.subr.bf16.mxu0 0
    %4077 = vmatpush1.bf16.msra.mxu0 0
    %4078 = vmatprep.subr.bf16.mxu0 0
    %4079 = vmatpush1.bf16.msra.mxu0 0
    %4080 = vmatprep.subr.bf16.mxu0 0
    %4081 = vmatpush1.bf16.msra.mxu0 0
    %4082 = vmatprep.subr.bf16.mxu0 0
    %4083 = vmatpush1.bf16.msra.mxu0 0
    %4084 = vmatprep.mubr.bf16.mxu0 0
    %4085 = vmatmul.mubr.bf16.gmra.mrb[0].mxu0 %v4050
    %v4086 = vpop.f32.mrb[0].mxu0
    %v4087 = vadd.f32 0.0, %v4086
    %v4088 = vpop.f32.mrb[0].mxu0
    %v4089 = vpop.f32.mrb[0].mxu0
    %v4090 = vadd.f32 0.0, %v4089
    %v4091 = vpop.f32.mrb[0].mxu0
    %4092 = vdwg.mxu0
    %v4093 = vadd.f32 %v4026, %v4087
    %v4094 = vadd.f32 %v4029, %v4090
    %s4095 = scalar_lea.vmem [#allocation6], 48
    %v4096 = vld [vmem:[%s4095] sm:$0xf]
    %v4097 = vld [vmem:[%s4095 + $0x4] sm:$0xf]
    %v4098 = vld [vmem:[%s4095 + $0x8] sm:$0xf]
    %v4099 = vld [vmem:[%s4095 + $0xc] sm:$0xf]
    %v4104 = vunpack.c.l.b16 %v4096
    %v4105 = vunpack.c.l.b16 %v4097
    %v4106 = vunpack.c.l.b16 %v4098
    %v4107 = vunpack.c.l.b16 %v4099
    %v4108 = vpack.c.b16 %v4105, %v4104
    %v4109 = vpack.c.b16 %v4107, %v4106
    %v4113 = vsel %vm225, %v3898, 0
    %4115 = vmatprep.subr.bf16.mxu0 0
    %4116 = vmatpush1.bf16.msra.mxu0 %v4108
    %4117 = vmatprep.subr.bf16.mxu0 0
    %4118 = vmatpush1.bf16.msra.mxu0 %v4109
    %4119 = vmatprep.subr.bf16.mxu0 0
    %4120 = vmatpush1.bf16.msra.mxu0 0
    %4121 = vmatprep.subr.bf16.mxu0 0
    %4122 = vmatpush1.bf16.msra.mxu0 0
    %4123 = vmatprep.subr.bf16.mxu0 0
    %4124 = vmatpush1.bf16.msra.mxu0 0
    %4125 = vmatprep.subr.bf16.mxu0 0
    %4126 = vmatpush1.bf16.msra.mxu0 0
    %4127 = vmatprep.subr.bf16.mxu0 0
    %4128 = vmatpush1.bf16.msra.mxu0 0
    %4129 = vmatprep.subr.bf16.mxu0 0
    %4130 = vmatpush1.bf16.msra.mxu0 0
    %4131 = vmatprep.subr.bf16.mxu0 0
    %4132 = vmatpush1.bf16.msra.mxu0 0
    %4133 = vmatprep.subr.bf16.mxu0 0
    %4134 = vmatpush1.bf16.msra.mxu0 0
    %4135 = vmatprep.subr.bf16.mxu0 0
    %4136 = vmatpush1.bf16.msra.mxu0 0
    %4137 = vmatprep.subr.bf16.mxu0 0
    %4138 = vmatpush1.bf16.msra.mxu0 0
    %4139 = vmatprep.subr.bf16.mxu0 0
    %4140 = vmatpush1.bf16.msra.mxu0 0
    %4141 = vmatprep.subr.bf16.mxu0 0
    %4142 = vmatpush1.bf16.msra.mxu0 0
    %4143 = vmatprep.subr.bf16.mxu0 0
    %4144 = vmatpush1.bf16.msra.mxu0 0
    %4145 = vmatprep.subr.bf16.mxu0 0
    %4146 = vmatpush1.bf16.msra.mxu0 0
    %4147 = vmatprep.mubr.bf16.mxu0 0
    %4148 = vmatmul.mubr.bf16.gmra.mrb[0].mxu0 %v4113
    %v4149 = vpop.f32.mrb[0].mxu0
    %v4150 = vadd.f32 0.0, %v4149
    %v4151 = vpop.f32.mrb[0].mxu0
    %v4152 = vpop.f32.mrb[0].mxu0
    %v4153 = vadd.f32 0.0, %v4152
    %v4154 = vpop.f32.mrb[0].mxu0
    %4155 = vdwg.mxu0
    %v4156 = vadd.f32 %v4093, %v4150
    %v4157 = vadd.f32 %v4094, %v4153
    %s4158 = scalar_lea.vmem [#allocation6], 64
    %v4159 = vld [vmem:[%s4158] sm:$0xf]
    %v4160 = vld [vmem:[%s4158 + $0x4] sm:$0xf]
    %v4161 = vld [vmem:[%s4158 + $0x8] sm:$0xf]
    %v4162 = vld [vmem:[%s4158 + $0xc] sm:$0xf]
    %v4167 = vunpack.c.l.b16 %v4159
    %v4168 = vunpack.c.l.b16 %v4160
    %v4169 = vunpack.c.l.b16 %v4161
    %v4170 = vunpack.c.l.b16 %v4162
    %v4171 = vpack.c.b16 %v4168, %v4167
    %v4172 = vpack.c.b16 %v4170, %v4169
    %v4176 = vsel %vm225, %v3899, 0
    %4178 = vmatprep.subr.bf16.mxu0 0
    %4179 = vmatpush1.bf16.msra.mxu0 %v4171
    %4180 = vmatprep.subr.bf16.mxu0 0
    %4181 = vmatpush1.bf16.msra.mxu0 %v4172
    %4182 = vmatprep.subr.bf16.mxu0 0
    %4183 = vmatpush1.bf16.msra.mxu0 0
    %4184 = vmatprep.subr.bf16.mxu0 0
    %4185 = vmatpush1.bf16.msra.mxu0 0
    %4186 = vmatprep.subr.bf16.mxu0 0
    %4187 = vmatpush1.bf16.msra.mxu0 0
    %4188 = vmatprep.subr.bf16.mxu0 0
    %4189 = vmatpush1.bf16.msra.mxu0 0
    %4190 = vmatprep.subr.bf16.mxu0 0
    %4191 = vmatpush1.bf16.msra.mxu0 0
    %4192 = vmatprep.subr.bf16.mxu0 0
    %4193 = vmatpush1.bf16.msra.mxu0 0
    %4194 = vmatprep.subr.bf16.mxu0 0
    %4195 = vmatpush1.bf16.msra.mxu0 0
    %4196 = vmatprep.subr.bf16.mxu0 0
    %4197 = vmatpush1.bf16.msra.mxu0 0
    %4198 = vmatprep.subr.bf16.mxu0 0
    %4199 = vmatpush1.bf16.msra.mxu0 0
    %4200 = vmatprep.subr.bf16.mxu0 0
    %4201 = vmatpush1.bf16.msra.mxu0 0
    %4202 = vmatprep.subr.bf16.mxu0 0
    %4203 = vmatpush1.bf16.msra.mxu0 0
    %4204 = vmatprep.subr.bf16.mxu0 0
    %4205 = vmatpush1.bf16.msra.mxu0 0
    %4206 = vmatprep.subr.bf16.mxu0 0
    %4207 = vmatpush1.bf16.msra.mxu0 0
    %4208 = vmatprep.subr.bf16.mxu0 0
    %4209 = vmatpush1.bf16.msra.mxu0 0
    %4210 = vmatprep.mubr.bf16.mxu0 0
    %4211 = vmatmul.mubr.bf16.gmra.mrb[0].mxu0 %v4176
    %v4212 = vpop.f32.mrb[0].mxu0
    %v4213 = vadd.f32 0.0, %v4212
    %v4214 = vpop.f32.mrb[0].mxu0
    %v4215 = vpop.f32.mrb[0].mxu0
    %v4216 = vadd.f32 0.0, %v4215
    %v4217 = vpop.f32.mrb[0].mxu0
    %4218 = vdwg.mxu0
    %v4219 = vadd.f32 %v4156, %v4213
    %v4220 = vadd.f32 %v4157, %v4216
    %s4221 = scalar_lea.vmem [#allocation6], 80
    %v4222 = vld [vmem:[%s4221] sm:$0xf]
    %v4223 = vld [vmem:[%s4221 + $0x4] sm:$0xf]
    %v4224 = vld [vmem:[%s4221 + $0x8] sm:$0xf]
    %v4225 = vld [vmem:[%s4221 + $0xc] sm:$0xf]
    %v4230 = vunpack.c.l.b16 %v4222
    %v4231 = vunpack.c.l.b16 %v4223
    %v4232 = vunpack.c.l.b16 %v4224
    %v4233 = vunpack.c.l.b16 %v4225
    %v4234 = vpack.c.b16 %v4231, %v4230
    %v4235 = vpack.c.b16 %v4233, %v4232
    %v4239 = vsel %vm225, %v3900, 0
    %4241 = vmatprep.subr.bf16.mxu0 0
    %4242 = vmatpush1.bf16.msra.mxu0 %v4234
    %4243 = vmatprep.subr.bf16.mxu0 0
    %4244 = vmatpush1.bf16.msra.mxu0 %v4235
    %4245 = vmatprep.subr.bf16.mxu0 0
    %4246 = vmatpush1.bf16.msra.mxu0 0
    %4247 = vmatprep.subr.bf16.mxu0 0
    %4248 = vmatpush1.bf16.msra.mxu0 0
    %4249 = vmatprep.subr.bf16.mxu0 0
    %4250 = vmatpush1.bf16.msra.mxu0 0
    %4251 = vmatprep.subr.bf16.mxu0 0
    %4252 = vmatpush1.bf16.msra.mxu0 0
    %4253 = vmatprep.subr.bf16.mxu0 0
    %4254 = vmatpush1.bf16.msra.mxu0 0
    %4255 = vmatprep.subr.bf16.mxu0 0
    %4256 = vmatpush1.bf16.msra.mxu0 0
    %4257 = vmatprep.subr.bf16.mxu0 0
    %4258 = vmatpush1.bf16.msra.mxu0 0
    %4259 = vmatprep.subr.bf16.mxu0 0
    %4260 = vmatpush1.bf16.msra.mxu0 0
    %4261 = vmatprep.subr.bf16.mxu0 0
    %4262 = vmatpush1.bf16.msra.mxu0 0
    %4263 = vmatprep.subr.bf16.mxu0 0
    %4264 = vmatpush1.bf16.msra.mxu0 0
    %4265 = vmatprep.subr.bf16.mxu0 0
    %4266 = vmatpush1.bf16.msra.mxu0 0
    %4267 = vmatprep.subr.bf16.mxu0 0
    %4268 = vmatpush1.bf16.msra.mxu0 0
    %4269 = vmatprep.subr.bf16.mxu0 0
    %4270 = vmatpush1.bf16.msra.mxu0 0
    %4271 = vmatprep.subr.bf16.mxu0 0
    %4272 = vmatpush1.bf16.msra.mxu0 0
    %4273 = vmatprep.mubr.bf16.mxu0 0
    %4274 = vmatmul.mubr.bf16.gmra.mrb[0].mxu0 %v4239
    %v4275 = vpop.f32.mrb[0].mxu0
    %v4276 = vadd.f32 0.0, %v4275
    %v4277 = vpop.f32.mrb[0].mxu0
    %v4278 = vpop.f32.mrb[0].mxu0
    %v4279 = vadd.f32 0.0, %v4278
    %v4280 = vpop.f32.mrb[0].mxu0
    %4281 = vdwg.mxu0
    %v4282 = vadd.f32 %v4219, %v4276
    %v4283 = vadd.f32 %v4220, %v4279
    %s4284 = scalar_lea.vmem [#allocation6], 96
    %v4285 = vld [vmem:[%s4284] sm:$0xf]
    %v4286 = vld [vmem:[%s4284 + $0x4] sm:$0xf]
    %v4287 = vld [vmem:[%s4284 + $0x8] sm:$0xf]
    %v4288 = vld [vmem:[%s4284 + $0xc] sm:$0xf]
    %v4293 = vunpack.c.l.b16 %v4285
    %v4294 = vunpack.c.l.b16 %v4286
    %v4295 = vunpack.c.l.b16 %v4287
    %v4296 = vunpack.c.l.b16 %v4288
    %v4297 = vpack.c.b16 %v4294, %v4293
    %v4298 = vpack.c.b16 %v4296, %v4295
    %v4302 = vsel %vm225, %v3901, 0
    %4304 = vmatprep.subr.bf16.mxu0 0
    %4305 = vmatpush1.bf16.msra.mxu0 %v4297
    %4306 = vmatprep.subr.bf16.mxu0 0
    %4307 = vmatpush1.bf16.msra.mxu0 %v4298
    %4308 = vmatprep.subr.bf16.mxu0 0
    %4309 = vmatpush1.bf16.msra.mxu0 0
    %4310 = vmatprep.subr.bf16.mxu0 0
    %4311 = vmatpush1.bf16.msra.mxu0 0
    %4312 = vmatprep.subr.bf16.mxu0 0
    %4313 = vmatpush1.bf16.msra.mxu0 0
    %4314 = vmatprep.subr.bf16.mxu0 0
    %4315 = vmatpush1.bf16.msra.mxu0 0
    %4316 = vmatprep.subr.bf16.mxu0 0
    %4317 = vmatpush1.bf16.msra.mxu0 0
    %4318 = vmatprep.subr.bf16.mxu0 0
    %4319 = vmatpush1.bf16.msra.mxu0 0
    %4320 = vmatprep.subr.bf16.mxu0 0
    %4321 = vmatpush1.bf16.msra.mxu0 0
    %4322 = vmatprep.subr.bf16.mxu0 0
    %4323 = vmatpush1.bf16.msra.mxu0 0
    %4324 = vmatprep.subr.bf16.mxu0 0
    %4325 = vmatpush1.bf16.msra.mxu0 0
    %4326 = vmatprep.subr.bf16.mxu0 0
    %4327 = vmatpush1.bf16.msra.mxu0 0
    %4328 = vmatprep.subr.bf16.mxu0 0
    %4329 = vmatpush1.bf16.msra.mxu0 0
    %4330 = vmatprep.subr.bf16.mxu0 0
    %4331 = vmatpush1.bf16.msra.mxu0 0
    %4332 = vmatprep.subr.bf16.mxu0 0
    %4333 = vmatpush1.bf16.msra.mxu0 0
    %4334 = vmatprep.subr.bf16.mxu0 0
    %4335 = vmatpush1.bf16.msra.mxu0 0
    %4336 = vmatprep.mubr.bf16.mxu0 0
    %4337 = vmatmul.mubr.bf16.gmra.mrb[0].mxu0 %v4302
    %v4338 = vpop.f32.mrb[0].mxu0
    %v4339 = vadd.f32 0.0, %v4338
    %v4340 = vpop.f32.mrb[0].mxu0
    %v4341 = vpop.f32.mrb[0].mxu0
    %v4342 = vadd.f32 0.0, %v4341
    %v4343 = vpop.f32.mrb[0].mxu0
    %4344 = vdwg.mxu0
    %v4345 = vadd.f32 %v4282, %v4339
    %v4346 = vadd.f32 %v4283, %v4342
    %s4347 = scalar_lea.vmem [#allocation6], 112
    %v4348 = vld [vmem:[%s4347] sm:$0xf]
    %v4349 = vld [vmem:[%s4347 + $0x4] sm:$0xf]
    %v4350 = vld [vmem:[%s4347 + $0x8] sm:$0xf]
    %v4351 = vld [vmem:[%s4347 + $0xc] sm:$0xf]
    %v4356 = vunpack.c.l.b16 %v4348
    %v4357 = vunpack.c.l.b16 %v4349
    %v4358 = vunpack.c.l.b16 %v4350
    %v4359 = vunpack.c.l.b16 %v4351
    %v4360 = vpack.c.b16 %v4357, %v4356
    %v4361 = vpack.c.b16 %v4359, %v4358
    %v4365 = vsel %vm225, %v3902, 0
    %4367 = vmatprep.subr.bf16.mxu0 0
    %4368 = vmatpush1.bf16.msra.mxu0 %v4360
    %4369 = vmatprep.subr.bf16.mxu0 0
    %4370 = vmatpush1.bf16.msra.mxu0 %v4361
    %4371 = vmatprep.subr.bf16.mxu0 0
    %4372 = vmatpush1.bf16.msra.mxu0 0
    %4373 = vmatprep.subr.bf16.mxu0 0
    %4374 = vmatpush1.bf16.msra.mxu0 0
    %4375 = vmatprep.subr.bf16.mxu0 0
    %4376 = vmatpush1.bf16.msra.mxu0 0
    %4377 = vmatprep.subr.bf16.mxu0 0
    %4378 = vmatpush1.bf16.msra.mxu0 0
    %4379 = vmatprep.subr.bf16.mxu0 0
    %4380 = vmatpush1.bf16.msra.mxu0 0
    %4381 = vmatprep.subr.bf16.mxu0 0
    %4382 = vmatpush1.bf16.msra.mxu0 0
    %4383 = vmatprep.subr.bf16.mxu0 0
    %4384 = vmatpush1.bf16.msra.mxu0 0
    %4385 = vmatprep.subr.bf16.mxu0 0
    %4386 = vmatpush1.bf16.msra.mxu0 0
    %4387 = vmatprep.subr.bf16.mxu0 0
    %4388 = vmatpush1.bf16.msra.mxu0 0
    %4389 = vmatprep.subr.bf16.mxu0 0
    %4390 = vmatpush1.bf16.msra.mxu0 0
    %4391 = vmatprep.subr.bf16.mxu0 0
    %4392 = vmatpush1.bf16.msra.mxu0 0
    %4393 = vmatprep.subr.bf16.mxu0 0
    %4394 = vmatpush1.bf16.msra.mxu0 0
    %4395 = vmatprep.subr.bf16.mxu0 0
    %4396 = vmatpush1.bf16.msra.mxu0 0
    %4397 = vmatprep.subr.bf16.mxu0 0
    %4398 = vmatpush1.bf16.msra.mxu0 0
    %4399 = vmatprep.mubr.bf16.mxu0 0
    %4400 = vmatmul.mubr.bf16.gmra.mrb[0].mxu0 %v4365
    %v4401 = vpop.f32.mrb[0].mxu0
    %v4402 = vadd.f32 0.0, %v4401
    %v4403 = vpop.f32.mrb[0].mxu0
    %v4404 = vpop.f32.mrb[0].mxu0
    %v4405 = vadd.f32 0.0, %v4404
    %v4406 = vpop.f32.mrb[0].mxu0
    %4407 = vdwg.mxu0
    %v4408 = vadd.f32 %v4345, %v4402
    %v4409 = vadd.f32 %v4346, %v4405
    %s4410 = scalar_lea.vmem [#allocation6], 128
    %v4411 = vld [vmem:[%s4410] sm:$0xf]
    %v4412 = vld [vmem:[%s4410 + $0x4] sm:$0xf]
    %v4413 = vld [vmem:[%s4410 + $0x8] sm:$0xf]
    %v4414 = vld [vmem:[%s4410 + $0xc] sm:$0xf]
    %v4419 = vunpack.c.l.b16 %v4411
    %v4420 = vunpack.c.l.b16 %v4412
    %v4421 = vunpack.c.l.b16 %v4413
    %v4422 = vunpack.c.l.b16 %v4414
    %v4423 = vpack.c.b16 %v4420, %v4419
    %v4424 = vpack.c.b16 %v4422, %v4421
    %v4428 = vsel %vm225, %v3903, 0
    %4430 = vmatprep.subr.bf16.mxu0 0
    %4431 = vmatpush1.bf16.msra.mxu0 %v4423
    %4432 = vmatprep.subr.bf16.mxu0 0
    %4433 = vmatpush1.bf16.msra.mxu0 %v4424
    %4434 = vmatprep.subr.bf16.mxu0 0
    %4435 = vmatpush1.bf16.msra.mxu0 0
    %4436 = vmatprep.subr.bf16.mxu0 0
    %4437 = vmatpush1.bf16.msra.mxu0 0
    %4438 = vmatprep.subr.bf16.mxu0 0
    %4439 = vmatpush1.bf16.msra.mxu0 0
    %4440 = vmatprep.subr.bf16.mxu0 0
    %4441 = vmatpush1.bf16.msra.mxu0 0
    %4442 = vmatprep.subr.bf16.mxu0 0
    %4443 = vmatpush1.bf16.msra.mxu0 0
    %4444 = vmatprep.subr.bf16.mxu0 0
    %4445 = vmatpush1.bf16.msra.mxu0 0
    %4446 = vmatprep.subr.bf16.mxu0 0
    %4447 = vmatpush1.bf16.msra.mxu0 0
    %4448 = vmatprep.subr.bf16.mxu0 0
    %4449 = vmatpush1.bf16.msra.mxu0 0
    %4450 = vmatprep.subr.bf16.mxu0 0
    %4451 = vmatpush1.bf16.msra.mxu0 0
    %4452 = vmatprep.subr.bf16.mxu0 0
    %4453 = vmatpush1.bf16.msra.mxu0 0
    %4454 = vmatprep.subr.bf16.mxu0 0
    %4455 = vmatpush1.bf16.msra.mxu0 0
    %4456 = vmatprep.subr.bf16.mxu0 0
    %4457 = vmatpush1.bf16.msra.mxu0 0
    %4458 = vmatprep.subr.bf16.mxu0 0
    %4459 = vmatpush1.bf16.msra.mxu0 0
    %4460 = vmatprep.subr.bf16.mxu0 0
    %4461 = vmatpush1.bf16.msra.mxu0 0
    %4462 = vmatprep.mubr.bf16.mxu0 0
    %4463 = vmatmul.mubr.bf16.gmra.mrb[0].mxu0 %v4428
    %v4464 = vpop.f32.mrb[0].mxu0
    %v4465 = vadd.f32 0.0, %v4464
    %v4466 = vpop.f32.mrb[0].mxu0
    %v4467 = vpop.f32.mrb[0].mxu0
    %v4468 = vadd.f32 0.0, %v4467
    %v4469 = vpop.f32.mrb[0].mxu0
    %4470 = vdwg.mxu0
    %v4471 = vadd.f32 %v4408, %v4465
    %v4472 = vadd.f32 %v4409, %v4468
    %s4473 = scalar_lea.vmem [#allocation6], 144
    %v4474 = vld [vmem:[%s4473] sm:$0xf]
    %v4475 = vld [vmem:[%s4473 + $0x4] sm:$0xf]
    %v4476 = vld [vmem:[%s4473 + $0x8] sm:$0xf]
    %v4477 = vld [vmem:[%s4473 + $0xc] sm:$0xf]
    %v4482 = vunpack.c.l.b16 %v4474
    %v4483 = vunpack.c.l.b16 %v4475
    %v4484 = vunpack.c.l.b16 %v4476
    %v4485 = vunpack.c.l.b16 %v4477
    %v4486 = vpack.c.b16 %v4483, %v4482
    %v4487 = vpack.c.b16 %v4485, %v4484
    %v4491 = vsel %vm225, %v3904, 0
    %4493 = vmatprep.subr.bf16.mxu0 0
    %4494 = vmatpush1.bf16.msra.mxu0 %v4486
    %4495 = vmatprep.subr.bf16.mxu0 0
    %4496 = vmatpush1.bf16.msra.mxu0 %v4487
    %4497 = vmatprep.subr.bf16.mxu0 0
    %4498 = vmatpush1.bf16.msra.mxu0 0
    %4499 = vmatprep.subr.bf16.mxu0 0
    %4500 = vmatpush1.bf16.msra.mxu0 0
    %4501 = vmatprep.subr.bf16.mxu0 0
    %4502 = vmatpush1.bf16.msra.mxu0 0
    %4503 = vmatprep.subr.bf16.mxu0 0
    %4504 = vmatpush1.bf16.msra.mxu0 0
    %4505 = vmatprep.subr.bf16.mxu0 0
    %4506 = vmatpush1.bf16.msra.mxu0 0
    %4507 = vmatprep.subr.bf16.mxu0 0
    %4508 = vmatpush1.bf16.msra.mxu0 0
    %4509 = vmatprep.subr.bf16.mxu0 0
    %4510 = vmatpush1.bf16.msra.mxu0 0
    %4511 = vmatprep.subr.bf16.mxu0 0
    %4512 = vmatpush1.bf16.msra.mxu0 0
    %4513 = vmatprep.subr.bf16.mxu0 0
    %4514 = vmatpush1.bf16.msra.mxu0 0
    %4515 = vmatprep.subr.bf16.mxu0 0
    %4516 = vmatpush1.bf16.msra.mxu0 0
    %4517 = vmatprep.subr.bf16.mxu0 0
    %4518 = vmatpush1.bf16.msra.mxu0 0
    %4519 = vmatprep.subr.bf16.mxu0 0
    %4520 = vmatpush1.bf16.msra.mxu0 0
    %4521 = vmatprep.subr.bf16.mxu0 0
    %4522 = vmatpush1.bf16.msra.mxu0 0
    %4523 = vmatprep.subr.bf16.mxu0 0
    %4524 = vmatpush1.bf16.msra.mxu0 0
    %4525 = vmatprep.mubr.bf16.mxu0 0
    %4526 = vmatmul.mubr.bf16.gmra.mrb[0].mxu0 %v4491
    %v4527 = vpop.f32.mrb[0].mxu0
    %v4528 = vadd.f32 0.0, %v4527
    %v4529 = vpop.f32.mrb[0].mxu0
    %v4530 = vpop.f32.mrb[0].mxu0
    %v4531 = vadd.f32 0.0, %v4530
    %v4532 = vpop.f32.mrb[0].mxu0
    %4533 = vdwg.mxu0
    %v4534 = vadd.f32 %v4471, %v4528
    %v4535 = vadd.f32 %v4472, %v4531
    %s4536 = scalar_lea.vmem [#allocation6], 160
    %v4537 = vld [vmem:[%s4536] sm:$0xf]
    %v4538 = vld [vmem:[%s4536 + $0x4] sm:$0xf]
    %v4539 = vld [vmem:[%s4536 + $0x8] sm:$0xf]
    %v4540 = vld [vmem:[%s4536 + $0xc] sm:$0xf]
    %v4545 = vunpack.c.l.b16 %v4537
    %v4546 = vunpack.c.l.b16 %v4538
    %v4547 = vunpack.c.l.b16 %v4539
    %v4548 = vunpack.c.l.b16 %v4540
    %v4549 = vpack.c.b16 %v4546, %v4545
    %v4550 = vpack.c.b16 %v4548, %v4547
    %v4554 = vsel %vm225, %v3905, 0
    %4556 = vmatprep.subr.bf16.mxu0 0
    %4557 = vmatpush1.bf16.msra.mxu0 %v4549
    %4558 = vmatprep.subr.bf16.mxu0 0
    %4559 = vmatpush1.bf16.msra.mxu0 %v4550
    %4560 = vmatprep.subr.bf16.mxu0 0
    %4561 = vmatpush1.bf16.msra.mxu0 0
    %4562 = vmatprep.subr.bf16.mxu0 0
    %4563 = vmatpush1.bf16.msra.mxu0 0
    %4564 = vmatprep.subr.bf16.mxu0 0
    %4565 = vmatpush1.bf16.msra.mxu0 0
    %4566 = vmatprep.subr.bf16.mxu0 0
    %4567 = vmatpush1.bf16.msra.mxu0 0
    %4568 = vmatprep.subr.bf16.mxu0 0
    %4569 = vmatpush1.bf16.msra.mxu0 0
    %4570 = vmatprep.subr.bf16.mxu0 0
    %4571 = vmatpush1.bf16.msra.mxu0 0
    %4572 = vmatprep.subr.bf16.mxu0 0
    %4573 = vmatpush1.bf16.msra.mxu0 0
    %4574 = vmatprep.subr.bf16.mxu0 0
    %4575 = vmatpush1.bf16.msra.mxu0 0
    %4576 = vmatprep.subr.bf16.mxu0 0
    %4577 = vmatpush1.bf16.msra.mxu0 0
    %4578 = vmatprep.subr.bf16.mxu0 0
    %4579 = vmatpush1.bf16.msra.mxu0 0
    %4580 = vmatprep.subr.bf16.mxu0 0
    %4581 = vmatpush1.bf16.msra.mxu0 0
    %4582 = vmatprep.subr.bf16.mxu0 0
    %4583 = vmatpush1.bf16.msra.mxu0 0
    %4584 = vmatprep.subr.bf16.mxu0 0
    %4585 = vmatpush1.bf16.msra.mxu0 0
    %4586 = vmatprep.subr.bf16.mxu0 0
    %4587 = vmatpush1.bf16.msra.mxu0 0
    %4588 = vmatprep.mubr.bf16.mxu0 0
    %4589 = vmatmul.mubr.bf16.gmra.mrb[0].mxu0 %v4554
    %v4590 = vpop.f32.mrb[0].mxu0
    %v4591 = vadd.f32 0.0, %v4590
    %v4592 = vpop.f32.mrb[0].mxu0
    %v4593 = vpop.f32.mrb[0].mxu0
    %v4594 = vadd.f32 0.0, %v4593
    %v4595 = vpop.f32.mrb[0].mxu0
    %4596 = vdwg.mxu0
    %v4597 = vadd.f32 %v4534, %v4591
    %v4598 = vadd.f32 %v4535, %v4594
    %s4599 = scalar_lea.vmem [#allocation6], 176
    %v4600 = vld [vmem:[%s4599] sm:$0xf]
    %v4601 = vld [vmem:[%s4599 + $0x4] sm:$0xf]
    %v4602 = vld [vmem:[%s4599 + $0x8] sm:$0xf]
    %v4603 = vld [vmem:[%s4599 + $0xc] sm:$0xf]
    %v4608 = vunpack.c.l.b16 %v4600
    %v4609 = vunpack.c.l.b16 %v4601
    %v4610 = vunpack.c.l.b16 %v4602
    %v4611 = vunpack.c.l.b16 %v4603
    %v4612 = vpack.c.b16 %v4609, %v4608
    %v4613 = vpack.c.b16 %v4611, %v4610
    %v4617 = vsel %vm225, %v3906, 0
    %4619 = vmatprep.subr.bf16.mxu0 0
    %4620 = vmatpush1.bf16.msra.mxu0 %v4612
    %4621 = vmatprep.subr.bf16.mxu0 0
    %4622 = vmatpush1.bf16.msra.mxu0 %v4613
    %4623 = vmatprep.subr.bf16.mxu0 0
    %4624 = vmatpush1.bf16.msra.mxu0 0
    %4625 = vmatprep.subr.bf16.mxu0 0
    %4626 = vmatpush1.bf16.msra.mxu0 0
    %4627 = vmatprep.subr.bf16.mxu0 0
    %4628 = vmatpush1.bf16.msra.mxu0 0
    %4629 = vmatprep.subr.bf16.mxu0 0
    %4630 = vmatpush1.bf16.msra.mxu0 0
    %4631 = vmatprep.subr.bf16.mxu0 0
    %4632 = vmatpush1.bf16.msra.mxu0 0
    %4633 = vmatprep.subr.bf16.mxu0 0
    %4634 = vmatpush1.bf16.msra.mxu0 0
    %4635 = vmatprep.subr.bf16.mxu0 0
    %4636 = vmatpush1.bf16.msra.mxu0 0
    %4637 = vmatprep.subr.bf16.mxu0 0
    %4638 = vmatpush1.bf16.msra.mxu0 0
    %4639 = vmatprep.subr.bf16.mxu0 0
    %4640 = vmatpush1.bf16.msra.mxu0 0
    %4641 = vmatprep.subr.bf16.mxu0 0
    %4642 = vmatpush1.bf16.msra.mxu0 0
    %4643 = vmatprep.subr.bf16.mxu0 0
    %4644 = vmatpush1.bf16.msra.mxu0 0
    %4645 = vmatprep.subr.bf16.mxu0 0
    %4646 = vmatpush1.bf16.msra.mxu0 0
    %4647 = vmatprep.subr.bf16.mxu0 0
    %4648 = vmatpush1.bf16.msra.mxu0 0
    %4649 = vmatprep.subr.bf16.mxu0 0
    %4650 = vmatpush1.bf16.msra.mxu0 0
    %4651 = vmatprep.mubr.bf16.mxu0 0
    %4652 = vmatmul.mubr.bf16.gmra.mrb[0].mxu0 %v4617
    %v4653 = vpop.f32.mrb[0].mxu0
    %v4654 = vadd.f32 0.0, %v4653
    %v4655 = vpop.f32.mrb[0].mxu0
    %v4656 = vpop.f32.mrb[0].mxu0
    %v4657 = vadd.f32 0.0, %v4656
    %v4658 = vpop.f32.mrb[0].mxu0
    %4659 = vdwg.mxu0
    %v4660 = vadd.f32 %v4597, %v4654
    %v4661 = vadd.f32 %v4598, %v4657
    %s4662 = scalar_lea.vmem [#allocation6], 192
    %v4663 = vld [vmem:[%s4662] sm:$0xf]
    %v4664 = vld [vmem:[%s4662 + $0x4] sm:$0xf]
    %v4665 = vld [vmem:[%s4662 + $0x8] sm:$0xf]
    %v4666 = vld [vmem:[%s4662 + $0xc] sm:$0xf]
    %v4671 = vunpack.c.l.b16 %v4663
    %v4672 = vunpack.c.l.b16 %v4664
    %v4673 = vunpack.c.l.b16 %v4665
    %v4674 = vunpack.c.l.b16 %v4666
    %v4675 = vpack.c.b16 %v4672, %v4671
    %v4676 = vpack.c.b16 %v4674, %v4673
    %v4680 = vsel %vm225, %v3907, 0
    %4682 = vmatprep.subr.bf16.mxu0 0
    %4683 = vmatpush1.bf16.msra.mxu0 %v4675
    %4684 = vmatprep.subr.bf16.mxu0 0
    %4685 = vmatpush1.bf16.msra.mxu0 %v4676
    %4686 = vmatprep.subr.bf16.mxu0 0
    %4687 = vmatpush1.bf16.msra.mxu0 0
    %4688 = vmatprep.subr.bf16.mxu0 0
    %4689 = vmatpush1.bf16.msra.mxu0 0
    %4690 = vmatprep.subr.bf16.mxu0 0
    %4691 = vmatpush1.bf16.msra.mxu0 0
    %4692 = vmatprep.subr.bf16.mxu0 0
    %4693 = vmatpush1.bf16.msra.mxu0 0
    %4694 = vmatprep.subr.bf16.mxu0 0
    %4695 = vmatpush1.bf16.msra.mxu0 0
    %4696 = vmatprep.subr.bf16.mxu0 0
    %4697 = vmatpush1.bf16.msra.mxu0 0
    %4698 = vmatprep.subr.bf16.mxu0 0
    %4699 = vmatpush1.bf16.msra.mxu0 0
    %4700 = vmatprep.subr.bf16.mxu0 0
    %4701 = vmatpush1.bf16.msra.mxu0 0
    %4702 = vmatprep.subr.bf16.mxu0 0
    %4703 = vmatpush1.bf16.msra.mxu0 0
    %4704 = vmatprep.subr.bf16.mxu0 0
    %4705 = vmatpush1.bf16.msra.mxu0 0
    %4706 = vmatprep.subr.bf16.mxu0 0
    %4707 = vmatpush1.bf16.msra.mxu0 0
    %4708 = vmatprep.subr.bf16.mxu0 0
    %4709 = vmatpush1.bf16.msra.mxu0 0
    %4710 = vmatprep.subr.bf16.mxu0 0
    %4711 = vmatpush1.bf16.msra.mxu0 0
    %4712 = vmatprep.subr.bf16.mxu0 0
    %4713 = vmatpush1.bf16.msra.mxu0 0
    %4714 = vmatprep.mubr.bf16.mxu0 0
    %4715 = vmatmul.mubr.bf16.gmra.mrb[0].mxu0 %v4680
    %v4716 = vpop.f32.mrb[0].mxu0
    %v4717 = vadd.f32 0.0, %v4716
    %v4718 = vpop.f32.mrb[0].mxu0
    %v4719 = vpop.f32.mrb[0].mxu0
    %v4720 = vadd.f32 0.0, %v4719
    %v4721 = vpop.f32.mrb[0].mxu0
    %4722 = vdwg.mxu0
    %v4723 = vadd.f32 %v4660, %v4717
    %v4724 = vadd.f32 %v4661, %v4720
    %s4725 = scalar_lea.vmem [#allocation6], 208
    %v4726 = vld [vmem:[%s4725] sm:$0xf]
    %v4727 = vld [vmem:[%s4725 + $0x4] sm:$0xf]
    %v4728 = vld [vmem:[%s4725 + $0x8] sm:$0xf]
    %v4729 = vld [vmem:[%s4725 + $0xc] sm:$0xf]
    %v4734 = vunpack.c.l.b16 %v4726
    %v4735 = vunpack.c.l.b16 %v4727
    %v4736 = vunpack.c.l.b16 %v4728
    %v4737 = vunpack.c.l.b16 %v4729
    %v4738 = vpack.c.b16 %v4735, %v4734
    %v4739 = vpack.c.b16 %v4737, %v4736
    %v4743 = vsel %vm225, %v3908, 0
    %4745 = vmatprep.subr.bf16.mxu0 0
    %4746 = vmatpush1.bf16.msra.mxu0 %v4738
    %4747 = vmatprep.subr.bf16.mxu0 0
    %4748 = vmatpush1.bf16.msra.mxu0 %v4739
    %4749 = vmatprep.subr.bf16.mxu0 0
    %4750 = vmatpush1.bf16.msra.mxu0 0
    %4751 = vmatprep.subr.bf16.mxu0 0
    %4752 = vmatpush1.bf16.msra.mxu0 0
    %4753 = vmatprep.subr.bf16.mxu0 0
    %4754 = vmatpush1.bf16.msra.mxu0 0
    %4755 = vmatprep.subr.bf16.mxu0 0
    %4756 = vmatpush1.bf16.msra.mxu0 0
    %4757 = vmatprep.subr.bf16.mxu0 0
    %4758 = vmatpush1.bf16.msra.mxu0 0
    %4759 = vmatprep.subr.bf16.mxu0 0
    %4760 = vmatpush1.bf16.msra.mxu0 0
    %4761 = vmatprep.subr.bf16.mxu0 0
    %4762 = vmatpush1.bf16.msra.mxu0 0
    %4763 = vmatprep.subr.bf16.mxu0 0
    %4764 = vmatpush1.bf16.msra.mxu0 0
    %4765 = vmatprep.subr.bf16.mxu0 0
    %4766 = vmatpush1.bf16.msra.mxu0 0
    %4767 = vmatprep.subr.bf16.mxu0 0
    %4768 = vmatpush1.bf16.msra.mxu0 0
    %4769 = vmatprep.subr.bf16.mxu0 0
    %4770 = vmatpush1.bf16.msra.mxu0 0
    %4771 = vmatprep.subr.bf16.mxu0 0
    %4772 = vmatpush1.bf16.msra.mxu0 0
    %4773 = vmatprep.subr.bf16.mxu0 0
    %4774 = vmatpush1.bf16.msra.mxu0 0
    %4775 = vmatprep.subr.bf16.mxu0 0
    %4776 = vmatpush1.bf16.msra.mxu0 0
    %4777 = vmatprep.mubr.bf16.mxu0 0
    %4778 = vmatmul.mubr.bf16.gmra.mrb[0].mxu0 %v4743
    %v4779 = vpop.f32.mrb[0].mxu0
    %v4780 = vadd.f32 0.0, %v4779
    %v4781 = vpop.f32.mrb[0].mxu0
    %v4782 = vpop.f32.mrb[0].mxu0
    %v4783 = vadd.f32 0.0, %v4782
    %v4784 = vpop.f32.mrb[0].mxu0
    %4785 = vdwg.mxu0
    %v4786 = vadd.f32 %v4723, %v4780
    %v4787 = vadd.f32 %v4724, %v4783
    %s4788 = scalar_lea.vmem [#allocation6], 224
    %v4789 = vld [vmem:[%s4788] sm:$0xf]
    %v4790 = vld [vmem:[%s4788 + $0x4] sm:$0xf]
    %v4791 = vld [vmem:[%s4788 + $0x8] sm:$0xf]
    %v4792 = vld [vmem:[%s4788 + $0xc] sm:$0xf]
    %v4797 = vunpack.c.l.b16 %v4789
    %v4798 = vunpack.c.l.b16 %v4790
    %v4799 = vunpack.c.l.b16 %v4791
    %v4800 = vunpack.c.l.b16 %v4792
    %v4801 = vpack.c.b16 %v4798, %v4797
    %v4802 = vpack.c.b16 %v4800, %v4799
    %v4806 = vsel %vm225, %v3909, 0
    %4808 = vmatprep.subr.bf16.mxu0 0
    %4809 = vmatpush1.bf16.msra.mxu0 %v4801
    %4810 = vmatprep.subr.bf16.mxu0 0
    %4811 = vmatpush1.bf16.msra.mxu0 %v4802
    %4812 = vmatprep.subr.bf16.mxu0 0
    %4813 = vmatpush1.bf16.msra.mxu0 0
    %4814 = vmatprep.subr.bf16.mxu0 0
    %4815 = vmatpush1.bf16.msra.mxu0 0
    %4816 = vmatprep.subr.bf16.mxu0 0
    %4817 = vmatpush1.bf16.msra.mxu0 0
    %4818 = vmatprep.subr.bf16.mxu0 0
    %4819 = vmatpush1.bf16.msra.mxu0 0
    %4820 = vmatprep.subr.bf16.mxu0 0
    %4821 = vmatpush1.bf16.msra.mxu0 0
    %4822 = vmatprep.subr.bf16.mxu0 0
    %4823 = vmatpush1.bf16.msra.mxu0 0
    %4824 = vmatprep.subr.bf16.mxu0 0
    %4825 = vmatpush1.bf16.msra.mxu0 0
    %4826 = vmatprep.subr.bf16.mxu0 0
    %4827 = vmatpush1.bf16.msra.mxu0 0
    %4828 = vmatprep.subr.bf16.mxu0 0
    %4829 = vmatpush1.bf16.msra.mxu0 0
    %4830 = vmatprep.subr.bf16.mxu0 0
    %4831 = vmatpush1.bf16.msra.mxu0 0
    %4832 = vmatprep.subr.bf16.mxu0 0
    %4833 = vmatpush1.bf16.msra.mxu0 0
    %4834 = vmatprep.subr.bf16.mxu0 0
    %4835 = vmatpush1.bf16.msra.mxu0 0
    %4836 = vmatprep.subr.bf16.mxu0 0
    %4837 = vmatpush1.bf16.msra.mxu0 0
    %4838 = vmatprep.subr.bf16.mxu0 0
    %4839 = vmatpush1.bf16.msra.mxu0 0
    %4840 = vmatprep.mubr.bf16.mxu0 0
    %4841 = vmatmul.mubr.bf16.gmra.mrb[0].mxu0 %v4806
    %v4842 = vpop.f32.mrb[0].mxu0
    %v4843 = vadd.f32 0.0, %v4842
    %v4844 = vpop.f32.mrb[0].mxu0
    %v4845 = vpop.f32.mrb[0].mxu0
    %v4846 = vadd.f32 0.0, %v4845
    %v4847 = vpop.f32.mrb[0].mxu0
    %4848 = vdwg.mxu0
    %v4849 = vadd.f32 %v4786, %v4843
    %v4850 = vadd.f32 %v4787, %v4846
    %s4851 = scalar_lea.vmem [#allocation6], 240
    %v4852 = vld [vmem:[%s4851] sm:$0xf]
    %v4853 = vld [vmem:[%s4851 + $0x4] sm:$0xf]
    %v4854 = vld [vmem:[%s4851 + $0x8] sm:$0xf]
    %v4855 = vld [vmem:[%s4851 + $0xc] sm:$0xf]
    %v4860 = vunpack.c.l.b16 %v4852
    %v4861 = vunpack.c.l.b16 %v4853
    %v4862 = vunpack.c.l.b16 %v4854
    %v4863 = vunpack.c.l.b16 %v4855
    %v4864 = vpack.c.b16 %v4861, %v4860
    %v4865 = vpack.c.b16 %v4863, %v4862
    %v4869 = vsel %vm225, %v3910, 0
    %4871 = vmatprep.subr.bf16.mxu0 0
    %4872 = vmatpush1.bf16.msra.mxu0 %v4864
    %4873 = vmatprep.subr.bf16.mxu0 0
    %4874 = vmatpush1.bf16.msra.mxu0 %v4865
    %4875 = vmatprep.subr.bf16.mxu0 0
    %4876 = vmatpush1.bf16.msra.mxu0 0
    %4877 = vmatprep.subr.bf16.mxu0 0
    %4878 = vmatpush1.bf16.msra.mxu0 0
    %4879 = vmatprep.subr.bf16.mxu0 0
    %4880 = vmatpush1.bf16.msra.mxu0 0
    %4881 = vmatprep.subr.bf16.mxu0 0
    %4882 = vmatpush1.bf16.msra.mxu0 0
    %4883 = vmatprep.subr.bf16.mxu0 0
    %4884 = vmatpush1.bf16.msra.mxu0 0
    %4885 = vmatprep.subr.bf16.mxu0 0
    %4886 = vmatpush1.bf16.msra.mxu0 0
    %4887 = vmatprep.subr.bf16.mxu0 0
    %4888 = vmatpush1.bf16.msra.mxu0 0
    %4889 = vmatprep.subr.bf16.mxu0 0
    %4890 = vmatpush1.bf16.msra.mxu0 0
    %4891 = vmatprep.subr.bf16.mxu0 0
    %4892 = vmatpush1.bf16.msra.mxu0 0
    %4893 = vmatprep.subr.bf16.mxu0 0
    %4894 = vmatpush1.bf16.msra.mxu0 0
    %4895 = vmatprep.subr.bf16.mxu0 0
    %4896 = vmatpush1.bf16.msra.mxu0 0
    %4897 = vmatprep.subr.bf16.mxu0 0
    %4898 = vmatpush1.bf16.msra.mxu0 0
    %4899 = vmatprep.subr.bf16.mxu0 0
    %4900 = vmatpush1.bf16.msra.mxu0 0
    %4901 = vmatprep.subr.bf16.mxu0 0
    %4902 = vmatpush1.bf16.msra.mxu0 0
    %4903 = vmatprep.mubr.bf16.mxu0 0
    %4904 = vmatmul.mubr.bf16.gmra.mrb[0].mxu0 %v4869
    %v4905 = vpop.f32.mrb[0].mxu0
    %v4906 = vadd.f32 0.0, %v4905
    %v4907 = vpop.f32.mrb[0].mxu0
    %v4908 = vpop.f32.mrb[0].mxu0
    %v4909 = vadd.f32 0.0, %v4908
    %v4910 = vpop.f32.mrb[0].mxu0
    %4911 = vdwg.mxu0
    %v4912 = vadd.f32 %v4849, %v4906
    %v4913 = vadd.f32 %v4850, %v4909
    %v4914 = vld [vmem:[%s6] sm:$0x1]
    %v4916 = vlaneseq
    %v4917 = vshrl.u32 %v4916, 7
    %v4918 = vsub.s32 0, %v4917
    %v4919 = vrot.slane %v4914, %v4918
    %v4921 = vadd.f32 %v4912, %v4919
    %v4922 = vadd.f32 %v4913, %v4919
    %4923 = vst [vmem:[%s7] sm:$0xff] %v4921
    %4924 = vst [vmem:[%s7 + $0x8] sm:$0xff] %v4922
    // Predicated region
    $region38: #{forward.1} parent=1 // pred_check
      _
    $region39: #{forward.1} parent=1 // pred_check_branch
      %4926 = sbr.rel (0) target = $region41
    $region40: #{forward.1} parent=1 // pred_region
      _
    $region41: #{forward.1} parent=1 // pred_fallthru
      _
    // Predicated region
    $region42: #{forward.1} parent=1 // pred_check
      _
    $region43: #{forward.1} parent=1 // pred_check_branch
      %4928 = sbr.rel (0) target = $region45
    $region44: #{forward.1} parent=1 // pred_region
      _
    $region45: #{forward.1} parent=1 // pred_fallthru
      _
    %4929 = vsyncpa [#allocation5], 1
    %4930 = vsyncpa [#allocation7], 1

</llo_original>
